<compile_context>
chip_gen: v7x
topology: tpu7x:2x2x1
jax: 0.10.0
libtpu: 0.0.40
codegen_flags: <defaults>
</compile_context>

<pallas_src>
import functools

import jax
import jax.numpy as jnp
from jax.experimental import pallas as pl
from jax.experimental.pallas import tpu as pltpu


_LANE = 128      # lane width: output-channel / K alignment
_K_ALIGN = 256   # contraction-dim alignment (matches 256-wide MXU on v6e/v7x)


def _round_up(x, m):
    return (x + m - 1) // m * m


# ----------------------------------------------------------------------------
# Pallas kernels
# ----------------------------------------------------------------------------
def _matmul_bias_act_kernel(a_ref, b_ref, bias_ref, o_ref, acc_ref, *, act):
    """One (tm, tn) output tile; K is the innermost ('arbitrary') grid axis."""
    @pl.when(pl.program_id(2) == 0)
    def _init():
        acc_ref[...] = jnp.zeros_like(acc_ref)

    # bf16 x bf16 -> f32 accumulation on the MXU.
    acc_ref[...] += jnp.dot(a_ref[...], b_ref[...],
                            preferred_element_type=jnp.float32)

    @pl.when(pl.program_id(2) == pl.num_programs(2) - 1)
    def _finalize():
        acc = acc_ref[...] + bias_ref[...]          # bias broadcast over rows
        if act == "relu":
            acc = jnp.maximum(acc, 0.0)
        elif act == "tanh":
            acc = jnp.tanh(acc)
        elif act == "softplus":
            acc = jnp.logaddexp(acc, 0.0)
        # act == "none": identity
        o_ref[...] = acc.astype(o_ref.dtype)


def matmul_bias_act(a, b_p, bias_p, act="relu", out_dtype=jnp.bfloat16):
    """act(a @ b + bias) with pre-padded weights.

    a:      (M, K)   activations (cast to bf16 here, zero-padded to (Mp, Kp))
    b_p:    (Kp, Np) bf16 weights, pre-padded to 128-multiples
    bias_p: (1, Np)  f32 bias, pre-padded
    Returns (M, Np) in `out_dtype`; caller slices the channel padding off.
    """
    M, K = a.shape
    Kp, Np = b_p.shape
    assert Kp >= K and Kp % _LANE == 0 and Np % _LANE == 0

    tm = min(256, _round_up(M, 8))
    Mp = _round_up(M, tm)
    tn = Np if Np <= 256 else (256 if Np % 256 == 0 else _LANE)
    tk = next(t for t in (512, 256, 128) if Kp % t == 0)

    a_p = jnp.pad(a.astype(jnp.bfloat16), ((0, Mp - M), (0, Kp - K)))
    grid = (Mp // tm, Np // tn, Kp // tk)

    out = pl.pallas_call(
        functools.partial(_matmul_bias_act_kernel, act=act),
        out_shape=jax.ShapeDtypeStruct((Mp, Np), out_dtype),
        grid=grid,
        in_specs=[
            pl.BlockSpec((tm, tk), lambda i, j, k: (i, k)),
            pl.BlockSpec((tk, tn), lambda i, j, k: (k, j)),
            pl.BlockSpec((1, tn), lambda i, j, k: (0, j)),
        ],
        out_specs=pl.BlockSpec((tm, tn), lambda i, j, k: (i, j)),
        scratch_shapes=[pltpu.VMEM((tm, tn), jnp.float32)],
        compiler_params=pltpu.CompilerParams(
            dimension_semantics=("parallel", "parallel", "arbitrary"),
            vmem_limit_bytes=48 * 1024 * 1024,
        ),
        cost_estimate=pl.CostEstimate(
            flops=2 * Mp * Np * Kp,
            transcendentals=Mp * Np if act in ("tanh", "softplus") else 0,
            bytes_accessed=(Mp * Kp + Kp * Np) * 2 + Np * 4
                           + Mp * Np * jnp.dtype(out_dtype).itemsize,
        ),
    )(a_p, b_p, bias_p)
    return out[:M]


def _gap_fc_kernel(x_ref, w_ref, b_ref, o_ref, *, inv_hw):
    # x_ref: (N, H*W, C) bf16; w_ref: (C, Ncp) bf16; b_ref: (1, Ncp) f32
    feat = jnp.sum(x_ref[...].astype(jnp.float32), axis=1) * inv_hw   # (N, C)
    out = jnp.dot(feat.astype(jnp.bfloat16), w_ref[...],
                  preferred_element_type=jnp.float32)
    o_ref[...] = out + b_ref[...]


def gap_fc(x_nhwc, w_p, b_p, num_classes):
    """Fused GlobalAvgPool + Linear: (N, H, W, C) -> (N, num_classes) f32."""
    N, H, W, C = x_nhwc.shape
    Cp, Ncp = w_p.shape
    assert C == Cp
    x3 = x_nhwc.reshape(N, H * W, C).astype(jnp.bfloat16)
    out = pl.pallas_call(
        functools.partial(_gap_fc_kernel, inv_hw=1.0 / float(H * W)),
        out_shape=jax.ShapeDtypeStruct((N, Ncp), jnp.float32),
        grid=(1,),
        in_specs=[
            pl.BlockSpec((N, H * W, C), lambda i: (0, 0, 0)),
            pl.BlockSpec((Cp, Ncp), lambda i: (0, 0)),
            pl.BlockSpec((1, Ncp), lambda i: (0, 0)),
        ],
        out_specs=pl.BlockSpec((N, Ncp), lambda i: (0, 0)),
        compiler_params=pltpu.CompilerParams(
            dimension_semantics=("arbitrary",)),
    )(x3, w_p, b_p)
    return out[:, :num_classes]


# ----------------------------------------------------------------------------
# JAX glue: im2col, conv wrapper, max-pool
# ----------------------------------------------------------------------------
# TODO(synk): for large inputs, fold the kh*kw tap accumulation into the matmul
#             kernel (per-tap (M,C)x(C,O) dots into the same f32 accumulator) to
#             avoid materializing the im2col patch matrix in HBM; here we at
#             least build it in bf16 to halve the duplicated activation traffic.
def im2col(x, kh, kw, stride, pad):
    """x: (N, H, W, C) bf16 -> (N*Ho*Wo, kh*kw*C) patch matrix (bf16)."""
    N, H, W, C = x.shape
    xp = jnp.pad(x, ((0, 0), (pad, pad), (pad, pad), (0, 0)))
    Ho = (H + 2 * pad - kh) // stride + 1
    Wo = (W + 2 * pad - kw) // stride + 1
    cols = [xp[:, i:i + stride * Ho:stride, j:j + stride * Wo:stride, :]
            for i in range(kh) for j in range(kw)]
    patches = jnp.stack(cols, axis=3)                # (N, Ho, Wo, kh*kw, C)
    return patches.reshape(N * Ho * Wo, kh * kw * C), (N, Ho, Wo)


def conv2d_act(x_nhwc, w_p, bias_p, out_ch, kh, kw, stride, pad, act):
    """Conv2d(bias=True) + activation via im2col + fused Pallas matmul."""
    a, (N, Ho, Wo) = im2col(x_nhwc, kh, kw, stride, pad)
    y = matmul_bias_act(a, w_p, bias_p, act=act)     # (M, Np) bf16, lane-dense
    return y[:, :out_ch].reshape(N, Ho, Wo, out_ch)


def maxpool2x2(x):
    """MaxPool2d(2, 2) with PyTorch floor semantics (crops odd trailing row/col)."""
    N, H, W, C = x.shape
    x = x[:, :(H // 2) * 2, :(W // 2) * 2, :]
    a = x[:, 0::2, 0::2, :]
    b = x[:, 0::2, 1::2, :]
    c = x[:, 1::2, 0::2, :]
    d = x[:, 1::2, 1::2, :]
    return jnp.maximum(jnp.maximum(a, b), jnp.maximum(c, d))


# ----------------------------------------------------------------------------
# Model: parameter init + one-time preprocessing + forward
# ----------------------------------------------------------------------------
# (out_channels, kernel, stride, pad) — matches the PyTorch module.
_CONV_CFG = [
    (64, 11, 4, 5),
    (192, 5, 1, 2),
    (384, 3, 1, 1),
    (256, 3, 1, 1),
    (128, 3, 1, 1),
]


def init_params(key, num_classes, in_channels):
    """PyTorch-layout parameters: conv (O, I, kh, kw) + bias, linear (out, in) + bias."""
    params = {}
    keys = jax.random.split(key, len(_CONV_CFG) + 1)
    ci = in_channels
    for idx, (co, k, _, _) in enumerate(_CONV_CFG):
        fan_in = float(ci * k * k)
        w = jax.random.normal(keys[idx], (co, ci, k, k), jnp.float32) / jnp.sqrt(fan_in)
        b = jax.random.normal(jax.random.fold_in(keys[idx], 1), (co,), jnp.float32) * 0.01
        params[f"conv{idx}"] = (w, b)
        ci = co
    fw = jax.random.normal(keys[-1], (num_classes, 128), jnp.float32) / jnp.sqrt(128.0)
    fb = jax.random.normal(jax.random.fold_in(keys[-1], 1), (num_classes,), jnp.float32) * 0.01
    params["fc"] = (fw, fb)
    return params


def preprocess_params(params):
    """One-time: flatten conv kernels to (K, O), zero-pad K/N to lane multiples,
    cast to bf16, and pre-transpose the FC weight (no per-step relayouts)."""
    prepped = {}
    for idx in range(len(_CONV_CFG)):
        w, b = params[f"conv{idx}"]
        O, I, kh, kw = w.shape
        K = kh * kw * I
        Kp = _round_up(K, _K_ALIGN)
        Np = _round_up(O, _LANE)
        # flatten to match patch ordering: index = (i*kw + j)*C + c
        wf = jnp.transpose(w, (2, 3, 1, 0)).reshape(K, O)
        prepped[f"conv{idx}_w"] = jnp.pad(
            wf, ((0, Kp - K), (0, Np - O))).astype(jnp.bfloat16)
        prepped[f"conv{idx}_b"] = jnp.pad(
            b, (0, Np - O)).reshape(1, Np).astype(jnp.float32)
    fw, fb = params["fc"]
    nc = fw.shape[0]
    Ncp = _round_up(nc, _LANE)
    prepped["fc_w"] = jnp.pad(fw.T, ((0, 0), (0, Ncp - nc))).astype(jnp.bfloat16)
    prepped["fc_b"] = jnp.pad(fb, (0, Ncp - nc)).reshape(1, Ncp).astype(jnp.float32)
    return prepped


def malexnet_forward(prepped, x_nchw, act="relu", num_classes=10):
    # TODO(synk): nn.Dropout layers are identity here (eval-mode semantics);
    #             MC-dropout stochastic sampling is not applied.
    x = jnp.transpose(x_nchw, (0, 2, 3, 1)).astype(jnp.bfloat16)   # NCHW -> NHWC
    for idx, (co, k, stride, pad) in enumerate(_CONV_CFG):
        x = conv2d_act(x, prepped[f"conv{idx}_w"], prepped[f"conv{idx}_b"],
                       co, k, k, stride, pad, act)
        if idx < 2:                       # MaxPool2d(2, 2) after conv0 and conv1
            x = maxpool2x2(x)
    return gap_fc(x, prepped["fc_w"], prepped["fc_b"], num_classes)


if __name__ == "__main__":
    key = jax.random.PRNGKey(0)
    pkey, xkey = jax.random.split(key)
    num_classes, in_channels = 10, 3
    params = init_params(pkey, num_classes, in_channels)
    prepped = preprocess_params(params)   # one-time weight flatten/pad/bf16 cast
    x = jax.random.normal(xkey, (2, in_channels, 32, 32), jnp.float32)

    fwd = jax.jit(functools.partial(malexnet_forward, act="relu",
                                    num_classes=num_classes))
    out = fwd(prepped, x)
    jax.block_until_ready(out)
    assert out.shape == (2, num_classes), out.shape
    assert out.dtype == jnp.float32
    print("KERNEL_OK")
</pallas_src>

<mosaic_0001>
module attributes {stable_mosaic.version = 11 : i64} {
  func.func @_matmul_bias_act_kernel(%arg0: i32, %arg1: i32, %arg2: i32, %arg3: memref<128x512xbf16, #tpu.memory_space<vmem>>, %arg4: memref<512x128xbf16, #tpu.memory_space<vmem>>, %arg5: memref<1x128xf32, #tpu.memory_space<vmem>>, %arg6: memref<128x128xbf16, #tpu.memory_space<vmem>>, %arg7: memref<128x128xf32, #tpu.memory_space<vmem>>) attributes {dimension_semantics = [#tpu.dimension_semantics<parallel>, #tpu.dimension_semantics<parallel>, #tpu.dimension_semantics<arbitrary>], iteration_bounds = array<i64: 1, 1, 1>, scalar_prefetch = 0 : i64, scratch_operands = 1 : i64, tpu.core_type = #tpu.core_type<tc>, window_params = [{transform_indices = @transform_0, window_bounds = array<i64: 128, 512>}, {transform_indices = @transform_1, window_bounds = array<i64: 512, 128>}, {transform_indices = @transform_2, window_bounds = array<i64: 1, 128>}, {transform_indices = @transform_3, window_bounds = array<i64: 128, 128>}]} {
    %c0_i32 = arith.constant 0 : i32
    %0 = arith.cmpi eq, %arg2, %c0_i32 : i32
    %1 = arith.extui %0 : i1 to i32
    %c0_i32_0 = arith.constant 0 : i32
    %2 = arith.cmpi ne, %1, %c0_i32_0 : i32
    scf.if %2 {
      %cst_10 = arith.constant 0.000000e+00 : f32
      %12 = vector.broadcast %cst_10 : f32 to vector<128x128xf32>
      %c0_11 = arith.constant 0 : index
      %c0_12 = arith.constant 0 : index
      %13 = vector.load %arg7[%c0_11, %c0_12] : memref<128x128xf32, #tpu.memory_space<vmem>>, vector<128x128xf32>
      tpu.vector_store %arg7[%c0_11, %c0_12], %12 {strides = array<i32>} : memref<128x128xf32, #tpu.memory_space<vmem>>, vector<128x128xf32>,
    } else {
    }
    %c0 = arith.constant 0 : index
    %c0_1 = arith.constant 0 : index
    %3 = vector.load %arg7[%c0, %c0_1] : memref<128x128xf32, #tpu.memory_space<vmem>>, vector<128x128xf32>
    %c0_2 = arith.constant 0 : index
    %c0_3 = arith.constant 0 : index
    %4 = vector.load %arg3[%c0_2, %c0_3] : memref<128x512xbf16, #tpu.memory_space<vmem>>, vector<128x512xbf16>
    %c0_4 = arith.constant 0 : index
    %c0_5 = arith.constant 0 : index
    %5 = vector.load %arg4[%c0_4, %c0_5] : memref<512x128xbf16, #tpu.memory_space<vmem>>, vector<512x128xbf16>
    %cst = arith.constant dense<0.000000e+00> : vector<128x128xf32>
    %6 = tpu.matmul %4, %5, %cst {dimension_numbers = #tpu.dot_dimension_numbers<[1], [0], [0], [1], [0, 0, 1, 1], [], []>} : vector<128x512xbf16>, vector<512x128xbf16>, vector<128x128xf32> -> vector<128x128xf32>
    %7 = arith.addf %3, %6 : vector<128x128xf32>
    %c0_6 = arith.constant 0 : index
    %c0_7 = arith.constant 0 : index
    %8 = vector.load %arg7[%c0_6, %c0_7] : memref<128x128xf32, #tpu.memory_space<vmem>>, vector<128x128xf32>
    tpu.vector_store %arg7[%c0_6, %c0_7], %7 {strides = array<i32>} : memref<128x128xf32, #tpu.memory_space<vmem>>, vector<128x128xf32>,
    %c0_i32_8 = arith.constant 0 : i32
    %9 = arith.cmpi eq, %arg2, %c0_i32_8 : i32
    %10 = arith.extui %9 : i1 to i32
    %c0_i32_9 = arith.constant 0 : i32
    %11 = arith.cmpi ne, %10, %c0_i32_9 : i32
    scf.if %11 {
      %c0_10 = arith.constant 0 : index
      %c0_11 = arith.constant 0 : index
      %12 = vector.load %arg7[%c0_10, %c0_11] : memref<128x128xf32, #tpu.memory_space<vmem>>, vector<128x128xf32>
      %c0_12 = arith.constant 0 : index
      %c0_13 = arith.constant 0 : index
      %13 = vector.load %arg5[%c0_12, %c0_13] : memref<1x128xf32, #tpu.memory_space<vmem>>, vector<1x128xf32>
      %14 = vector.broadcast %13 : vector<1x128xf32> to vector<128x128xf32>
      %15 = arith.addf %12, %14 : vector<128x128xf32>
      %cst_14 = arith.constant 0.000000e+00 : f32
      %16 = vector.broadcast %cst_14 : f32 to vector<128x128xf32>
      %17 = arith.maximumf %15, %16 : vector<128x128xf32>
      %18 = arith.truncf %17 : vector<128x128xf32> to vector<128x128xbf16>
      %c0_15 = arith.constant 0 : index
      %c0_16 = arith.constant 0 : index
      %19 = vector.load %arg6[%c0_15, %c0_16] : memref<128x128xbf16, #tpu.memory_space<vmem>>, vector<128x128xbf16>
      tpu.vector_store %arg6[%c0_15, %c0_16], %18 {strides = array<i32>} : memref<128x128xbf16, #tpu.memory_space<vmem>>, vector<128x128xbf16>,
    } else {
    }
    return
  }
  func.func @transform_0(%arg0: i32, %arg1: i32, %arg2: i32) -> (i32, i32) {
    %c0_i32 = arith.constant 0 : i32
    return %arg0, %arg2 : i32, i32
  }
  func.func @transform_1(%arg0: i32, %arg1: i32, %arg2: i32) -> (i32, i32) {
    %c0_i32 = arith.constant 0 : i32
    return %arg2, %arg1 : i32, i32
  }
  func.func @transform_2(%arg0: i32, %arg1: i32, %arg2: i32) -> (i32, i32) {
    %c0_i32 = arith.constant 0 : i32
    %c0_i32_0 = arith.constant 0 : i32
    return %c0_i32, %arg1 : i32, i32
  }
  func.func @transform_3(%arg0: i32, %arg1: i32, %arg2: i32) -> (i32, i32) {
    %c0_i32 = arith.constant 0 : i32
    return %arg0, %arg1 : i32, i32
  }
}

module attributes {stable_mosaic.version = 11 : i64} {
  func.func @_matmul_bias_act_kernel(%arg0: i32, %arg1: i32, %arg2: i32, %arg3: memref<32x256xbf16, #tpu.memory_space<vmem>>, %arg4: memref<256x256xbf16, #tpu.memory_space<vmem>>, %arg5: memref<1x256xf32, #tpu.memory_space<vmem>>, %arg6: memref<32x256xbf16, #tpu.memory_space<vmem>>, %arg7: memref<32x256xf32, #tpu.memory_space<vmem>>) attributes {dimension_semantics = [#tpu.dimension_semantics<parallel>, #tpu.dimension_semantics<parallel>, #tpu.dimension_semantics<arbitrary>], iteration_bounds = array<i64: 1, 1, 7>, scalar_prefetch = 0 : i64, scratch_operands = 1 : i64, tpu.core_type = #tpu.core_type<tc>, window_params = [{transform_indices = @transform_0, window_bounds = array<i64: 32, 256>}, {transform_indices = @transform_1, window_bounds = array<i64: 256, 256>}, {transform_indices = @transform_2, window_bounds = array<i64: 1, 256>}, {transform_indices = @transform_3, window_bounds = array<i64: 32, 256>}]} {
    %c0_i32 = arith.constant 0 : i32
    %0 = arith.cmpi eq, %arg2, %c0_i32 : i32
    %1 = arith.extui %0 : i1 to i32
    %c0_i32_0 = arith.constant 0 : i32
    %2 = arith.cmpi ne, %1, %c0_i32_0 : i32
    scf.if %2 {
      %cst_9 = arith.constant 0.000000e+00 : f32
      %12 = vector.broadcast %cst_9 : f32 to vector<32x256xf32>
      %c0_10 = arith.constant 0 : index
      %c0_11 = arith.constant 0 : index
      %13 = vector.load %arg7[%c0_10, %c0_11] : memref<32x256xf32, #tpu.memory_space<vmem>>, vector<32x256xf32>
      tpu.vector_store %arg7[%c0_10, %c0_11], %12 {strides = array<i32>} : memref<32x256xf32, #tpu.memory_space<vmem>>, vector<32x256xf32>,
    } else {
    }
    %c0 = arith.constant 0 : index
    %c0_1 = arith.constant 0 : index
    %3 = vector.load %arg7[%c0, %c0_1] : memref<32x256xf32, #tpu.memory_space<vmem>>, vector<32x256xf32>
    %c0_2 = arith.constant 0 : index
    %c0_3 = arith.constant 0 : index
    %4 = vector.load %arg3[%c0_2, %c0_3] : memref<32x256xbf16, #tpu.memory_space<vmem>>, vector<32x256xbf16>
    %c0_4 = arith.constant 0 : index
    %c0_5 = arith.constant 0 : index
    %5 = vector.load %arg4[%c0_4, %c0_5] : memref<256x256xbf16, #tpu.memory_space<vmem>>, vector<256x256xbf16>
    %cst = arith.constant dense<0.000000e+00> : vector<32x256xf32>
    %6 = tpu.matmul %4, %5, %cst {dimension_numbers = #tpu.dot_dimension_numbers<[1], [0], [0], [1], [0, 0, 1, 1], [], []>} : vector<32x256xbf16>, vector<256x256xbf16>, vector<32x256xf32> -> vector<32x256xf32>
    %7 = arith.addf %3, %6 : vector<32x256xf32>
    %c0_6 = arith.constant 0 : index
    %c0_7 = arith.constant 0 : index
    %8 = vector.load %arg7[%c0_6, %c0_7] : memref<32x256xf32, #tpu.memory_space<vmem>>, vector<32x256xf32>
    tpu.vector_store %arg7[%c0_6, %c0_7], %7 {strides = array<i32>} : memref<32x256xf32, #tpu.memory_space<vmem>>, vector<32x256xf32>,
    %c6_i32 = arith.constant 6 : i32
    %9 = arith.cmpi eq, %arg2, %c6_i32 : i32
    %10 = arith.extui %9 : i1 to i32
    %c0_i32_8 = arith.constant 0 : i32
    %11 = arith.cmpi ne, %10, %c0_i32_8 : i32
    scf.if %11 {
      %c0_9 = arith.constant 0 : index
      %c0_10 = arith.constant 0 : index
      %12 = vector.load %arg7[%c0_9, %c0_10] : memref<32x256xf32, #tpu.memory_space<vmem>>, vector<32x256xf32>
      %c0_11 = arith.constant 0 : index
      %c0_12 = arith.constant 0 : index
      %13 = vector.load %arg5[%c0_11, %c0_12] : memref<1x256xf32, #tpu.memory_space<vmem>>, vector<1x256xf32>
      %14 = vector.broadcast %13 : vector<1x256xf32> to vector<32x256xf32>
      %15 = arith.addf %12, %14 : vector<32x256xf32>
      %cst_13 = arith.constant 0.000000e+00 : f32
      %16 = vector.broadcast %cst_13 : f32 to vector<32x256xf32>
      %17 = arith.maximumf %15, %16 : vector<32x256xf32>
      %18 = arith.truncf %17 : vector<32x256xf32> to vector<32x256xbf16>
      %c0_14 = arith.constant 0 : index
      %c0_15 = arith.constant 0 : index
      %19 = vector.load %arg6[%c0_14, %c0_15] : memref<32x256xbf16, #tpu.memory_space<vmem>>, vector<32x256xbf16>
      tpu.vector_store %arg6[%c0_14, %c0_15], %18 {strides = array<i32>} : memref<32x256xbf16, #tpu.memory_space<vmem>>, vector<32x256xbf16>,
    } else {
    }
    return
  }
  func.func @transform_0(%arg0: i32, %arg1: i32, %arg2: i32) -> (i32, i32) {
    %c0_i32 = arith.constant 0 : i32
    return %arg0, %arg2 : i32, i32
  }
  func.func @transform_1(%arg0: i32, %arg1: i32, %arg2: i32) -> (i32, i32) {
    %c0_i32 = arith.constant 0 : i32
    return %arg2, %arg1 : i32, i32
  }
  func.func @transform_2(%arg0: i32, %arg1: i32, %arg2: i32) -> (i32, i32) {
    %c0_i32 = arith.constant 0 : i32
    %c0_i32_0 = arith.constant 0 : i32
    return %c0_i32, %arg1 : i32, i32
  }
  func.func @transform_3(%arg0: i32, %arg1: i32, %arg2: i32) -> (i32, i32) {
    %c0_i32 = arith.constant 0 : i32
    return %arg0, %arg1 : i32, i32
  }
}

module attributes {stable_mosaic.version = 11 : i64} {
  func.func @_matmul_bias_act_kernel(%arg0: i32, %arg1: i32, %arg2: i32, %arg3: memref<8x256xbf16, #tpu.memory_space<vmem>>, %arg4: memref<256x128xbf16, #tpu.memory_space<vmem>>, %arg5: memref<1x128xf32, #tpu.memory_space<vmem>>, %arg6: memref<8x128xbf16, #tpu.memory_space<vmem>>, %arg7: memref<8x128xf32, #tpu.memory_space<vmem>>) attributes {dimension_semantics = [#tpu.dimension_semantics<parallel>, #tpu.dimension_semantics<parallel>, #tpu.dimension_semantics<arbitrary>], iteration_bounds = array<i64: 1, 3, 7>, scalar_prefetch = 0 : i64, scratch_operands = 1 : i64, tpu.core_type = #tpu.core_type<tc>, window_params = [{transform_indices = @transform_0, window_bounds = array<i64: 8, 256>}, {transform_indices = @transform_1, window_bounds = array<i64: 256, 128>}, {transform_indices = @transform_2, window_bounds = array<i64: 1, 128>}, {transform_indices = @transform_3, window_bounds = array<i64: 8, 128>}]} {
    %c0_i32 = arith.constant 0 : i32
    %0 = arith.cmpi eq, %arg2, %c0_i32 : i32
    %1 = arith.extui %0 : i1 to i32
    %c0_i32_0 = arith.constant 0 : i32
    %2 = arith.cmpi ne, %1, %c0_i32_0 : i32
    scf.if %2 {
      %cst_9 = arith.constant 0.000000e+00 : f32
      %12 = vector.broadcast %cst_9 : f32 to vector<8x128xf32>
      %c0_10 = arith.constant 0 : index
      %c0_11 = arith.constant 0 : index
      %13 = vector.load %arg7[%c0_10, %c0_11] : memref<8x128xf32, #tpu.memory_space<vmem>>, vector<8x128xf32>
      tpu.vector_store %arg7[%c0_10, %c0_11], %12 {strides = array<i32>} : memref<8x128xf32, #tpu.memory_space<vmem>>, vector<8x128xf32>,
    } else {
    }
    %c0 = arith.constant 0 : index
    %c0_1 = arith.constant 0 : index
    %3 = vector.load %arg7[%c0, %c0_1] : memref<8x128xf32, #tpu.memory_space<vmem>>, vector<8x128xf32>
    %c0_2 = arith.constant 0 : index
    %c0_3 = arith.constant 0 : index
    %4 = vector.load %arg3[%c0_2, %c0_3] : memref<8x256xbf16, #tpu.memory_space<vmem>>, vector<8x256xbf16>
    %c0_4 = arith.constant 0 : index
    %c0_5 = arith.constant 0 : index
    %5 = vector.load %arg4[%c0_4, %c0_5] : memref<256x128xbf16, #tpu.memory_space<vmem>>, vector<256x128xbf16>
    %cst = arith.constant dense<0.000000e+00> : vector<8x128xf32>
    %6 = tpu.matmul %4, %5, %cst {dimension_numbers = #tpu.dot_dimension_numbers<[1], [0], [0], [1], [0, 0, 1, 1], [], []>} : vector<8x256xbf16>, vector<256x128xbf16>, vector<8x128xf32> -> vector<8x128xf32>
    %7 = arith.addf %3, %6 : vector<8x128xf32>
    %c0_6 = arith.constant 0 : index
    %c0_7 = arith.constant 0 : index
    %8 = vector.load %arg7[%c0_6, %c0_7] : memref<8x128xf32, #tpu.memory_space<vmem>>, vector<8x128xf32>
    tpu.vector_store %arg7[%c0_6, %c0_7], %7 {strides = array<i32>} : memref<8x128xf32, #tpu.memory_space<vmem>>, vector<8x128xf32>,
    %c6_i32 = arith.constant 6 : i32
    %9 = arith.cmpi eq, %arg2, %c6_i32 : i32
    %10 = arith.extui %9 : i1 to i32
    %c0_i32_8 = arith.constant 0 : i32
    %11 = arith.cmpi ne, %10, %c0_i32_8 : i32
    scf.if %11 {
      %c0_9 = arith.constant 0 : index
      %c0_10 = arith.constant 0 : index
      %12 = vector.load %arg7[%c0_9, %c0_10] : memref<8x128xf32, #tpu.memory_space<vmem>>, vector<8x128xf32>
      %c0_11 = arith.constant 0 : index
      %c0_12 = arith.constant 0 : index
      %13 = vector.load %arg5[%c0_11, %c0_12] : memref<1x128xf32, #tpu.memory_space<vmem>>, vector<1x128xf32>
      %14 = vector.broadcast %13 : vector<1x128xf32> to vector<8x128xf32>
      %15 = arith.addf %12, %14 : vector<8x128xf32>
      %cst_13 = arith.constant 0.000000e+00 : f32
      %16 = vector.broadcast %cst_13 : f32 to vector<8x128xf32>
      %17 = arith.maximumf %15, %16 : vector<8x128xf32>
      %18 = arith.truncf %17 : vector<8x128xf32> to vector<8x128xbf16>
      %c0_14 = arith.constant 0 : index
      %c0_15 = arith.constant 0 : index
      %19 = vector.load %arg6[%c0_14, %c0_15] : memref<8x128xbf16, #tpu.memory_space<vmem>>, vector<8x128xbf16>
      tpu.vector_store %arg6[%c0_14, %c0_15], %18 {strides = array<i32>} : memref<8x128xbf16, #tpu.memory_space<vmem>>, vector<8x128xbf16>,
    } else {
    }
    return
  }
  func.func @transform_0(%arg0: i32, %arg1: i32, %arg2: i32) -> (i32, i32) {
    %c0_i32 = arith.constant 0 : i32
    return %arg0, %arg2 : i32, i32
  }
  func.func @transform_1(%arg0: i32, %arg1: i32, %arg2: i32) -> (i32, i32) {
    %c0_i32 = arith.constant 0 : i32
    return %arg2, %arg1 : i32, i32
  }
  func.func @transform_2(%arg0: i32, %arg1: i32, %arg2: i32) -> (i32, i32) {
    %c0_i32 = arith.constant 0 : i32
    %c0_i32_0 = arith.constant 0 : i32
    return %c0_i32, %arg1 : i32, i32
  }
  func.func @transform_3(%arg0: i32, %arg1: i32, %arg2: i32) -> (i32, i32) {
    %c0_i32 = arith.constant 0 : i32
    return %arg0, %arg1 : i32, i32
  }
}

module attributes {stable_mosaic.version = 11 : i64} {
  func.func @_matmul_bias_act_kernel(%arg0: i32, %arg1: i32, %arg2: i32, %arg3: memref<8x512xbf16, #tpu.memory_space<vmem>>, %arg4: memref<512x256xbf16, #tpu.memory_space<vmem>>, %arg5: memref<1x256xf32, #tpu.memory_space<vmem>>, %arg6: memref<8x256xbf16, #tpu.memory_space<vmem>>, %arg7: memref<8x256xf32, #tpu.memory_space<vmem>>) attributes {dimension_semantics = [#tpu.dimension_semantics<parallel>, #tpu.dimension_semantics<parallel>, #tpu.dimension_semantics<arbitrary>], iteration_bounds = array<i64: 1, 1, 7>, scalar_prefetch = 0 : i64, scratch_operands = 1 : i64, tpu.core_type = #tpu.core_type<tc>, window_params = [{transform_indices = @transform_0, window_bounds = array<i64: 8, 512>}, {transform_indices = @transform_1, window_bounds = array<i64: 512, 256>}, {transform_indices = @transform_2, window_bounds = array<i64: 1, 256>}, {transform_indices = @transform_3, window_bounds = array<i64: 8, 256>}]} {
    %c0_i32 = arith.constant 0 : i32
    %0 = arith.cmpi eq, %arg2, %c0_i32 : i32
    %1 = arith.extui %0 : i1 to i32
    %c0_i32_0 = arith.constant 0 : i32
    %2 = arith.cmpi ne, %1, %c0_i32_0 : i32
    scf.if %2 {
      %cst_9 = arith.constant 0.000000e+00 : f32
      %12 = vector.broadcast %cst_9 : f32 to vector<8x256xf32>
      %c0_10 = arith.constant 0 : index
      %c0_11 = arith.constant 0 : index
      %13 = vector.load %arg7[%c0_10, %c0_11] : memref<8x256xf32, #tpu.memory_space<vmem>>, vector<8x256xf32>
      tpu.vector_store %arg7[%c0_10, %c0_11], %12 {strides = array<i32>} : memref<8x256xf32, #tpu.memory_space<vmem>>, vector<8x256xf32>,
    } else {
    }
    %c0 = arith.constant 0 : index
    %c0_1 = arith.constant 0 : index
    %3 = vector.load %arg7[%c0, %c0_1] : memref<8x256xf32, #tpu.memory_space<vmem>>, vector<8x256xf32>
    %c0_2 = arith.constant 0 : index
    %c0_3 = arith.constant 0 : index
    %4 = vector.load %arg3[%c0_2, %c0_3] : memref<8x512xbf16, #tpu.memory_space<vmem>>, vector<8x512xbf16>
    %c0_4 = arith.constant 0 : index
    %c0_5 = arith.constant 0 : index
    %5 = vector.load %arg4[%c0_4, %c0_5] : memref<512x256xbf16, #tpu.memory_space<vmem>>, vector<512x256xbf16>
    %cst = arith.constant dense<0.000000e+00> : vector<8x256xf32>
    %6 = tpu.matmul %4, %5, %cst {dimension_numbers = #tpu.dot_dimension_numbers<[1], [0], [0], [1], [0, 0, 1, 1], [], []>} : vector<8x512xbf16>, vector<512x256xbf16>, vector<8x256xf32> -> vector<8x256xf32>
    %7 = arith.addf %3, %6 : vector<8x256xf32>
    %c0_6 = arith.constant 0 : index
    %c0_7 = arith.constant 0 : index
    %8 = vector.load %arg7[%c0_6, %c0_7] : memref<8x256xf32, #tpu.memory_space<vmem>>, vector<8x256xf32>
    tpu.vector_store %arg7[%c0_6, %c0_7], %7 {strides = array<i32>} : memref<8x256xf32, #tpu.memory_space<vmem>>, vector<8x256xf32>,
    %c6_i32 = arith.constant 6 : i32
    %9 = arith.cmpi eq, %arg2, %c6_i32 : i32
    %10 = arith.extui %9 : i1 to i32
    %c0_i32_8 = arith.constant 0 : i32
    %11 = arith.cmpi ne, %10, %c0_i32_8 : i32
    scf.if %11 {
      %c0_9 = arith.constant 0 : index
      %c0_10 = arith.constant 0 : index
      %12 = vector.load %arg7[%c0_9, %c0_10] : memref<8x256xf32, #tpu.memory_space<vmem>>, vector<8x256xf32>
      %c0_11 = arith.constant 0 : index
      %c0_12 = arith.constant 0 : index
      %13 = vector.load %arg5[%c0_11, %c0_12] : memref<1x256xf32, #tpu.memory_space<vmem>>, vector<1x256xf32>
      %14 = vector.broadcast %13 : vector<1x256xf32> to vector<8x256xf32>
      %15 = arith.addf %12, %14 : vector<8x256xf32>
      %cst_13 = arith.constant 0.000000e+00 : f32
      %16 = vector.broadcast %cst_13 : f32 to vector<8x256xf32>
      %17 = arith.maximumf %15, %16 : vector<8x256xf32>
      %18 = arith.truncf %17 : vector<8x256xf32> to vector<8x256xbf16>
      %c0_14 = arith.constant 0 : index
      %c0_15 = arith.constant 0 : index
      %19 = vector.load %arg6[%c0_14, %c0_15] : memref<8x256xbf16, #tpu.memory_space<vmem>>, vector<8x256xbf16>
      tpu.vector_store %arg6[%c0_14, %c0_15], %18 {strides = array<i32>} : memref<8x256xbf16, #tpu.memory_space<vmem>>, vector<8x256xbf16>,
    } else {
    }
    return
  }
  func.func @transform_0(%arg0: i32, %arg1: i32, %arg2: i32) -> (i32, i32) {
    %c0_i32 = arith.constant 0 : i32
    return %arg0, %arg2 : i32, i32
  }
  func.func @transform_1(%arg0: i32, %arg1: i32, %arg2: i32) -> (i32, i32) {
    %c0_i32 = arith.constant 0 : i32
    return %arg2, %arg1 : i32, i32
  }
  func.func @transform_2(%arg0: i32, %arg1: i32, %arg2: i32) -> (i32, i32) {
    %c0_i32 = arith.constant 0 : i32
    %c0_i32_0 = arith.constant 0 : i32
    return %c0_i32, %arg1 : i32, i32
  }
  func.func @transform_3(%arg0: i32, %arg1: i32, %arg2: i32) -> (i32, i32) {
    %c0_i32 = arith.constant 0 : i32
    return %arg0, %arg1 : i32, i32
  }
}

module attributes {stable_mosaic.version = 11 : i64} {
  func.func @_matmul_bias_act_kernel(%arg0: i32, %arg1: i32, %arg2: i32, %arg3: memref<8x256xbf16, #tpu.memory_space<vmem>>, %arg4: memref<256x128xbf16, #tpu.memory_space<vmem>>, %arg5: memref<1x128xf32, #tpu.memory_space<vmem>>, %arg6: memref<8x128xbf16, #tpu.memory_space<vmem>>, %arg7: memref<8x128xf32, #tpu.memory_space<vmem>>) attributes {dimension_semantics = [#tpu.dimension_semantics<parallel>, #tpu.dimension_semantics<parallel>, #tpu.dimension_semantics<arbitrary>], iteration_bounds = array<i64: 1, 1, 9>, scalar_prefetch = 0 : i64, scratch_operands = 1 : i64, tpu.core_type = #tpu.core_type<tc>, window_params = [{transform_indices = @transform_0, window_bounds = array<i64: 8, 256>}, {transform_indices = @transform_1, window_bounds = array<i64: 256, 128>}, {transform_indices = @transform_2, window_bounds = array<i64: 1, 128>}, {transform_indices = @transform_3, window_bounds = array<i64: 8, 128>}]} {
    %c0_i32 = arith.constant 0 : i32
    %0 = arith.cmpi eq, %arg2, %c0_i32 : i32
    %1 = arith.extui %0 : i1 to i32
    %c0_i32_0 = arith.constant 0 : i32
    %2 = arith.cmpi ne, %1, %c0_i32_0 : i32
    scf.if %2 {
      %cst_9 = arith.constant 0.000000e+00 : f32
      %12 = vector.broadcast %cst_9 : f32 to vector<8x128xf32>
      %c0_10 = arith.constant 0 : index
      %c0_11 = arith.constant 0 : index
      %13 = vector.load %arg7[%c0_10, %c0_11] : memref<8x128xf32, #tpu.memory_space<vmem>>, vector<8x128xf32>
      tpu.vector_store %arg7[%c0_10, %c0_11], %12 {strides = array<i32>} : memref<8x128xf32, #tpu.memory_space<vmem>>, vector<8x128xf32>,
    } else {
    }
    %c0 = arith.constant 0 : index
    %c0_1 = arith.constant 0 : index
    %3 = vector.load %arg7[%c0, %c0_1] : memref<8x128xf32, #tpu.memory_space<vmem>>, vector<8x128xf32>
    %c0_2 = arith.constant 0 : index
    %c0_3 = arith.constant 0 : index
    %4 = vector.load %arg3[%c0_2, %c0_3] : memref<8x256xbf16, #tpu.memory_space<vmem>>, vector<8x256xbf16>
    %c0_4 = arith.constant 0 : index
    %c0_5 = arith.constant 0 : index
    %5 = vector.load %arg4[%c0_4, %c0_5] : memref<256x128xbf16, #tpu.memory_space<vmem>>, vector<256x128xbf16>
    %cst = arith.constant dense<0.000000e+00> : vector<8x128xf32>
    %6 = tpu.matmul %4, %5, %cst {dimension_numbers = #tpu.dot_dimension_numbers<[1], [0], [0], [1], [0, 0, 1, 1], [], []>} : vector<8x256xbf16>, vector<256x128xbf16>, vector<8x128xf32> -> vector<8x128xf32>
    %7 = arith.addf %3, %6 : vector<8x128xf32>
    %c0_6 = arith.constant 0 : index
    %c0_7 = arith.constant 0 : index
    %8 = vector.load %arg7[%c0_6, %c0_7] : memref<8x128xf32, #tpu.memory_space<vmem>>, vector<8x128xf32>
    tpu.vector_store %arg7[%c0_6, %c0_7], %7 {strides = array<i32>} : memref<8x128xf32, #tpu.memory_space<vmem>>, vector<8x128xf32>,
    %c8_i32 = arith.constant 8 : i32
    %9 = arith.cmpi eq, %arg2, %c8_i32 : i32
    %10 = arith.extui %9 : i1 to i32
    %c0_i32_8 = arith.constant 0 : i32
    %11 = arith.cmpi ne, %10, %c0_i32_8 : i32
    scf.if %11 {
      %c0_9 = arith.constant 0 : index
      %c0_10 = arith.constant 0 : index
      %12 = vector.load %arg7[%c0_9, %c0_10] : memref<8x128xf32, #tpu.memory_space<vmem>>, vector<8x128xf32>
      %c0_11 = arith.constant 0 : index
      %c0_12 = arith.constant 0 : index
      %13 = vector.load %arg5[%c0_11, %c0_12] : memref<1x128xf32, #tpu.memory_space<vmem>>, vector<1x128xf32>
      %14 = vector.broadcast %13 : vector<1x128xf32> to vector<8x128xf32>
      %15 = arith.addf %12, %14 : vector<8x128xf32>
      %cst_13 = arith.constant 0.000000e+00 : f32
      %16 = vector.broadcast %cst_13 : f32 to vector<8x128xf32>
      %17 = arith.maximumf %15, %16 : vector<8x128xf32>
      %18 = arith.truncf %17 : vector<8x128xf32> to vector<8x128xbf16>
      %c0_14 = arith.constant 0 : index
      %c0_15 = arith.constant 0 : index
      %19 = vector.load %arg6[%c0_14, %c0_15] : memref<8x128xbf16, #tpu.memory_space<vmem>>, vector<8x128xbf16>
      tpu.vector_store %arg6[%c0_14, %c0_15], %18 {strides = array<i32>} : memref<8x128xbf16, #tpu.memory_space<vmem>>, vector<8x128xbf16>,
    } else {
    }
    return
  }
  func.func @transform_0(%arg0: i32, %arg1: i32, %arg2: i32) -> (i32, i32) {
    %c0_i32 = arith.constant 0 : i32
    return %arg0, %arg2 : i32, i32
  }
  func.func @transform_1(%arg0: i32, %arg1: i32, %arg2: i32) -> (i32, i32) {
    %c0_i32 = arith.constant 0 : i32
    return %arg2, %arg1 : i32, i32
  }
  func.func @transform_2(%arg0: i32, %arg1: i32, %arg2: i32) -> (i32, i32) {
    %c0_i32 = arith.constant 0 : i32
    %c0_i32_0 = arith.constant 0 : i32
    return %c0_i32, %arg1 : i32, i32
  }
  func.func @transform_3(%arg0: i32, %arg1: i32, %arg2: i32) -> (i32, i32) {
    %c0_i32 = arith.constant 0 : i32
    return %arg0, %arg1 : i32, i32
  }
}

module attributes {stable_mosaic.version = 11 : i64} {
  func.func @_gap_fc_kernel(%arg0: i32, %arg1: memref<2x4x128xbf16, #tpu.memory_space<vmem>>, %arg2: memref<128x128xbf16, #tpu.memory_space<vmem>>, %arg3: memref<1x128xf32, #tpu.memory_space<vmem>>, %arg4: memref<2x128xf32, #tpu.memory_space<vmem>>) attributes {dimension_semantics = [#tpu.dimension_semantics<arbitrary>], iteration_bounds = array<i64: 1>, scalar_prefetch = 0 : i64, scratch_operands = 0 : i64, tpu.core_type = #tpu.core_type<tc>, window_params = [{pipeline_mode = #tpu.pipeline_mode<synchronous>, transform_indices = @transform_0, window_bounds = array<i64: 2, 4, 128>}, {pipeline_mode = #tpu.pipeline_mode<synchronous>, transform_indices = @transform_1, window_bounds = array<i64: 128, 128>}, {pipeline_mode = #tpu.pipeline_mode<synchronous>, transform_indices = @transform_2, window_bounds = array<i64: 1, 128>}, {pipeline_mode = #tpu.pipeline_mode<synchronous>, transform_indices = @transform_3, window_bounds = array<i64: 2, 128>}]} {
    %c0 = arith.constant 0 : index
    %c0_0 = arith.constant 0 : index
    %c0_1 = arith.constant 0 : index
    %0 = vector.load %arg1[%c0, %c0_0, %c0_1] : memref<2x4x128xbf16, #tpu.memory_space<vmem>>, vector<2x4x128xbf16>
    %1 = arith.extf %0 : vector<2x4x128xbf16> to vector<2x4x128xf32>
    %cst = arith.constant dense<0.000000e+00> : vector<2x128xf32>
    %2 = vector.multi_reduction <add>, %1, %cst [1] : vector<2x4x128xf32> to vector<2x128xf32>
    %cst_2 = arith.constant 2.500000e-01 : f32
    %3 = vector.broadcast %cst_2 : f32 to vector<2x128xf32>
    %4 = arith.mulf %2, %3 : vector<2x128xf32>
    %5 = arith.truncf %4 : vector<2x128xf32> to vector<2x128xbf16>
    %c0_3 = arith.constant 0 : index
    %c0_4 = arith.constant 0 : index
    %6 = vector.load %arg2[%c0_3, %c0_4] : memref<128x128xbf16, #tpu.memory_space<vmem>>, vector<128x128xbf16>
    %cst_5 = arith.constant dense<0.000000e+00> : vector<2x128xf32>
    %7 = tpu.matmul %5, %6, %cst_5 {dimension_numbers = #tpu.dot_dimension_numbers<[1], [0], [0], [1], [0, 0, 1, 1], [], []>} : vector<2x128xbf16>, vector<128x128xbf16>, vector<2x128xf32> -> vector<2x128xf32>
    %c0_6 = arith.constant 0 : index
    %c0_7 = arith.constant 0 : index
    %8 = vector.load %arg3[%c0_6, %c0_7] : memref<1x128xf32, #tpu.memory_space<vmem>>, vector<1x128xf32>
    %9 = vector.broadcast %8 : vector<1x128xf32> to vector<2x128xf32>
    %10 = arith.addf %7, %9 : vector<2x128xf32>
    %c0_8 = arith.constant 0 : index
    %c0_9 = arith.constant 0 : index
    %11 = vector.load %arg4[%c0_8, %c0_9] : memref<2x128xf32, #tpu.memory_space<vmem>>, vector<2x128xf32>
    tpu.vector_store %arg4[%c0_8, %c0_9], %10 {strides = array<i32>} : memref<2x128xf32, #tpu.memory_space<vmem>>, vector<2x128xf32>,
    return
  }
  func.func @transform_0(%arg0: i32) -> (i32, i32, i32) {
    %c0_i32 = arith.constant 0 : i32
    %c0_i32_0 = arith.constant 0 : i32
    %c0_i32_1 = arith.constant 0 : i32
    %c0_i32_2 = arith.constant 0 : i32
    return %c0_i32, %c0_i32_0, %c0_i32_1 : i32, i32, i32
  }
  func.func @transform_1(%arg0: i32) -> (i32, i32) {
    %c0_i32 = arith.constant 0 : i32
    %c0_i32_0 = arith.constant 0 : i32
    %c0_i32_1 = arith.constant 0 : i32
    return %c0_i32, %c0_i32_0 : i32, i32
  }
  func.func @transform_2(%arg0: i32) -> (i32, i32) {
    %c0_i32 = arith.constant 0 : i32
    %c0_i32_0 = arith.constant 0 : i32
    %c0_i32_1 = arith.constant 0 : i32
    return %c0_i32, %c0_i32_0 : i32, i32
  }
  func.func @transform_3(%arg0: i32) -> (i32, i32) {
    %c0_i32 = arith.constant 0 : i32
    %c0_i32_0 = arith.constant 0 : i32
    %c0_i32_1 = arith.constant 0 : i32
    return %c0_i32, %c0_i32_0 : i32, i32
  }
}

</mosaic_0001>

<llo_original>
// kernel: malexnet_forward.6
$region0: #{malexnet_forward.6}
  #allocation0 [shape = 'u32[]', space=smem, size = 0x4, offset = 0x4, fixed_abs, tag = 'smem constant byte address 0x4 - core index']
  #allocation1 [shape = 'u32[144,128]{1,0:T(1,128)}', space=vmem, size = 0x12000, scoped, tag = 'internal scratch']
  #allocation2 [shape = 'f32[128,128]{1,0:T(8,128)}', space=vmem, size = 0x10000, scoped, tag = 'scratch operand']
  %s0 = inlined_call_operand.vmem [shape: bf16[128,512], index: 0, kind: input, shape index: {}]
  %s1 = inlined_call_operand.vmem [shape: bf16[512,128], index: 1, kind: input, shape index: {}]
  %s2 = inlined_call_operand.vmem [shape: f32[1,128], index: 2, kind: input, shape index: {}]
  %s3 = inlined_call_operand.vmem [shape: bf16[128,128], index: 3, kind: output, shape index: {}]
  %s4 = sld [smem:[#allocation0]]
  $region30: #{malexnet_forward.6} parent=0
    _
  %s6 = ssub.s32 1, %s4
  %s7 = scalar_select 0, %s6, %s4
  // Predicated region
  $region2: #{malexnet_forward.6} parent=0 // pred_check
    _
  $region3: #{malexnet_forward.6} parent=0 // pred_check_branch
    %9 = sbr.rel (0) target = $region5
  $region4: #{malexnet_forward.6} parent=0 // pred_region
    _
  $region5: #{malexnet_forward.6} parent=0 // pred_fallthru
    _
  // Predicated region
  $region6: #{malexnet_forward.6} parent=0 // pred_check
    _
  $region7: #{malexnet_forward.6} parent=0 // pred_check_branch
    %11 = sbr.rel (0) target = $region9
  $region8: #{malexnet_forward.6} parent=0 // pred_region
    _
  $region9: #{malexnet_forward.6} parent=0 // pred_fallthru
    _
  // Predicated region
  $region10: #{malexnet_forward.6} parent=0 // pred_check
    _
  $region11: #{malexnet_forward.6} parent=0 // pred_check_branch
    %13 = sbr.rel (0) target = $region13
  $region12: #{malexnet_forward.6} parent=0 // pred_region
    _
  $region13: #{malexnet_forward.6} parent=0 // pred_fallthru
    _
  %p15 = scmp.eq.s32.totalorder 0, 0
  // Predicated region
  $region14: #{malexnet_forward.6} parent=0 // pred_check
    %p16 = pneg %p15
  $region15: #{malexnet_forward.6} parent=0 // pred_check_branch
    %18 = sbr.rel (%p16) target = $region17
  $region16: #{malexnet_forward.6} parent=0 // pred_region
    %19 = vst [vmem:[#allocation2] sm:$0xff] 0.0
    %20 = vst [vmem:[#allocation2 + $0x8] sm:$0xff] 0.0
    %21 = vst [vmem:[#allocation2 + $0x10] sm:$0xff] 0.0
    %22 = vst [vmem:[#allocation2 + $0x18] sm:$0xff] 0.0
    %23 = vst [vmem:[#allocation2 + $0x20] sm:$0xff] 0.0
    %24 = vst [vmem:[#allocation2 + $0x28] sm:$0xff] 0.0
    %25 = vst [vmem:[#allocation2 + $0x30] sm:$0xff] 0.0
    %26 = vst [vmem:[#allocation2 + $0x38] sm:$0xff] 0.0
    %27 = vst [vmem:[#allocation2 + $0x40] sm:$0xff] 0.0
    %28 = vst [vmem:[#allocation2 + $0x48] sm:$0xff] 0.0
    %29 = vst [vmem:[#allocation2 + $0x50] sm:$0xff] 0.0
    %30 = vst [vmem:[#allocation2 + $0x58] sm:$0xff] 0.0
    %31 = vst [vmem:[#allocation2 + $0x60] sm:$0xff] 0.0
    %32 = vst [vmem:[#allocation2 + $0x68] sm:$0xff] 0.0
    %33 = vst [vmem:[#allocation2 + $0x70] sm:$0xff] 0.0
    %34 = vst [vmem:[#allocation2 + $0x78] sm:$0xff] 0.0
  $region17: #{malexnet_forward.6} parent=0 // pred_fallthru
    _
  %v35 = vld [vmem:[#allocation2] sm:$0xff]
  %v36 = vld [vmem:[#allocation2 + $0x8] sm:$0xff]
  %v37 = vld [vmem:[#allocation2 + $0x10] sm:$0xff]
  %v38 = vld [vmem:[#allocation2 + $0x18] sm:$0xff]
  %v39 = vld [vmem:[#allocation2 + $0x20] sm:$0xff]
  %v40 = vld [vmem:[#allocation2 + $0x28] sm:$0xff]
  %v41 = vld [vmem:[#allocation2 + $0x30] sm:$0xff]
  %v42 = vld [vmem:[#allocation2 + $0x38] sm:$0xff]
  %v43 = vld [vmem:[#allocation2 + $0x40] sm:$0xff]
  %v44 = vld [vmem:[#allocation2 + $0x48] sm:$0xff]
  %v45 = vld [vmem:[#allocation2 + $0x50] sm:$0xff]
  %v46 = vld [vmem:[#allocation2 + $0x58] sm:$0xff]
  %v47 = vld [vmem:[#allocation2 + $0x60] sm:$0xff]
  %v48 = vld [vmem:[#allocation2 + $0x68] sm:$0xff]
  %v49 = vld [vmem:[#allocation2 + $0x70] sm:$0xff]
  %v50 = vld [vmem:[#allocation2 + $0x78] sm:$0xff]
  %v51 = vld [vmem:[%s0] sm:$0xff]
  %v52 = vld [vmem:[%s0 + $0x8] sm:$0xff]
  %v53 = vld [vmem:[%s0 + $0x10] sm:$0xff]
  %v54 = vld [vmem:[%s0 + $0x18] sm:$0xff]
  %v55 = vld [vmem:[%s0 + $0x20] sm:$0xff]
  %v56 = vld [vmem:[%s0 + $0x28] sm:$0xff]
  %v57 = vld [vmem:[%s0 + $0x30] sm:$0xff]
  %v58 = vld [vmem:[%s0 + $0x38] sm:$0xff]
  %v59 = vld [vmem:[%s0 + $0x40] sm:$0xff]
  %v60 = vld [vmem:[%s0 + $0x48] sm:$0xff]
  %v61 = vld [vmem:[%s0 + $0x50] sm:$0xff]
  %v62 = vld [vmem:[%s0 + $0x58] sm:$0xff]
  %v63 = vld [vmem:[%s0 + $0x60] sm:$0xff]
  %v64 = vld [vmem:[%s0 + $0x68] sm:$0xff]
  %v65 = vld [vmem:[%s0 + $0x70] sm:$0xff]
  %v66 = vld [vmem:[%s0 + $0x78] sm:$0xff]
  %v67 = vld [vmem:[%s0 + $0x80] sm:$0xff]
  %v68 = vld [vmem:[%s0 + $0x88] sm:$0xff]
  %v69 = vld [vmem:[%s0 + $0x90] sm:$0xff]
  %v70 = vld [vmem:[%s0 + $0x98] sm:$0xff]
  %v71 = vld [vmem:[%s0 + $0xa0] sm:$0xff]
  %v72 = vld [vmem:[%s0 + $0xa8] sm:$0xff]
  %v73 = vld [vmem:[%s0 + $0xb0] sm:$0xff]
  %v74 = vld [vmem:[%s0 + $0xb8] sm:$0xff]
  %v75 = vld [vmem:[%s0 + $0xc0] sm:$0xff]
  %v76 = vld [vmem:[%s0 + $0xc8] sm:$0xff]
  %v77 = vld [vmem:[%s0 + $0xd0] sm:$0xff]
  %v78 = vld [vmem:[%s0 + $0xd8] sm:$0xff]
  %v79 = vld [vmem:[%s0 + $0xe0] sm:$0xff]
  %v80 = vld [vmem:[%s0 + $0xe8] sm:$0xff]
  %v81 = vld [vmem:[%s0 + $0xf0] sm:$0xff]
  %v82 = vld [vmem:[%s0 + $0xf8] sm:$0xff]
  %v83 = vld [vmem:[%s1] sm:$0xf]
  %v84 = vld [vmem:[%s1 + $0x4] sm:$0xf]
  %v85 = vld [vmem:[%s1 + $0x8] sm:$0xf]
  %v86 = vld [vmem:[%s1 + $0xc] sm:$0xf]
  %v87 = vld [vmem:[%s1 + $0x10] sm:$0xf]
  %v88 = vld [vmem:[%s1 + $0x14] sm:$0xf]
  %v89 = vld [vmem:[%s1 + $0x18] sm:$0xf]
  %v90 = vld [vmem:[%s1 + $0x1c] sm:$0xf]
  %v91 = vld [vmem:[%s1 + $0x20] sm:$0xf]
  %v92 = vld [vmem:[%s1 + $0x24] sm:$0xf]
  %v93 = vld [vmem:[%s1 + $0x28] sm:$0xf]
  %v94 = vld [vmem:[%s1 + $0x2c] sm:$0xf]
  %v95 = vld [vmem:[%s1 + $0x30] sm:$0xf]
  %v96 = vld [vmem:[%s1 + $0x34] sm:$0xf]
  %v97 = vld [vmem:[%s1 + $0x38] sm:$0xf]
  %v98 = vld [vmem:[%s1 + $0x3c] sm:$0xf]
  %v99 = vld [vmem:[%s1 + $0x40] sm:$0xf]
  %v100 = vld [vmem:[%s1 + $0x44] sm:$0xf]
  %v101 = vld [vmem:[%s1 + $0x48] sm:$0xf]
  %v102 = vld [vmem:[%s1 + $0x4c] sm:$0xf]
  %v103 = vld [vmem:[%s1 + $0x50] sm:$0xf]
  %v104 = vld [vmem:[%s1 + $0x54] sm:$0xf]
  %v105 = vld [vmem:[%s1 + $0x58] sm:$0xf]
  %v106 = vld [vmem:[%s1 + $0x5c] sm:$0xf]
  %v107 = vld [vmem:[%s1 + $0x60] sm:$0xf]
  %v108 = vld [vmem:[%s1 + $0x64] sm:$0xf]
  %v109 = vld [vmem:[%s1 + $0x68] sm:$0xf]
  %v110 = vld [vmem:[%s1 + $0x6c] sm:$0xf]
  %v111 = vld [vmem:[%s1 + $0x70] sm:$0xf]
  %v112 = vld [vmem:[%s1 + $0x74] sm:$0xf]
  %v113 = vld [vmem:[%s1 + $0x78] sm:$0xf]
  %v114 = vld [vmem:[%s1 + $0x7c] sm:$0xf]
  %v115 = vld [vmem:[%s1 + $0x80] sm:$0xf]
  %v116 = vld [vmem:[%s1 + $0x84] sm:$0xf]
  %v117 = vld [vmem:[%s1 + $0x88] sm:$0xf]
  %v118 = vld [vmem:[%s1 + $0x8c] sm:$0xf]
  %v119 = vld [vmem:[%s1 + $0x90] sm:$0xf]
  %v120 = vld [vmem:[%s1 + $0x94] sm:$0xf]
  %v121 = vld [vmem:[%s1 + $0x98] sm:$0xf]
  %v122 = vld [vmem:[%s1 + $0x9c] sm:$0xf]
  %v123 = vld [vmem:[%s1 + $0xa0] sm:$0xf]
  %v124 = vld [vmem:[%s1 + $0xa4] sm:$0xf]
  %v125 = vld [vmem:[%s1 + $0xa8] sm:$0xf]
  %v126 = vld [vmem:[%s1 + $0xac] sm:$0xf]
  %v127 = vld [vmem:[%s1 + $0xb0] sm:$0xf]
  %v128 = vld [vmem:[%s1 + $0xb4] sm:$0xf]
  %v129 = vld [vmem:[%s1 + $0xb8] sm:$0xf]
  %v130 = vld [vmem:[%s1 + $0xbc] sm:$0xf]
  %v131 = vld [vmem:[%s1 + $0xc0] sm:$0xf]
  %v132 = vld [vmem:[%s1 + $0xc4] sm:$0xf]
  %v133 = vld [vmem:[%s1 + $0xc8] sm:$0xf]
  %v134 = vld [vmem:[%s1 + $0xcc] sm:$0xf]
  %v135 = vld [vmem:[%s1 + $0xd0] sm:$0xf]
  %v136 = vld [vmem:[%s1 + $0xd4] sm:$0xf]
  %v137 = vld [vmem:[%s1 + $0xd8] sm:$0xf]
  %v138 = vld [vmem:[%s1 + $0xdc] sm:$0xf]
  %v139 = vld [vmem:[%s1 + $0xe0] sm:$0xf]
  %v140 = vld [vmem:[%s1 + $0xe4] sm:$0xf]
  %v141 = vld [vmem:[%s1 + $0xe8] sm:$0xf]
  %v142 = vld [vmem:[%s1 + $0xec] sm:$0xf]
  %v143 = vld [vmem:[%s1 + $0xf0] sm:$0xf]
  %v144 = vld [vmem:[%s1 + $0xf4] sm:$0xf]
  %v145 = vld [vmem:[%s1 + $0xf8] sm:$0xf]
  %v146 = vld [vmem:[%s1 + $0xfc] sm:$0xf]
  %v179 = vunpack.c.l.b16 %v51
  %v180 = vunpack.c.h.b16 %v51
  %v181 = vunpack.c.l.b16 %v52
  %v182 = vunpack.c.h.b16 %v52
  %v183 = vunpack.c.l.b16 %v53
  %v184 = vunpack.c.h.b16 %v53
  %v185 = vunpack.c.l.b16 %v54
  %v186 = vunpack.c.h.b16 %v54
  %v187 = vunpack.c.l.b16 %v55
  %v188 = vunpack.c.h.b16 %v55
  %v189 = vunpack.c.l.b16 %v56
  %v190 = vunpack.c.h.b16 %v56
  %v191 = vunpack.c.l.b16 %v57
  %v192 = vunpack.c.h.b16 %v57
  %v193 = vunpack.c.l.b16 %v58
  %v194 = vunpack.c.h.b16 %v58
  %v195 = vunpack.c.l.b16 %v59
  %v196 = vunpack.c.h.b16 %v59
  %v197 = vunpack.c.l.b16 %v60
  %v198 = vunpack.c.h.b16 %v60
  %v199 = vunpack.c.l.b16 %v61
  %v200 = vunpack.c.h.b16 %v61
  %v201 = vunpack.c.l.b16 %v62
  %v202 = vunpack.c.h.b16 %v62
  %v203 = vunpack.c.l.b16 %v63
  %v204 = vunpack.c.h.b16 %v63
  %v205 = vunpack.c.l.b16 %v64
  %v206 = vunpack.c.h.b16 %v64
  %v207 = vunpack.c.l.b16 %v65
  %v208 = vunpack.c.h.b16 %v65
  %v209 = vunpack.c.l.b16 %v66
  %v210 = vunpack.c.h.b16 %v66
  %v211 = vunpack.c.l.b16 %v67
  %v212 = vunpack.c.h.b16 %v67
  %v213 = vunpack.c.l.b16 %v68
  %v214 = vunpack.c.h.b16 %v68
  %v215 = vunpack.c.l.b16 %v69
  %v216 = vunpack.c.h.b16 %v69
  %v217 = vunpack.c.l.b16 %v70
  %v218 = vunpack.c.h.b16 %v70
  %v219 = vunpack.c.l.b16 %v71
  %v220 = vunpack.c.h.b16 %v71
  %v221 = vunpack.c.l.b16 %v72
  %v222 = vunpack.c.h.b16 %v72
  %v223 = vunpack.c.l.b16 %v73
  %v224 = vunpack.c.h.b16 %v73
  %v225 = vunpack.c.l.b16 %v74
  %v226 = vunpack.c.h.b16 %v74
  %v227 = vunpack.c.l.b16 %v75
  %v228 = vunpack.c.h.b16 %v75
  %v229 = vunpack.c.l.b16 %v76
  %v230 = vunpack.c.h.b16 %v76
  %v231 = vunpack.c.l.b16 %v77
  %v232 = vunpack.c.h.b16 %v77
  %v233 = vunpack.c.l.b16 %v78
  %v234 = vunpack.c.h.b16 %v78
  %v235 = vunpack.c.l.b16 %v79
  %v236 = vunpack.c.h.b16 %v79
  %v237 = vunpack.c.l.b16 %v80
  %v238 = vunpack.c.h.b16 %v80
  %v239 = vunpack.c.l.b16 %v81
  %v240 = vunpack.c.h.b16 %v81
  %v241 = vunpack.c.l.b16 %v82
  %v242 = vunpack.c.h.b16 %v82
  %v243 = vpack.c.b16 %v183, %v179
  %v244 = vpack.c.b16 %v184, %v180
  %v245 = vpack.c.b16 %v185, %v181
  %v246 = vpack.c.b16 %v186, %v182
  %v247 = vpack.c.b16 %v191, %v187
  %v248 = vpack.c.b16 %v192, %v188
  %v249 = vpack.c.b16 %v193, %v189
  %v250 = vpack.c.b16 %v194, %v190
  %v251 = vpack.c.b16 %v199, %v195
  %v252 = vpack.c.b16 %v200, %v196
  %v253 = vpack.c.b16 %v201, %v197
  %v254 = vpack.c.b16 %v202, %v198
  %v255 = vpack.c.b16 %v207, %v203
  %v256 = vpack.c.b16 %v208, %v204
  %v257 = vpack.c.b16 %v209, %v205
  %v258 = vpack.c.b16 %v210, %v206
  %v259 = vpack.c.b16 %v215, %v211
  %v260 = vpack.c.b16 %v216, %v212
  %v261 = vpack.c.b16 %v217, %v213
  %v262 = vpack.c.b16 %v218, %v214
  %v263 = vpack.c.b16 %v223, %v219
  %v264 = vpack.c.b16 %v224, %v220
  %v265 = vpack.c.b16 %v225, %v221
  %v266 = vpack.c.b16 %v226, %v222
  %v267 = vpack.c.b16 %v231, %v227
  %v268 = vpack.c.b16 %v232, %v228
  %v269 = vpack.c.b16 %v233, %v229
  %v270 = vpack.c.b16 %v234, %v230
  %v271 = vpack.c.b16 %v239, %v235
  %v272 = vpack.c.b16 %v240, %v236
  %v273 = vpack.c.b16 %v241, %v237
  %v274 = vpack.c.b16 %v242, %v238
  %v371 = vunpack.c.l.b16 %v83
  %v372 = vunpack.c.l.b16 %v84
  %v373 = vunpack.c.l.b16 %v85
  %v374 = vunpack.c.l.b16 %v86
  %v375 = vunpack.c.l.b16 %v87
  %v376 = vunpack.c.l.b16 %v88
  %v377 = vunpack.c.l.b16 %v89
  %v378 = vunpack.c.l.b16 %v90
  %v379 = vunpack.c.l.b16 %v91
  %v380 = vunpack.c.l.b16 %v92
  %v381 = vunpack.c.l.b16 %v93
  %v382 = vunpack.c.l.b16 %v94
  %v383 = vunpack.c.l.b16 %v95
  %v384 = vunpack.c.l.b16 %v96
  %v385 = vunpack.c.l.b16 %v97
  %v386 = vunpack.c.l.b16 %v98
  %v387 = vunpack.c.l.b16 %v99
  %v388 = vunpack.c.l.b16 %v100
  %v389 = vunpack.c.l.b16 %v101
  %v390 = vunpack.c.l.b16 %v102
  %v391 = vunpack.c.l.b16 %v103
  %v392 = vunpack.c.l.b16 %v104
  %v393 = vunpack.c.l.b16 %v105
  %v394 = vunpack.c.l.b16 %v106
  %v395 = vunpack.c.l.b16 %v107
  %v396 = vunpack.c.l.b16 %v108
  %v397 = vunpack.c.l.b16 %v109
  %v398 = vunpack.c.l.b16 %v110
  %v399 = vunpack.c.l.b16 %v111
  %v400 = vunpack.c.l.b16 %v112
  %v401 = vunpack.c.l.b16 %v113
  %v402 = vunpack.c.l.b16 %v114
  %v403 = vunpack.c.l.b16 %v115
  %v404 = vunpack.c.l.b16 %v116
  %v405 = vunpack.c.l.b16 %v117
  %v406 = vunpack.c.l.b16 %v118
  %v407 = vunpack.c.l.b16 %v119
  %v408 = vunpack.c.l.b16 %v120
  %v409 = vunpack.c.l.b16 %v121
  %v410 = vunpack.c.l.b16 %v122
  %v411 = vunpack.c.l.b16 %v123
  %v412 = vunpack.c.l.b16 %v124
  %v413 = vunpack.c.l.b16 %v125
  %v414 = vunpack.c.l.b16 %v126
  %v415 = vunpack.c.l.b16 %v127
  %v416 = vunpack.c.l.b16 %v128
  %v417 = vunpack.c.l.b16 %v129
  %v418 = vunpack.c.l.b16 %v130
  %v419 = vunpack.c.l.b16 %v131
  %v420 = vunpack.c.l.b16 %v132
  %v421 = vunpack.c.l.b16 %v133
  %v422 = vunpack.c.l.b16 %v134
  %v423 = vunpack.c.l.b16 %v135
  %v424 = vunpack.c.l.b16 %v136
  %v425 = vunpack.c.l.b16 %v137
  %v426 = vunpack.c.l.b16 %v138
  %v427 = vunpack.c.l.b16 %v139
  %v428 = vunpack.c.l.b16 %v140
  %v429 = vunpack.c.l.b16 %v141
  %v430 = vunpack.c.l.b16 %v142
  %v431 = vunpack.c.l.b16 %v143
  %v432 = vunpack.c.l.b16 %v144
  %v433 = vunpack.c.l.b16 %v145
  %v434 = vunpack.c.l.b16 %v146
  %v435 = vpack.c.b16 %v372, %v371
  %v436 = vpack.c.b16 %v374, %v373
  %v437 = vpack.c.b16 %v376, %v375
  %v438 = vpack.c.b16 %v378, %v377
  %v439 = vpack.c.b16 %v380, %v379
  %v440 = vpack.c.b16 %v382, %v381
  %v441 = vpack.c.b16 %v384, %v383
  %v442 = vpack.c.b16 %v386, %v385
  %v443 = vpack.c.b16 %v388, %v387
  %v444 = vpack.c.b16 %v390, %v389
  %v445 = vpack.c.b16 %v392, %v391
  %v446 = vpack.c.b16 %v394, %v393
  %v447 = vpack.c.b16 %v396, %v395
  %v448 = vpack.c.b16 %v398, %v397
  %v449 = vpack.c.b16 %v400, %v399
  %v450 = vpack.c.b16 %v402, %v401
  %v451 = vpack.c.b16 %v404, %v403
  %v452 = vpack.c.b16 %v406, %v405
  %v453 = vpack.c.b16 %v408, %v407
  %v454 = vpack.c.b16 %v410, %v409
  %v455 = vpack.c.b16 %v412, %v411
  %v456 = vpack.c.b16 %v414, %v413
  %v457 = vpack.c.b16 %v416, %v415
  %v458 = vpack.c.b16 %v418, %v417
  %v459 = vpack.c.b16 %v420, %v419
  %v460 = vpack.c.b16 %v422, %v421
  %v461 = vpack.c.b16 %v424, %v423
  %v462 = vpack.c.b16 %v426, %v425
  %v463 = vpack.c.b16 %v428, %v427
  %v464 = vpack.c.b16 %v430, %v429
  %v465 = vpack.c.b16 %v432, %v431
  %v466 = vpack.c.b16 %v434, %v433
  %499 = vmatprep.subr.bf16.mxu0 0
  %500 = vmatpush1.bf16.msra.mxu0 %v435
  %501 = vmatprep.subr.bf16.mxu0 0
  %502 = vmatpush1.bf16.msra.mxu0 %v436
  %503 = vmatprep.subr.bf16.mxu0 0
  %504 = vmatpush1.bf16.msra.mxu0 %v437
  %505 = vmatprep.subr.bf16.mxu0 0
  %506 = vmatpush1.bf16.msra.mxu0 %v438
  %507 = vmatprep.subr.bf16.mxu0 0
  %508 = vmatpush1.bf16.msra.mxu0 %v439
  %509 = vmatprep.subr.bf16.mxu0 0
  %510 = vmatpush1.bf16.msra.mxu0 %v440
  %511 = vmatprep.subr.bf16.mxu0 0
  %512 = vmatpush1.bf16.msra.mxu0 %v441
  %513 = vmatprep.subr.bf16.mxu0 0
  %514 = vmatpush1.bf16.msra.mxu0 %v442
  %515 = vmatprep.subr.bf16.mxu0 0
  %516 = vmatpush1.bf16.msra.mxu0 %v443
  %517 = vmatprep.subr.bf16.mxu0 0
  %518 = vmatpush1.bf16.msra.mxu0 %v444
  %519 = vmatprep.subr.bf16.mxu0 0
  %520 = vmatpush1.bf16.msra.mxu0 %v445
  %521 = vmatprep.subr.bf16.mxu0 0
  %522 = vmatpush1.bf16.msra.mxu0 %v446
  %523 = vmatprep.subr.bf16.mxu0 0
  %524 = vmatpush1.bf16.msra.mxu0 %v447
  %525 = vmatprep.subr.bf16.mxu0 0
  %526 = vmatpush1.bf16.msra.mxu0 %v448
  %527 = vmatprep.subr.bf16.mxu0 0
  %528 = vmatpush1.bf16.msra.mxu0 %v449
  %529 = vmatprep.subr.bf16.mxu0 0
  %530 = vmatpush1.bf16.msra.mxu0 %v450
  %531 = vmatprep.mubr.bf16.mxu0 %v244
  %532 = vmatmul.mubr.bf16.gmra.mrb[0].mxu0 %v243
  %v533 = vpop.f32.mrb[0].mxu0
  %v534 = vadd.f32 0.0, %v533
  %v535 = vpop.f32.mrb[0].mxu0
  %v536 = vpop.f32.mrb[0].mxu0
  %v537 = vadd.f32 0.0, %v536
  %v538 = vpop.f32.mrb[0].mxu0
  %539 = vmatprep.mubr.bf16.mxu0 %v248
  %540 = vmatmul.mubr.bf16.gmra.mrb[0].mxu0 %v247
  %v541 = vpop.f32.mrb[0].mxu0
  %v542 = vadd.f32 0.0, %v541
  %v543 = vpop.f32.mrb[0].mxu0
  %v544 = vpop.f32.mrb[0].mxu0
  %v545 = vadd.f32 0.0, %v544
  %v546 = vpop.f32.mrb[0].mxu0
  %547 = vmatprep.mubr.bf16.mxu0 %v252
  %548 = vmatmul.mubr.bf16.gmra.mrb[0].mxu0 %v251
  %v549 = vpop.f32.mrb[0].mxu0
  %v550 = vadd.f32 0.0, %v549
  %v551 = vpop.f32.mrb[0].mxu0
  %v552 = vpop.f32.mrb[0].mxu0
  %v553 = vadd.f32 0.0, %v552
  %v554 = vpop.f32.mrb[0].mxu0
  %555 = vmatprep.mubr.bf16.mxu0 %v256
  %556 = vmatmul.mubr.bf16.gmra.mrb[0].mxu0 %v255
  %v557 = vpop.f32.mrb[0].mxu0
  %v558 = vadd.f32 0.0, %v557
  %v559 = vpop.f32.mrb[0].mxu0
  %v560 = vpop.f32.mrb[0].mxu0
  %v561 = vadd.f32 0.0, %v560
  %v562 = vpop.f32.mrb[0].mxu0
  %563 = vmatprep.mubr.bf16.mxu0 %v260
  %564 = vmatmul.mubr.bf16.gmra.mrb[0].mxu0 %v259
  %v565 = vpop.f32.mrb[0].mxu0
  %v566 = vadd.f32 0.0, %v565
  %v567 = vpop.f32.mrb[0].mxu0
  %v568 = vpop.f32.mrb[0].mxu0
  %v569 = vadd.f32 0.0, %v568
  %v570 = vpop.f32.mrb[0].mxu0
  %571 = vmatprep.mubr.bf16.mxu0 %v264
  %572 = vmatmul.mubr.bf16.gmra.mrb[0].mxu0 %v263
  %v573 = vpop.f32.mrb[0].mxu0
  %v574 = vadd.f32 0.0, %v573
  %v575 = vpop.f32.mrb[0].mxu0
  %v576 = vpop.f32.mrb[0].mxu0
  %v577 = vadd.f32 0.0, %v576
  %v578 = vpop.f32.mrb[0].mxu0
  %579 = vmatprep.mubr.bf16.mxu0 %v268
  %580 = vmatmul.mubr.bf16.gmra.mrb[0].mxu0 %v267
  %v581 = vpop.f32.mrb[0].mxu0
  %v582 = vadd.f32 0.0, %v581
  %v583 = vpop.f32.mrb[0].mxu0
  %v584 = vpop.f32.mrb[0].mxu0
  %v585 = vadd.f32 0.0, %v584
  %v586 = vpop.f32.mrb[0].mxu0
  %587 = vmatprep.mubr.bf16.mxu0 %v272
  %588 = vmatmul.mubr.bf16.gmra.mrb[0].mxu0 %v271
  %v589 = vpop.f32.mrb[0].mxu0
  %v590 = vadd.f32 0.0, %v589
  %v591 = vpop.f32.mrb[0].mxu0
  %v592 = vpop.f32.mrb[0].mxu0
  %v593 = vadd.f32 0.0, %v592
  %v594 = vpop.f32.mrb[0].mxu0
  %595 = vdwg.mxu0
  %596 = vmatprep.subr.bf16.mxu0 0
  %597 = vmatpush1.bf16.msra.mxu0 %v451
  %598 = vmatprep.subr.bf16.mxu0 0
  %599 = vmatpush1.bf16.msra.mxu0 %v452
  %600 = vmatprep.subr.bf16.mxu0 0
  %601 = vmatpush1.bf16.msra.mxu0 %v453
  %602 = vmatprep.subr.bf16.mxu0 0
  %603 = vmatpush1.bf16.msra.mxu0 %v454
  %604 = vmatprep.subr.bf16.mxu0 0
  %605 = vmatpush1.bf16.msra.mxu0 %v455
  %606 = vmatprep.subr.bf16.mxu0 0
  %607 = vmatpush1.bf16.msra.mxu0 %v456
  %608 = vmatprep.subr.bf16.mxu0 0
  %609 = vmatpush1.bf16.msra.mxu0 %v457
  %610 = vmatprep.subr.bf16.mxu0 0
  %611 = vmatpush1.bf16.msra.mxu0 %v458
  %612 = vmatprep.subr.bf16.mxu0 0
  %613 = vmatpush1.bf16.msra.mxu0 %v459
  %614 = vmatprep.subr.bf16.mxu0 0
  %615 = vmatpush1.bf16.msra.mxu0 %v460
  %616 = vmatprep.subr.bf16.mxu0 0
  %617 = vmatpush1.bf16.msra.mxu0 %v461
  %618 = vmatprep.subr.bf16.mxu0 0
  %619 = vmatpush1.bf16.msra.mxu0 %v462
  %620 = vmatprep.subr.bf16.mxu0 0
  %621 = vmatpush1.bf16.msra.mxu0 %v463
  %622 = vmatprep.subr.bf16.mxu0 0
  %623 = vmatpush1.bf16.msra.mxu0 %v464
  %624 = vmatprep.subr.bf16.mxu0 0
  %625 = vmatpush1.bf16.msra.mxu0 %v465
  %626 = vmatprep.subr.bf16.mxu0 0
  %627 = vmatpush1.bf16.msra.mxu0 %v466
  %628 = vmatprep.mubr.bf16.mxu0 %v246
  %629 = vmatmul.mubr.bf16.gmra.mrb[0].mxu0 %v245
  %v630 = vpop.f32.mrb[0].mxu0
  %v631 = vadd.f32 %v534, %v630
  %v632 = vpop.f32.mrb[0].mxu0
  %v633 = vpop.f32.mrb[0].mxu0
  %v634 = vadd.f32 %v537, %v633
  %v635 = vpop.f32.mrb[0].mxu0
  %636 = vmatprep.mubr.bf16.mxu0 %v250
  %637 = vmatmul.mubr.bf16.gmra.mrb[0].mxu0 %v249
  %v638 = vpop.f32.mrb[0].mxu0
  %v639 = vadd.f32 %v542, %v638
  %v640 = vpop.f32.mrb[0].mxu0
  %v641 = vpop.f32.mrb[0].mxu0
  %v642 = vadd.f32 %v545, %v641
  %v643 = vpop.f32.mrb[0].mxu0
  %644 = vmatprep.mubr.bf16.mxu0 %v254
  %645 = vmatmul.mubr.bf16.gmra.mrb[0].mxu0 %v253
  %v646 = vpop.f32.mrb[0].mxu0
  %v647 = vadd.f32 %v550, %v646
  %v648 = vpop.f32.mrb[0].mxu0
  %v649 = vpop.f32.mrb[0].mxu0
  %v650 = vadd.f32 %v553, %v649
  %v651 = vpop.f32.mrb[0].mxu0
  %652 = vmatprep.mubr.bf16.mxu0 %v258
  %653 = vmatmul.mubr.bf16.gmra.mrb[0].mxu0 %v257
  %v654 = vpop.f32.mrb[0].mxu0
  %v655 = vadd.f32 %v558, %v654
  %v656 = vpop.f32.mrb[0].mxu0
  %v657 = vpop.f32.mrb[0].mxu0
  %v658 = vadd.f32 %v561, %v657
  %v659 = vpop.f32.mrb[0].mxu0
  %660 = vmatprep.mubr.bf16.mxu0 %v262
  %661 = vmatmul.mubr.bf16.gmra.mrb[0].mxu0 %v261
  %v662 = vpop.f32.mrb[0].mxu0
  %v663 = vadd.f32 %v566, %v662
  %v664 = vpop.f32.mrb[0].mxu0
  %v665 = vpop.f32.mrb[0].mxu0
  %v666 = vadd.f32 %v569, %v665
  %v667 = vpop.f32.mrb[0].mxu0
  %668 = vmatprep.mubr.bf16.mxu0 %v266
  %669 = vmatmul.mubr.bf16.gmra.mrb[0].mxu0 %v265
  %v670 = vpop.f32.mrb[0].mxu0
  %v671 = vadd.f32 %v574, %v670
  %v672 = vpop.f32.mrb[0].mxu0
  %v673 = vpop.f32.mrb[0].mxu0
  %v674 = vadd.f32 %v577, %v673
  %v675 = vpop.f32.mrb[0].mxu0
  %676 = vmatprep.mubr.bf16.mxu0 %v270
  %677 = vmatmul.mubr.bf16.gmra.mrb[0].mxu0 %v269
  %v678 = vpop.f32.mrb[0].mxu0
  %v679 = vadd.f32 %v582, %v678
  %v680 = vpop.f32.mrb[0].mxu0
  %v681 = vpop.f32.mrb[0].mxu0
  %v682 = vadd.f32 %v585, %v681
  %v683 = vpop.f32.mrb[0].mxu0
  %684 = vmatprep.mubr.bf16.mxu0 %v274
  %685 = vmatmul.mubr.bf16.gmra.mrb[0].mxu0 %v273
  %v686 = vpop.f32.mrb[0].mxu0
  %v687 = vadd.f32 %v590, %v686
  %v688 = vpop.f32.mrb[0].mxu0
  %v689 = vpop.f32.mrb[0].mxu0
  %v690 = vadd.f32 %v593, %v689
  %v691 = vpop.f32.mrb[0].mxu0
  %692 = vdwg.mxu0
  %v693 = vadd.f32 %v35, %v631
  %v694 = vadd.f32 %v36, %v634
  %v695 = vadd.f32 %v37, %v639
  %v696 = vadd.f32 %v38, %v642
  %v697 = vadd.f32 %v39, %v647
  %v698 = vadd.f32 %v40, %v650
  %v699 = vadd.f32 %v41, %v655
  %v700 = vadd.f32 %v42, %v658
  %v701 = vadd.f32 %v43, %v663
  %v702 = vadd.f32 %v44, %v666
  %v703 = vadd.f32 %v45, %v671
  %v704 = vadd.f32 %v46, %v674
  %v705 = vadd.f32 %v47, %v679
  %v706 = vadd.f32 %v48, %v682
  %v707 = vadd.f32 %v49, %v687
  %v708 = vadd.f32 %v50, %v690
  %709 = vst [vmem:[#allocation2] sm:$0xff] %v693
  %710 = vst [vmem:[#allocation2 + $0x8] sm:$0xff] %v694
  %711 = vst [vmem:[#allocation2 + $0x10] sm:$0xff] %v695
  %712 = vst [vmem:[#allocation2 + $0x18] sm:$0xff] %v696
  %713 = vst [vmem:[#allocation2 + $0x20] sm:$0xff] %v697
  %714 = vst [vmem:[#allocation2 + $0x28] sm:$0xff] %v698
  %715 = vst [vmem:[#allocation2 + $0x30] sm:$0xff] %v699
  %716 = vst [vmem:[#allocation2 + $0x38] sm:$0xff] %v700
  %717 = vst [vmem:[#allocation2 + $0x40] sm:$0xff] %v701
  %718 = vst [vmem:[#allocation2 + $0x48] sm:$0xff] %v702
  %719 = vst [vmem:[#allocation2 + $0x50] sm:$0xff] %v703
  %720 = vst [vmem:[#allocation2 + $0x58] sm:$0xff] %v704
  %721 = vst [vmem:[#allocation2 + $0x60] sm:$0xff] %v705
  %722 = vst [vmem:[#allocation2 + $0x68] sm:$0xff] %v706
  %723 = vst [vmem:[#allocation2 + $0x70] sm:$0xff] %v707
  %724 = vst [vmem:[#allocation2 + $0x78] sm:$0xff] %v708
  // Predicated region
  $region18: #{malexnet_forward.6} parent=0 // pred_check
    %p725 = pneg %p15
  $region19: #{malexnet_forward.6} parent=0 // pred_check_branch
    %727 = sbr.rel (%p725) target = $region21
  $region20: #{malexnet_forward.6} parent=0 // pred_region
    %v728 = vld [vmem:[#allocation2] sm:$0xff]
    %v729 = vld [vmem:[#allocation2 + $0x8] sm:$0xff]
    %v730 = vld [vmem:[#allocation2 + $0x10] sm:$0xff]
    %v731 = vld [vmem:[#allocation2 + $0x18] sm:$0xff]
    %v732 = vld [vmem:[#allocation2 + $0x20] sm:$0xff]
    %v733 = vld [vmem:[#allocation2 + $0x28] sm:$0xff]
    %v734 = vld [vmem:[#allocation2 + $0x30] sm:$0xff]
    %v735 = vld [vmem:[#allocation2 + $0x38] sm:$0xff]
    %v736 = vld [vmem:[#allocation2 + $0x40] sm:$0xff]
    %v737 = vld [vmem:[#allocation2 + $0x48] sm:$0xff]
    %v738 = vld [vmem:[#allocation2 + $0x50] sm:$0xff]
    %v739 = vld [vmem:[#allocation2 + $0x58] sm:$0xff]
    %v740 = vld [vmem:[#allocation2 + $0x60] sm:$0xff]
    %v741 = vld [vmem:[#allocation2 + $0x68] sm:$0xff]
    %v742 = vld [vmem:[#allocation2 + $0x70] sm:$0xff]
    %v743 = vld [vmem:[#allocation2 + $0x78] sm:$0xff]
    %v744 = vld [vmem:[%s2] sm:$0x1]
    %v746 = vlaneseq
    %v747 = vshrl.u32 %v746, 7
    %v748 = vsub.s32 0, %v747
    %v749 = vrot.slane %v744, %v748
    %v751 = vadd.f32 %v728, %v749
    %v752 = vadd.f32 %v729, %v749
    %v753 = vadd.f32 %v730, %v749
    %v754 = vadd.f32 %v731, %v749
    %v755 = vadd.f32 %v732, %v749
    %v756 = vadd.f32 %v733, %v749
    %v757 = vadd.f32 %v734, %v749
    %v758 = vadd.f32 %v735, %v749
    %v759 = vadd.f32 %v736, %v749
    %v760 = vadd.f32 %v737, %v749
    %v761 = vadd.f32 %v738, %v749
    %v762 = vadd.f32 %v739, %v749
    %v763 = vadd.f32 %v740, %v749
    %v764 = vadd.f32 %v741, %v749
    %v765 = vadd.f32 %v742, %v749
    %v766 = vadd.f32 %v743, %v749
    %v767 = vmax.f32 %v751, 0.0
    %v768 = vmax.f32 %v752, 0.0
    %v769 = vmax.f32 %v753, 0.0
    %v770 = vmax.f32 %v754, 0.0
    %v771 = vmax.f32 %v755, 0.0
    %v772 = vmax.f32 %v756, 0.0
    %v773 = vmax.f32 %v757, 0.0
    %v774 = vmax.f32 %v758, 0.0
    %v775 = vmax.f32 %v759, 0.0
    %v776 = vmax.f32 %v760, 0.0
    %v777 = vmax.f32 %v761, 0.0
    %v778 = vmax.f32 %v762, 0.0
    %v779 = vmax.f32 %v763, 0.0
    %v780 = vmax.f32 %v764, 0.0
    %v781 = vmax.f32 %v765, 0.0
    %v782 = vmax.f32 %v766, 0.0
    %v783 = vpack.c.bf16 %v768, %v767
    %v784 = vpack.c.bf16 %v770, %v769
    %v785 = vpack.c.bf16 %v772, %v771
    %v786 = vpack.c.bf16 %v774, %v773
    %v787 = vpack.c.bf16 %v776, %v775
    %v788 = vpack.c.bf16 %v778, %v777
    %v789 = vpack.c.bf16 %v780, %v779
    %v790 = vpack.c.bf16 %v782, %v781
    %v799 = vunpack.c.l.b16 %v783
    %v800 = vunpack.c.h.b16 %v783
    %v801 = vunpack.c.l.b16 %v784
    %v802 = vunpack.c.h.b16 %v784
    %v803 = vunpack.c.l.b16 %v785
    %v804 = vunpack.c.h.b16 %v785
    %v805 = vunpack.c.l.b16 %v786
    %v806 = vunpack.c.h.b16 %v786
    %v807 = vunpack.c.l.b16 %v787
    %v808 = vunpack.c.h.b16 %v787
    %v809 = vunpack.c.l.b16 %v788
    %v810 = vunpack.c.h.b16 %v788
    %v811 = vunpack.c.l.b16 %v789
    %v812 = vunpack.c.h.b16 %v789
    %v813 = vunpack.c.l.b16 %v790
    %v814 = vunpack.c.h.b16 %v790
    %v815 = vpack.c.b16 %v799, %v799
    %v816 = vpack.c.b16 %v800, %v800
    %v817 = vpack.c.b16 %v801, %v801
    %v818 = vpack.c.b16 %v802, %v802
    %v819 = vpack.c.b16 %v803, %v803
    %v820 = vpack.c.b16 %v804, %v804
    %v821 = vpack.c.b16 %v805, %v805
    %v822 = vpack.c.b16 %v806, %v806
    %v823 = vpack.c.b16 %v807, %v807
    %v824 = vpack.c.b16 %v808, %v808
    %v825 = vpack.c.b16 %v809, %v809
    %v826 = vpack.c.b16 %v810, %v810
    %v827 = vpack.c.b16 %v811, %v811
    %v828 = vpack.c.b16 %v812, %v812
    %v829 = vpack.c.b16 %v813, %v813
    %v830 = vpack.c.b16 %v814, %v814
    %847 = vst [vmem:[%s3] sm:$0xf] %v815
    %848 = vst [vmem:[%s3 + $0x4] sm:$0xf] %v816
    %849 = vst [vmem:[%s3 + $0x8] sm:$0xf] %v817
    %850 = vst [vmem:[%s3 + $0xc] sm:$0xf] %v818
    %851 = vst [vmem:[%s3 + $0x10] sm:$0xf] %v819
    %852 = vst [vmem:[%s3 + $0x14] sm:$0xf] %v820
    %853 = vst [vmem:[%s3 + $0x18] sm:$0xf] %v821
    %854 = vst [vmem:[%s3 + $0x1c] sm:$0xf] %v822
    %855 = vst [vmem:[%s3 + $0x20] sm:$0xf] %v823
    %856 = vst [vmem:[%s3 + $0x24] sm:$0xf] %v824
    %857 = vst [vmem:[%s3 + $0x28] sm:$0xf] %v825
    %858 = vst [vmem:[%s3 + $0x2c] sm:$0xf] %v826
    %859 = vst [vmem:[%s3 + $0x30] sm:$0xf] %v827
    %860 = vst [vmem:[%s3 + $0x34] sm:$0xf] %v828
    %861 = vst [vmem:[%s3 + $0x38] sm:$0xf] %v829
    %862 = vst [vmem:[%s3 + $0x3c] sm:$0xf] %v830
  $region21: #{malexnet_forward.6} parent=0 // pred_fallthru
    _
  // Predicated region
  $region22: #{malexnet_forward.6} parent=0 // pred_check
    _
  $region23: #{malexnet_forward.6} parent=0 // pred_check_branch
    %864 = sbr.rel (0) target = $region25
  $region24: #{malexnet_forward.6} parent=0 // pred_region
    _
  $region25: #{malexnet_forward.6} parent=0 // pred_fallthru
    _
  // Predicated region
  $region26: #{malexnet_forward.6} parent=0 // pred_check
    _
  $region27: #{malexnet_forward.6} parent=0 // pred_check_branch
    %866 = sbr.rel (0) target = $region29
  $region28: #{malexnet_forward.6} parent=0 // pred_region
    _
  $region29: #{malexnet_forward.6} parent=0 // pred_fallthru
    _

// kernel: malexnet_forward.7
$region0: #{malexnet_forward.7}
  #allocation0 [shape = 'u32[]', space=smem, size = 0x4, offset = 0x4, fixed_abs, tag = 'smem constant byte address 0x4 - core index']
  #allocation1 [shape = 'u32[144,128]{1,0:T(1,128)}', space=vmem, size = 0x12000, scoped, tag = 'internal scratch']
  #allocation2 [shape = 'f32[32,256]{1,0:T(8,128)}', space=vmem, size = 0x8000, scoped, tag = 'scratch operand']
  %s0 = inlined_call_operand.vmem [shape: bf16[32,1792], index: 0, kind: input, shape index: {}]
  %s1 = inlined_call_operand.vmem [shape: bf16[1792,256], index: 1, kind: input, shape index: {}]
  %s2 = inlined_call_operand.vmem [shape: f32[1,256], index: 2, kind: input, shape index: {}]
  %s3 = inlined_call_operand.vmem [shape: bf16[32,256], index: 3, kind: output, shape index: {}]
  %s4 = sld [smem:[#allocation0]]
  $region91: #{malexnet_forward.7} parent=0
    _
  %s6 = ssub.s32 1, %s4
  %s7 = scalar_select 0, %s6, %s4
  $region1: #{malexnet_forward.7} parent=0
    #allocation3 [shape = 'u8[32768]{0}', space=vmem, size = 0x8000, scoped, tag = 'input window, operand 0']
    loop: start=0, step=1, limit=9
    $region2: #{malexnet_forward.7} parent=1 // loop_pre_header
      _
    $region3: #{malexnet_forward.7} parent=1 // loop_header
      %s9 = sphi 0, %s13
      %p10 = scmp.ge.s32.totalorder %s9, 9
      %s16 = sphi 0, %s35
      %s17 = sphi 0, %s31
      %s18 = sphi 0, %s27
      %s19 = sphi 0, %s16
      %s20 = sphi 0, %s17
      %s21 = sphi 0, %s18
      %s22 = sphi 0, %s19
      %s23 = sphi 0, %s20
      %s24 = sphi 0, %s21
      %s40 = sphi 0, %s42
      %s43 = sphi 0, %s40
      %s44 = sphi 0, %s43
      %s60 = sphi 0, %s44
      %s68 = sphi 0, %s70
      %s71 = sphi 0, %s68
      %s72 = sphi 0, %s71
      %s88 = sphi 0, %s72
      %s94 = sphi 0, %s96
      %s97 = sphi 0, %s94
      %s98 = sphi 0, %s97
      %s114 = sphi 0, %s98
      %s122 = sphi 0, %s124
      %s125 = sphi 0, %s122
      %s126 = sphi 0, %s125
      %s142 = sphi 0, %s126
    $region4: #{malexnet_forward.7} parent=1 // loop_header_branch
      %12 = sbr.rel (%p10) target = $region8
    $region5: #{malexnet_forward.7} parent=1 // loop_body
      %s14 = ssub.s32 %s9, 1
      %s15 = ssub.s32 %s9, 2
      %s25 = sadd.s32 1, %s18
      %p26 = scmp.ge.s32.totalorder %s25, 7
      %s27 = scalar_select %p26, 0, %s25
      %s28 = sadd.s32 1, %s17
      %s29 = scalar_select %p26, %s28, %s17
      %p30 = scmp.ge.s32.totalorder %s29, 1
      %s31 = scalar_select %p30, 0, %s29
      %s32 = sadd.s32 1, %s16
      %s33 = scalar_select %p30, %s32, %s16
      %p34 = scmp.ge.s32.totalorder %s33, 1
      %s35 = scalar_select %p34, 0, %s33
      %s36 = ssub.s32 %s16, %s35
      %s37 = ssub.s32 %s18, %s27
      %s38 = sor.u32 %s36, %s37
      %p39 = scmp.eq.s32.totalorder %s38, 0
      %s41 = sadd.s32 %s40, 1
      %s42 = scalar_select %p39, %s40, %s41
      %p45 = pneg %p39
      %p46 = scmp.eq.s32.totalorder %s9, 6
      %p47 = por %p45, %p46
      %p48 = scmp.ne.s32.totalorder %s40, %s43
      %p49 = scmp.eq.s32.totalorder %s9, 0
      %p50 = por %p48, %p49
      %p51 = scmp.ne.s32.totalorder %s40, %s43
      %p52 = scmp.eq.s32.totalorder %s14, 6
      %p53 = por %p51, %p52
      %p54 = scmp.ne.s32.totalorder %s43, %s44
      %p55 = scmp.eq.s32.totalorder %s14, 0
      %p56 = por %p54, %p55
      %p57 = scmp.ne.s32.totalorder %s43, %s44
      %p58 = scmp.eq.s32.totalorder %s15, 6
      %p59 = por %p57, %p58
      %p61 = scmp.ne.s32.totalorder %s44, %s60
      %p62 = scmp.eq.s32.totalorder %s15, 0
      %p63 = por %p61, %p62
      %s64 = ssub.s32 %s18, %s27
      %s65 = ssub.s32 %s17, %s31
      %s66 = sor.u32 %s64, %s65
      %p67 = scmp.eq.s32.totalorder %s66, 0
      %s69 = sadd.s32 %s68, 1
      %s70 = scalar_select %p67, %s68, %s69
      %p73 = pneg %p67
      %p74 = scmp.eq.s32.totalorder %s9, 6
      %p75 = por %p73, %p74
      %p76 = scmp.ne.s32.totalorder %s68, %s71
      %p77 = scmp.eq.s32.totalorder %s9, 0
      %p78 = por %p76, %p77
      %p79 = scmp.ne.s32.totalorder %s68, %s71
      %p80 = scmp.eq.s32.totalorder %s14, 6
      %p81 = por %p79, %p80
      %p82 = scmp.ne.s32.totalorder %s71, %s72
      %p83 = scmp.eq.s32.totalorder %s14, 0
      %p84 = por %p82, %p83
      %p85 = scmp.ne.s32.totalorder %s71, %s72
      %p86 = scmp.eq.s32.totalorder %s15, 6
      %p87 = por %p85, %p86
      %p89 = scmp.ne.s32.totalorder %s72, %s88
      %p90 = scmp.eq.s32.totalorder %s15, 0
      %p91 = por %p89, %p90
      %s92 = ssub.s32 %s17, %s31
      %p93 = scmp.eq.s32.totalorder %s92, 0
      %s95 = sadd.s32 %s94, 1
      %s96 = scalar_select %p93, %s94, %s95
      %p99 = pneg %p93
      %p100 = scmp.eq.s32.totalorder %s9, 6
      %p101 = por %p99, %p100
      %p102 = scmp.ne.s32.totalorder %s94, %s97
      %p103 = scmp.eq.s32.totalorder %s9, 0
      %p104 = por %p102, %p103
      %p105 = scmp.ne.s32.totalorder %s94, %s97
      %p106 = scmp.eq.s32.totalorder %s14, 6
      %p107 = por %p105, %p106
      %p108 = scmp.ne.s32.totalorder %s97, %s98
      %p109 = scmp.eq.s32.totalorder %s14, 0
      %p110 = por %p108, %p109
      %p111 = scmp.ne.s32.totalorder %s97, %s98
      %p112 = scmp.eq.s32.totalorder %s15, 6
      %p113 = por %p111, %p112
      %p115 = scmp.ne.s32.totalorder %s98, %s114
      %p116 = scmp.eq.s32.totalorder %s15, 0
      %p117 = por %p115, %p116
      %s118 = ssub.s32 %s16, %s35
      %s119 = ssub.s32 %s17, %s31
      %s120 = sor.u32 %s118, %s119
      %p121 = scmp.eq.s32.totalorder %s120, 0
      %s123 = sadd.s32 %s122, 1
      %s124 = scalar_select %p121, %s122, %s123
      %p127 = pneg %p121
      %p128 = scmp.eq.s32.totalorder %s9, 6
      %p129 = por %p127, %p128
      %p130 = scmp.ne.s32.totalorder %s122, %s125
      %p131 = scmp.eq.s32.totalorder %s9, 0
      %p132 = por %p130, %p131
      %p133 = scmp.ne.s32.totalorder %s122, %s125
      %p134 = scmp.eq.s32.totalorder %s14, 6
      %p135 = por %p133, %p134
      %p136 = scmp.ne.s32.totalorder %s125, %s126
      %p137 = scmp.eq.s32.totalorder %s14, 0
      %p138 = por %p136, %p137
      %p139 = scmp.ne.s32.totalorder %s125, %s126
      %p140 = scmp.eq.s32.totalorder %s15, 6
      %p141 = por %p139, %p140
      %p143 = scmp.ne.s32.totalorder %s126, %s142
      %p144 = scmp.eq.s32.totalorder %s15, 0
      %p145 = por %p143, %p144
      %p146 = scmp.le.s32.totalorder 1, %s9
      %p147 = scmp.lt.s32.totalorder %s9, 8
      %p148 = pnand %p146, %p147
      %p149 = pneg %p148
      // Predicated region
      $region9: #{malexnet_forward.7} parent=5 // pred_check
        _
      $region10: #{malexnet_forward.7} parent=5 // pred_check_branch
        %151 = sbr.rel (%p148) target = $region12
      $region11: #{malexnet_forward.7} parent=5 // pred_region
        %s152 = ssub.s32 %s9, 1
        // Predicated region
        $region13: #{malexnet_forward.7} parent=11 // pred_check
          %p153 = pneg %p110
        $region14: #{malexnet_forward.7} parent=11 // pred_check_branch
          %155 = sbr.rel (%p153) target = $region16
        $region15: #{malexnet_forward.7} parent=11 // pred_region
          %s156 = smul.u32 2, %s20
          %p157 = scmp.lt.s32.totalorder %s156, 1
          %s158 = scalar_select %p157, %s156, 1
          %s159 = scalar_lea.vmem %s2, %s158
          %s160 = smul.u32 2, %s20
        $region16: #{malexnet_forward.7} parent=11 // pred_fallthru
          _
      $region12: #{malexnet_forward.7} parent=5 // pred_fallthru
        _
      %p161 = scmp.lt.s32.totalorder %s9, 7
      // Predicated region
      $region17: #{malexnet_forward.7} parent=5 // pred_check
        %p162 = pneg %p161
      $region18: #{malexnet_forward.7} parent=5 // pred_check_branch
        %164 = sbr.rel (%p162) target = $region20
      $region19: #{malexnet_forward.7} parent=5 // pred_region
        // Predicated region
        $region21: #{malexnet_forward.7} parent=19 // pred_check
          %p165 = pneg %p50
        $region22: #{malexnet_forward.7} parent=19 // pred_check_branch
          %167 = sbr.rel (%p165) target = $region24
        $region23: #{malexnet_forward.7} parent=19 // pred_region
          %s168 = sand.u32 %s40, 1
          %s169 = sand.u32 %s40, 1
          %s170 = smul.addr %s169, 32
          %s171 = scalar_lea.vmem [#allocation3], %s170
          %s172 = smul.u32 4, %s16
          %s173 = smul.u32 2, %s18
          %s174 = smul.addr %s172, 14
          %s175 = sadd.s32 %s173, %s174
          %s176 = smul.addr %s175, 4
          %s177 = scalar_lea.vmem %s0, %s176
          // Predicated region
          $region25: #{malexnet_forward.7} parent=23 // pred_check
            _
          $region26: #{malexnet_forward.7} parent=23 // pred_check_branch
            %179 = sbr.rel (0) target = $region28
          $region27: #{malexnet_forward.7} parent=23 // pred_region
            // Predicated region
            $region29: #{malexnet_forward.7} parent=27 // pred_check
              _
            $region30: #{malexnet_forward.7} parent=27 // pred_check_branch
              %181 = sbr.rel (0) target = $region32
            $region31: #{malexnet_forward.7} parent=27 // pred_region
              // Predicated region
              $region44: #{malexnet_forward.7} parent=31 // pred_check
                _
              $region45: #{malexnet_forward.7} parent=31 // pred_check_branch
                %202 = sbr.rel (0) target = $region47
              $region46: #{malexnet_forward.7} parent=31 // pred_region
                loop: start=0, step=1, limit=1
                $region48: #{malexnet_forward.7} parent=46 // loop_pre_header
                  _
                $region49: #{malexnet_forward.7} parent=46 // loop_header
                  %s204 = sphi 0, %s208
                  %p205 = scmp.ge.s32.totalorder %s204, 1
                  %s209 = sphi %s177, %s177
                  %s210 = sphi %s171, %s171
                $region50: #{malexnet_forward.7} parent=46 // loop_header_branch
                  %207 = sbr.rel (%p205) target = $region54
                $region51: #{malexnet_forward.7} parent=46 // loop_body
                  %v211 = vld [vmem:[%s209] sm:$0xff]
                  %212 = vst [vmem:[%s210] sm:$0xff] %v211
                  %v213 = vld [vmem:[%s209 + $0x38] sm:$0xff]
                  %214 = vst [vmem:[%s210 + $0x8] sm:$0xff] %v213
                  %v215 = vld [vmem:[%s209 + $0x70] sm:$0xff]
                  %216 = vst [vmem:[%s210 + $0x10] sm:$0xff] %v215
                  %v217 = vld [vmem:[%s209 + $0xa8] sm:$0xff]
                  %218 = vst [vmem:[%s210 + $0x18] sm:$0xff] %v217
                $region52: #{malexnet_forward.7} parent=46 // loop_footer
                  %s208 = sadd.s32 1, %s204
                $region53: #{malexnet_forward.7} parent=46 // loop_footer_branch
                  %203 = sbr.rel target = $region49
                $region54: #{malexnet_forward.7} parent=46 // loop_exit
                  _
              $region47: #{malexnet_forward.7} parent=31 // pred_fallthru
                _
              // Predicated region
              $region55: #{malexnet_forward.7} parent=31 // pred_check
                _
              $region56: #{malexnet_forward.7} parent=31 // pred_check_branch
                %220 = sbr.rel target = $region58
              $region57: #{malexnet_forward.7} parent=31 // pred_region
                _
              $region58: #{malexnet_forward.7} parent=31 // pred_fallthru
                _
            $region32: #{malexnet_forward.7} parent=27 // pred_fallthru
              _
            // Predicated region
            $region33: #{malexnet_forward.7} parent=27 // pred_check
              _
            $region34: #{malexnet_forward.7} parent=27 // pred_check_branch
              %183 = sbr.rel target = $region36
            $region35: #{malexnet_forward.7} parent=27 // pred_region
              loop: start=0, step=1, limit=1
              $region37: #{malexnet_forward.7} parent=35 // loop_pre_header
                _
              $region38: #{malexnet_forward.7} parent=35 // loop_header
                %s186 = sphi 0, %s190
                %p187 = scmp.ge.s32.totalorder %s186, 1
                %s191 = sphi %s177, %s177
                %s192 = sphi %s171, %s171
              $region39: #{malexnet_forward.7} parent=35 // loop_header_branch
                %189 = sbr.rel (%p187) target = $region43
              $region40: #{malexnet_forward.7} parent=35 // loop_body
                %v193 = vld [vmem:[%s191] sm:$0xff]
                %194 = vst [vmem:[%s192] sm:$0xff] %v193
                %v195 = vld [vmem:[%s191 + $0x38] sm:$0xff]
                %196 = vst [vmem:[%s192 + $0x8] sm:$0xff] %v195
                %v197 = vld [vmem:[%s191 + $0x70] sm:$0xff]
                %198 = vst [vmem:[%s192 + $0x10] sm:$0xff] %v197
                %v199 = vld [vmem:[%s191 + $0xa8] sm:$0xff]
                %200 = vst [vmem:[%s192 + $0x18] sm:$0xff] %v199
              $region41: #{malexnet_forward.7} parent=35 // loop_footer
                %s190 = sadd.s32 1, %s186
              $region42: #{malexnet_forward.7} parent=35 // loop_footer_branch
                %185 = sbr.rel target = $region38
              $region43: #{malexnet_forward.7} parent=35 // loop_exit
                _
            $region36: #{malexnet_forward.7} parent=27 // pred_fallthru
              _
          $region28: #{malexnet_forward.7} parent=23 // pred_fallthru
            _
          %221 = vnop
        $region24: #{malexnet_forward.7} parent=19 // pred_fallthru
          _
        // Predicated region
        $region59: #{malexnet_forward.7} parent=19 // pred_check
          %p222 = pneg %p78
        $region60: #{malexnet_forward.7} parent=19 // pred_check_branch
          %224 = sbr.rel (%p222) target = $region62
        $region61: #{malexnet_forward.7} parent=19 // pred_region
          %s225 = smul.u32 32, %s18
          %s226 = smul.u32 2, %s17
          %p227 = scmp.lt.s32.totalorder %s225, 223
          %s228 = scalar_select %p227, %s225, 223
          %p229 = scmp.lt.s32.totalorder %s226, 1
          %s230 = scalar_select %p229, %s226, 1
          %s231 = smul.addr %s228, 2
          %s232 = sadd.s32 %s230, %s231
          %s233 = smul.addr %s232, 4
          %s234 = scalar_lea.vmem %s1, %s233
          %s235 = smul.u32 32, %s18
          %s236 = smul.u32 2, %s17
        $region62: #{malexnet_forward.7} parent=19 // pred_fallthru
          _
      $region20: #{malexnet_forward.7} parent=5 // pred_fallthru
        _
      %p237 = scmp.le.s32.totalorder 1, %s9
      %p238 = scmp.lt.s32.totalorder %s9, 8
      %p239 = pnand %p237, %p238
      %p240 = pneg %p239
      // Predicated region
      $region63: #{malexnet_forward.7} parent=5 // pred_check
        _
      $region64: #{malexnet_forward.7} parent=5 // pred_check_branch
        %242 = sbr.rel (%p239) target = $region66
      $region65: #{malexnet_forward.7} parent=5 // pred_region
        %s243 = ssub.s32 %s9, 1
        %s244 = sand.u32 %s43, 1
        %s245 = sand.u32 %s43, 1
        %s246 = smul.addr %s245, 32
        %s247 = scalar_lea.vmem [#allocation3], %s246
        // Predicated region
        $region67: #{malexnet_forward.7} parent=65 // pred_check
          %p248 = pneg %p56
        $region68: #{malexnet_forward.7} parent=65 // pred_check_branch
          %250 = sbr.rel (%p248) target = $region70
        $region69: #{malexnet_forward.7} parent=65 // pred_region
          _
        $region70: #{malexnet_forward.7} parent=65 // pred_fallthru
          _
        %s251 = sand.u32 %s43, 1
        %s252 = sand.u32 %s43, 1
        %s253 = smul.addr %s252, 32
        %s254 = scalar_lea.vmem [#allocation3], %s253
        %p255 = pneg %p56
        %p256 = pneg %p53
        %s257 = smul.u32 32, %s21
        %s258 = smul.u32 2, %s20
        %p259 = scmp.lt.s32.totalorder %s257, 223
        %s260 = scalar_select %p259, %s257, 223
        %p261 = scmp.lt.s32.totalorder %s258, 1
        %s262 = scalar_select %p261, %s258, 1
        %s263 = smul.addr %s260, 2
        %s264 = sadd.s32 %s262, %s263
        %s265 = smul.addr %s264, 4
        %s266 = scalar_lea.vmem %s1, %s265
        %p267 = pneg %p84
        %p268 = pneg %p81
        %s269 = smul.u32 2, %s20
        %p270 = scmp.lt.s32.totalorder %s269, 1
        %s271 = scalar_select %p270, %s269, 1
        %s272 = scalar_lea.vmem %s2, %s271
        %p273 = pneg %p110
        %p274 = pneg %p107
        %p275 = pneg %p138
        %p276 = pneg %p135
        %s277 = smul.u32 4, %s19
        %s278 = smul.u32 2, %s20
        %p279 = scmp.lt.s32.totalorder %s277, 3
        %s280 = scalar_select %p279, %s277, 3
        %p281 = scmp.lt.s32.totalorder %s278, 1
        %s282 = scalar_select %p281, %s278, 1
        %s283 = smul.addr %s280, 2
        %s284 = sadd.s32 %s282, %s283
        %s285 = smul.addr %s284, 4
        %s286 = scalar_lea.vmem %s3, %s285
        %s287 = smul.u32 4, %s19
        %s288 = smul.u32 2, %s21
        %s289 = smul.u32 32, %s21
        %s290 = smul.u32 2, %s20
        %p291 = scmp.lt.s32.totalorder %s289, 223
        %s292 = scalar_select %p291, %s289, 223
        %p293 = scmp.lt.s32.totalorder %s290, 1
        %s294 = scalar_select %p293, %s290, 1
        %s295 = smul.addr %s292, 2
        %s296 = sadd.s32 %s294, %s295
        %s297 = smul.addr %s296, 4
        %s298 = scalar_lea.vmem %s1, %s297
        %s299 = smul.u32 32, %s21
        %s300 = smul.u32 2, %s20
        %s301 = smul.u32 2, %s20
        %p302 = scmp.lt.s32.totalorder %s301, 1
        %s303 = scalar_select %p302, %s301, 1
        %s304 = scalar_lea.vmem %s2, %s303
        %s305 = smul.u32 2, %s20
        %s306 = smul.u32 4, %s19
        %s307 = smul.u32 2, %s20
        %p308 = scmp.lt.s32.totalorder %s306, 3
        %s309 = scalar_select %p308, %s306, 3
        %p310 = scmp.lt.s32.totalorder %s307, 1
        %s311 = scalar_select %p310, %s307, 1
        %s312 = smul.addr %s309, 2
        %s313 = sadd.s32 %s311, %s312
        %s314 = smul.addr %s313, 4
        %s315 = scalar_lea.vmem %s3, %s314
        %s316 = smul.u32 4, %s19
        %s317 = smul.u32 2, %s20
        %p318 = scmp.eq.s32.totalorder %s21, 0
        // Predicated region
        $region71: #{malexnet_forward.7} parent=65 // pred_check
          %p319 = pneg %p318
        $region72: #{malexnet_forward.7} parent=65 // pred_check_branch
          %321 = sbr.rel (%p319) target = $region74
        $region73: #{malexnet_forward.7} parent=65 // pred_region
          %322 = vst [vmem:[#allocation2] sm:$0xff] 0.0
          %323 = vst [vmem:[#allocation2 + $0x8] sm:$0xff] 0.0
          %324 = vst [vmem:[#allocation2 + $0x10] sm:$0xff] 0.0
          %325 = vst [vmem:[#allocation2 + $0x18] sm:$0xff] 0.0
          %326 = vst [vmem:[#allocation2 + $0x20] sm:$0xff] 0.0
          %327 = vst [vmem:[#allocation2 + $0x28] sm:$0xff] 0.0
          %328 = vst [vmem:[#allocation2 + $0x30] sm:$0xff] 0.0
          %329 = vst [vmem:[#allocation2 + $0x38] sm:$0xff] 0.0
        $region74: #{malexnet_forward.7} parent=65 // pred_fallthru
          _
        %v330 = vld [vmem:[#allocation2] sm:$0xff]
        %v331 = vld [vmem:[#allocation2 + $0x8] sm:$0xff]
        %v332 = vld [vmem:[#allocation2 + $0x10] sm:$0xff]
        %v333 = vld [vmem:[#allocation2 + $0x18] sm:$0xff]
        %v334 = vld [vmem:[#allocation2 + $0x20] sm:$0xff]
        %v335 = vld [vmem:[#allocation2 + $0x28] sm:$0xff]
        %v336 = vld [vmem:[#allocation2 + $0x30] sm:$0xff]
        %v337 = vld [vmem:[#allocation2 + $0x38] sm:$0xff]
        %v338 = vld [vmem:[%s247] sm:$0xff]
        %v339 = vld [vmem:[%s247 + $0x8] sm:$0xff]
        %v340 = vld [vmem:[%s247 + $0x10] sm:$0xff]
        %v341 = vld [vmem:[%s247 + $0x18] sm:$0xff]
        %v342 = vld [vmem:[%s298] sm:$0xff]
        %v343 = vld [vmem:[%s298 + $0x8] sm:$0xff]
        %v344 = vld [vmem:[%s298 + $0x10] sm:$0xff]
        %v345 = vld [vmem:[%s298 + $0x18] sm:$0xff]
        %v346 = vld [vmem:[%s298 + $0x20] sm:$0xff]
        %v347 = vld [vmem:[%s298 + $0x28] sm:$0xff]
        %v348 = vld [vmem:[%s298 + $0x30] sm:$0xff]
        %v349 = vld [vmem:[%s298 + $0x38] sm:$0xff]
        %v350 = vld [vmem:[%s298 + $0x40] sm:$0xff]
        %v351 = vld [vmem:[%s298 + $0x48] sm:$0xff]
        %v352 = vld [vmem:[%s298 + $0x50] sm:$0xff]
        %v353 = vld [vmem:[%s298 + $0x58] sm:$0xff]
        %v354 = vld [vmem:[%s298 + $0x60] sm:$0xff]
        %v355 = vld [vmem:[%s298 + $0x68] sm:$0xff]
        %v356 = vld [vmem:[%s298 + $0x70] sm:$0xff]
        %v357 = vld [vmem:[%s298 + $0x78] sm:$0xff]
        %v358 = vld [vmem:[%s298 + $0x80] sm:$0xff]
        %v359 = vld [vmem:[%s298 + $0x88] sm:$0xff]
        %v360 = vld [vmem:[%s298 + $0x90] sm:$0xff]
        %v361 = vld [vmem:[%s298 + $0x98] sm:$0xff]
        %v362 = vld [vmem:[%s298 + $0xa0] sm:$0xff]
        %v363 = vld [vmem:[%s298 + $0xa8] sm:$0xff]
        %v364 = vld [vmem:[%s298 + $0xb0] sm:$0xff]
        %v365 = vld [vmem:[%s298 + $0xb8] sm:$0xff]
        %v366 = vld [vmem:[%s298 + $0xc0] sm:$0xff]
        %v367 = vld [vmem:[%s298 + $0xc8] sm:$0xff]
        %v368 = vld [vmem:[%s298 + $0xd0] sm:$0xff]
        %v369 = vld [vmem:[%s298 + $0xd8] sm:$0xff]
        %v370 = vld [vmem:[%s298 + $0xe0] sm:$0xff]
        %v371 = vld [vmem:[%s298 + $0xe8] sm:$0xff]
        %v372 = vld [vmem:[%s298 + $0xf0] sm:$0xff]
        %v373 = vld [vmem:[%s298 + $0xf8] sm:$0xff]
        %v378 = vunpack.c.l.b16 %v338
        %v379 = vunpack.c.h.b16 %v338
        %v380 = vunpack.c.l.b16 %v339
        %v381 = vunpack.c.h.b16 %v339
        %v382 = vunpack.c.l.b16 %v340
        %v383 = vunpack.c.h.b16 %v340
        %v384 = vunpack.c.l.b16 %v341
        %v385 = vunpack.c.h.b16 %v341
        %v386 = vpack.c.b16 %v380, %v378
        %v387 = vpack.c.b16 %v381, %v379
        %v388 = vpack.c.b16 %v384, %v382
        %v389 = vpack.c.b16 %v385, %v383
        %v426 = vunpack.c.l.b16 %v342
        %v427 = vunpack.c.h.b16 %v342
        %v428 = vunpack.c.l.b16 %v343
        %v429 = vunpack.c.h.b16 %v343
        %v430 = vunpack.c.l.b16 %v344
        %v431 = vunpack.c.h.b16 %v344
        %v432 = vunpack.c.l.b16 %v345
        %v433 = vunpack.c.h.b16 %v345
        %v434 = vunpack.c.l.b16 %v346
        %v435 = vunpack.c.h.b16 %v346
        %v436 = vunpack.c.l.b16 %v347
        %v437 = vunpack.c.h.b16 %v347
        %v438 = vunpack.c.l.b16 %v348
        %v439 = vunpack.c.h.b16 %v348
        %v440 = vunpack.c.l.b16 %v349
        %v441 = vunpack.c.h.b16 %v349
        %v442 = vunpack.c.l.b16 %v350
        %v443 = vunpack.c.h.b16 %v350
        %v444 = vunpack.c.l.b16 %v351
        %v445 = vunpack.c.h.b16 %v351
        %v446 = vunpack.c.l.b16 %v352
        %v447 = vunpack.c.h.b16 %v352
        %v448 = vunpack.c.l.b16 %v353
        %v449 = vunpack.c.h.b16 %v353
        %v450 = vunpack.c.l.b16 %v354
        %v451 = vunpack.c.h.b16 %v354
        %v452 = vunpack.c.l.b16 %v355
        %v453 = vunpack.c.h.b16 %v355
        %v454 = vunpack.c.l.b16 %v356
        %v455 = vunpack.c.h.b16 %v356
        %v456 = vunpack.c.l.b16 %v357
        %v457 = vunpack.c.h.b16 %v357
        %v458 = vunpack.c.l.b16 %v358
        %v459 = vunpack.c.h.b16 %v358
        %v460 = vunpack.c.l.b16 %v359
        %v461 = vunpack.c.h.b16 %v359
        %v462 = vunpack.c.l.b16 %v360
        %v463 = vunpack.c.h.b16 %v360
        %v464 = vunpack.c.l.b16 %v361
        %v465 = vunpack.c.h.b16 %v361
        %v466 = vunpack.c.l.b16 %v362
        %v467 = vunpack.c.h.b16 %v362
        %v468 = vunpack.c.l.b16 %v363
        %v469 = vunpack.c.h.b16 %v363
        %v470 = vunpack.c.l.b16 %v364
        %v471 = vunpack.c.h.b16 %v364
        %v472 = vunpack.c.l.b16 %v365
        %v473 = vunpack.c.h.b16 %v365
        %v474 = vunpack.c.l.b16 %v366
        %v475 = vunpack.c.h.b16 %v366
        %v476 = vunpack.c.l.b16 %v367
        %v477 = vunpack.c.h.b16 %v367
        %v478 = vunpack.c.l.b16 %v368
        %v479 = vunpack.c.h.b16 %v368
        %v480 = vunpack.c.l.b16 %v369
        %v481 = vunpack.c.h.b16 %v369
        %v482 = vunpack.c.l.b16 %v370
        %v483 = vunpack.c.h.b16 %v370
        %v484 = vunpack.c.l.b16 %v371
        %v485 = vunpack.c.h.b16 %v371
        %v486 = vunpack.c.l.b16 %v372
        %v487 = vunpack.c.h.b16 %v372
        %v488 = vunpack.c.l.b16 %v373
        %v489 = vunpack.c.h.b16 %v373
        %v490 = vpack.c.b16 %v428, %v426
        %v491 = vpack.c.b16 %v429, %v427
        %v492 = vpack.c.b16 %v432, %v430
        %v493 = vpack.c.b16 %v433, %v431
        %v494 = vpack.c.b16 %v436, %v434
        %v495 = vpack.c.b16 %v437, %v435
        %v496 = vpack.c.b16 %v440, %v438
        %v497 = vpack.c.b16 %v441, %v439
        %v498 = vpack.c.b16 %v444, %v442
        %v499 = vpack.c.b16 %v445, %v443
        %v500 = vpack.c.b16 %v448, %v446
        %v501 = vpack.c.b16 %v449, %v447
        %v502 = vpack.c.b16 %v452, %v450
        %v503 = vpack.c.b16 %v453, %v451
        %v504 = vpack.c.b16 %v456, %v454
        %v505 = vpack.c.b16 %v457, %v455
        %v506 = vpack.c.b16 %v460, %v458
        %v507 = vpack.c.b16 %v461, %v459
        %v508 = vpack.c.b16 %v464, %v462
        %v509 = vpack.c.b16 %v465, %v463
        %v510 = vpack.c.b16 %v468, %v466
        %v511 = vpack.c.b16 %v469, %v467
        %v512 = vpack.c.b16 %v472, %v470
        %v513 = vpack.c.b16 %v473, %v471
        %v514 = vpack.c.b16 %v476, %v474
        %v515 = vpack.c.b16 %v477, %v475
        %v516 = vpack.c.b16 %v480, %v478
        %v517 = vpack.c.b16 %v481, %v479
        %v518 = vpack.c.b16 %v484, %v482
        %v519 = vpack.c.b16 %v485, %v483
        %v520 = vpack.c.b16 %v488, %v486
        %v521 = vpack.c.b16 %v489, %v487
        %554 = vmatprep.subr.bf16.mxu0 %v491
        %555 = vmatpush1.bf16.msra.mxu0 %v490
        %556 = vmatprep.subr.bf16.mxu0 %v493
        %557 = vmatpush1.bf16.msra.mxu0 %v492
        %558 = vmatprep.subr.bf16.mxu0 %v495
        %559 = vmatpush1.bf16.msra.mxu0 %v494
        %560 = vmatprep.subr.bf16.mxu0 %v497
        %561 = vmatpush1.bf16.msra.mxu0 %v496
        %562 = vmatprep.subr.bf16.mxu0 %v499
        %563 = vmatpush1.bf16.msra.mxu0 %v498
        %564 = vmatprep.subr.bf16.mxu0 %v501
        %565 = vmatpush1.bf16.msra.mxu0 %v500
        %566 = vmatprep.subr.bf16.mxu0 %v503
        %567 = vmatpush1.bf16.msra.mxu0 %v502
        %568 = vmatprep.subr.bf16.mxu0 %v505
        %569 = vmatpush1.bf16.msra.mxu0 %v504
        %570 = vmatprep.subr.bf16.mxu0 %v507
        %571 = vmatpush1.bf16.msra.mxu0 %v506
        %572 = vmatprep.subr.bf16.mxu0 %v509
        %573 = vmatpush1.bf16.msra.mxu0 %v508
        %574 = vmatprep.subr.bf16.mxu0 %v511
        %575 = vmatpush1.bf16.msra.mxu0 %v510
        %576 = vmatprep.subr.bf16.mxu0 %v513
        %577 = vmatpush1.bf16.msra.mxu0 %v512
        %578 = vmatprep.subr.bf16.mxu0 %v515
        %579 = vmatpush1.bf16.msra.mxu0 %v514
        %580 = vmatprep.subr.bf16.mxu0 %v517
        %581 = vmatpush1.bf16.msra.mxu0 %v516
        %582 = vmatprep.subr.bf16.mxu0 %v519
        %583 = vmatpush1.bf16.msra.mxu0 %v518
        %584 = vmatprep.subr.bf16.mxu0 %v521
        %585 = vmatpush1.bf16.msra.mxu0 %v520
        %586 = vmatprep.mubr.bf16.mxu0 %v387
        %587 = vmatmul.mubr.bf16.gmra.mrb[0].mxu0 %v386
        %v588 = vpop.f32.mrb[0].mxu0
        %v589 = vadd.f32 0.0, %v588
        %v590 = vpop.f32.mrb[0].mxu0
        %v591 = vadd.f32 0.0, %v590
        %v592 = vpop.f32.mrb[0].mxu0
        %v593 = vadd.f32 0.0, %v592
        %v594 = vpop.f32.mrb[0].mxu0
        %v595 = vadd.f32 0.0, %v594
        %596 = vmatprep.mubr.bf16.mxu0 %v389
        %597 = vmatmul.mubr.bf16.gmra.mrb[0].mxu0 %v388
        %v598 = vpop.f32.mrb[0].mxu0
        %v599 = vadd.f32 0.0, %v598
        %v600 = vpop.f32.mrb[0].mxu0
        %v601 = vadd.f32 0.0, %v600
        %v602 = vpop.f32.mrb[0].mxu0
        %v603 = vadd.f32 0.0, %v602
        %v604 = vpop.f32.mrb[0].mxu0
        %v605 = vadd.f32 0.0, %v604
        %606 = vdwg.mxu0
        %v607 = vadd.f32 %v330, %v589
        %v608 = vadd.f32 %v331, %v591
        %v609 = vadd.f32 %v332, %v593
        %v610 = vadd.f32 %v333, %v595
        %v611 = vadd.f32 %v334, %v599
        %v612 = vadd.f32 %v335, %v601
        %v613 = vadd.f32 %v336, %v603
        %v614 = vadd.f32 %v337, %v605
        %615 = vst [vmem:[#allocation2] sm:$0xff] %v607
        %616 = vst [vmem:[#allocation2 + $0x8] sm:$0xff] %v608
        %617 = vst [vmem:[#allocation2 + $0x10] sm:$0xff] %v609
        %618 = vst [vmem:[#allocation2 + $0x18] sm:$0xff] %v610
        %619 = vst [vmem:[#allocation2 + $0x20] sm:$0xff] %v611
        %620 = vst [vmem:[#allocation2 + $0x28] sm:$0xff] %v612
        %621 = vst [vmem:[#allocation2 + $0x30] sm:$0xff] %v613
        %622 = vst [vmem:[#allocation2 + $0x38] sm:$0xff] %v614
        %p623 = scmp.eq.s32.totalorder %s21, 6
        // Predicated region
        $region75: #{malexnet_forward.7} parent=65 // pred_check
          %p624 = pneg %p623
        $region76: #{malexnet_forward.7} parent=65 // pred_check_branch
          %626 = sbr.rel (%p624) target = $region78
        $region77: #{malexnet_forward.7} parent=65 // pred_region
          %v627 = vld [vmem:[#allocation2] sm:$0xff]
          %v628 = vld [vmem:[#allocation2 + $0x8] sm:$0xff]
          %v629 = vld [vmem:[#allocation2 + $0x10] sm:$0xff]
          %v630 = vld [vmem:[#allocation2 + $0x18] sm:$0xff]
          %v631 = vld [vmem:[#allocation2 + $0x20] sm:$0xff]
          %v632 = vld [vmem:[#allocation2 + $0x28] sm:$0xff]
          %v633 = vld [vmem:[#allocation2 + $0x30] sm:$0xff]
          %v634 = vld [vmem:[#allocation2 + $0x38] sm:$0xff]
          %v635 = vld [vmem:[%s304] sm:$0x3]
          %v637 = vlaneseq
          %v638 = vshrl.u32 %v637, 7
          %v639 = vsub.s32 0, %v638
          %v640 = vrot.slane %v635, %v639
          %v641 = vlaneseq
          %v642 = vshrl.u32 %v641, 7
          %v643 = vsub.s32 1, %v642
          %v644 = vrot.slane %v635, %v643
          %v647 = vadd.f32 %v627, %v640
          %v648 = vadd.f32 %v628, %v644
          %v649 = vadd.f32 %v629, %v640
          %v650 = vadd.f32 %v630, %v644
          %v651 = vadd.f32 %v631, %v640
          %v652 = vadd.f32 %v632, %v644
          %v653 = vadd.f32 %v633, %v640
          %v654 = vadd.f32 %v634, %v644
          %v655 = vmax.f32 %v647, 0.0
          %v656 = vmax.f32 %v648, 0.0
          %v657 = vmax.f32 %v649, 0.0
          %v658 = vmax.f32 %v650, 0.0
          %v659 = vmax.f32 %v651, 0.0
          %v660 = vmax.f32 %v652, 0.0
          %v661 = vmax.f32 %v653, 0.0
          %v662 = vmax.f32 %v654, 0.0
          %v663 = vpack.c.bf16 %v657, %v655
          %v664 = vpack.c.bf16 %v658, %v656
          %v665 = vpack.c.bf16 %v661, %v659
          %v666 = vpack.c.bf16 %v662, %v660
          %v671 = vunpack.c.l.b16 %v663
          %v672 = vunpack.c.l.b16 %v664
          %v673 = vunpack.c.h.b16 %v663
          %v674 = vunpack.c.h.b16 %v664
          %v675 = vunpack.c.l.b16 %v665
          %v676 = vunpack.c.l.b16 %v666
          %v677 = vunpack.c.h.b16 %v665
          %v678 = vunpack.c.h.b16 %v666
          %v679 = vpack.c.b16 %v672, %v671
          %v680 = vpack.c.b16 %v674, %v673
          %v681 = vpack.c.b16 %v676, %v675
          %v682 = vpack.c.b16 %v678, %v677
          %687 = vst [vmem:[%s315] sm:$0xff] %v679
          %688 = vst [vmem:[%s315 + $0x8] sm:$0xff] %v680
          %689 = vst [vmem:[%s315 + $0x10] sm:$0xff] %v681
          %690 = vst [vmem:[%s315 + $0x18] sm:$0xff] %v682
        $region78: #{malexnet_forward.7} parent=65 // pred_fallthru
          _
        %s691 = smul.u32 4, %s19
        %s692 = smul.u32 2, %s20
        %p693 = scmp.lt.s32.totalorder %s691, 3
        %s694 = scalar_select %p693, %s691, 3
        %p695 = scmp.lt.s32.totalorder %s692, 1
        %s696 = scalar_select %p695, %s692, 1
        %s697 = smul.addr %s694, 2
        %s698 = sadd.s32 %s696, %s697
        %s699 = smul.addr %s698, 4
        %s700 = scalar_lea.vmem %s3, %s699
        // Predicated region
        $region79: #{malexnet_forward.7} parent=65 // pred_check
          %p701 = pneg %p135
        $region80: #{malexnet_forward.7} parent=65 // pred_check_branch
          %703 = sbr.rel (%p701) target = $region82
        $region81: #{malexnet_forward.7} parent=65 // pred_region
          %s704 = smul.u32 4, %s19
          %s705 = smul.u32 2, %s20
        $region82: #{malexnet_forward.7} parent=65 // pred_fallthru
          _
        // Predicated region
        $region83: #{malexnet_forward.7} parent=65 // pred_check
          %p706 = pneg %p135
        $region84: #{malexnet_forward.7} parent=65 // pred_check_branch
          %708 = sbr.rel (%p706) target = $region86
        $region85: #{malexnet_forward.7} parent=65 // pred_region
          %s709 = smul.u32 4, %s19
          %s710 = smul.u32 2, %s20
          %p711 = scmp.lt.s32.totalorder %s709, 3
          %s712 = scalar_select %p711, %s709, 3
          %p713 = scmp.lt.s32.totalorder %s710, 1
          %s714 = scalar_select %p713, %s710, 1
          %s715 = smul.addr %s712, 2
          %s716 = sadd.s32 %s714, %s715
          %s717 = smul.addr %s716, 4
          %s718 = scalar_lea.vmem %s3, %s717
        $region86: #{malexnet_forward.7} parent=65 // pred_fallthru
          _
      $region66: #{malexnet_forward.7} parent=5 // pred_fallthru
        _
      %p719 = scmp.le.s32.totalorder 2, %s9
      // Predicated region
      $region87: #{malexnet_forward.7} parent=5 // pred_check
        %p720 = pneg %p719
      $region88: #{malexnet_forward.7} parent=5 // pred_check_branch
        %722 = sbr.rel (%p720) target = $region90
      $region89: #{malexnet_forward.7} parent=5 // pred_region
        %s723 = ssub.s32 %s9, 2
      $region90: #{malexnet_forward.7} parent=5 // pred_fallthru
        _
    $region6: #{malexnet_forward.7} parent=1 // loop_footer
      %s13 = sadd.s32 1, %s9
    $region7: #{malexnet_forward.7} parent=1 // loop_footer_branch
      %8 = sbr.rel target = $region3
    $region8: #{malexnet_forward.7} parent=1 // loop_exit
      _

// kernel: malexnet_forward.8
$region0: #{malexnet_forward.8}
  #allocation0 [shape = 'u32[]', space=smem, size = 0x4, offset = 0x4, fixed_abs, tag = 'smem constant byte address 0x4 - core index']
  #allocation1 [shape = 'u32[144,128]{1,0:T(1,128)}', space=vmem, size = 0x12000, scoped, tag = 'internal scratch']
  #allocation2 [shape = 'f32[8,128]{1,0:T(8,128)}', space=vmem, size = 0x1000, scoped, tag = 'scratch operand']
  %s0 = inlined_call_operand.vmem [shape: bf16[8,1792], index: 0, kind: input, shape index: {}]
  %s1 = inlined_call_operand.vmem [shape: bf16[1792,384], index: 1, kind: input, shape index: {}]
  %s2 = inlined_call_operand.vmem [shape: f32[1,384], index: 2, kind: input, shape index: {}]
  %s3 = inlined_call_operand.vmem [shape: bf16[8,384], index: 3, kind: output, shape index: {}]
  %s4 = sld [smem:[#allocation0]]
  $region94: #{malexnet_forward.8} parent=0
    _
  %s6 = ssub.s32 1, %s4
  %s7 = scalar_select 0, %s6, %s4
  $region1: #{malexnet_forward.8} parent=0
    #allocation3 [shape = 'u8[131072]{0}', space=vmem, size = 0x20000, scoped, tag = 'input window, operand 1']
    loop: start=0, step=1, limit=23
    $region2: #{malexnet_forward.8} parent=1 // loop_pre_header
      _
    $region3: #{malexnet_forward.8} parent=1 // loop_header
      %s9 = sphi 0, %s13
      %p10 = scmp.ge.s32.totalorder %s9, 23
      %s16 = sphi 0, %s35
      %s17 = sphi 0, %s31
      %s18 = sphi 0, %s27
      %s19 = sphi 0, %s16
      %s20 = sphi 0, %s17
      %s21 = sphi 0, %s18
      %s22 = sphi 0, %s19
      %s23 = sphi 0, %s20
      %s24 = sphi 0, %s21
      %s40 = sphi 0, %s42
      %s43 = sphi 0, %s40
      %s44 = sphi 0, %s43
      %s60 = sphi 0, %s44
      %s68 = sphi 0, %s70
      %s71 = sphi 0, %s68
      %s72 = sphi 0, %s71
      %s88 = sphi 0, %s72
      %s94 = sphi 0, %s96
      %s97 = sphi 0, %s94
      %s98 = sphi 0, %s97
      %s114 = sphi 0, %s98
      %s122 = sphi 0, %s124
      %s125 = sphi 0, %s122
      %s126 = sphi 0, %s125
      %s142 = sphi 0, %s126
    $region4: #{malexnet_forward.8} parent=1 // loop_header_branch
      %12 = sbr.rel (%p10) target = $region8
    $region5: #{malexnet_forward.8} parent=1 // loop_body
      %s14 = ssub.s32 %s9, 1
      %s15 = ssub.s32 %s9, 2
      %s25 = sadd.s32 1, %s18
      %p26 = scmp.ge.s32.totalorder %s25, 7
      %s27 = scalar_select %p26, 0, %s25
      %s28 = sadd.s32 1, %s17
      %s29 = scalar_select %p26, %s28, %s17
      %p30 = scmp.ge.s32.totalorder %s29, 3
      %s31 = scalar_select %p30, 0, %s29
      %s32 = sadd.s32 1, %s16
      %s33 = scalar_select %p30, %s32, %s16
      %p34 = scmp.ge.s32.totalorder %s33, 1
      %s35 = scalar_select %p34, 0, %s33
      %s36 = ssub.s32 %s16, %s35
      %s37 = ssub.s32 %s18, %s27
      %s38 = sor.u32 %s36, %s37
      %p39 = scmp.eq.s32.totalorder %s38, 0
      %s41 = sadd.s32 %s40, 1
      %s42 = scalar_select %p39, %s40, %s41
      %p45 = pneg %p39
      %p46 = scmp.eq.s32.totalorder %s9, 20
      %p47 = por %p45, %p46
      %p48 = scmp.ne.s32.totalorder %s40, %s43
      %p49 = scmp.eq.s32.totalorder %s9, 0
      %p50 = por %p48, %p49
      %p51 = scmp.ne.s32.totalorder %s40, %s43
      %p52 = scmp.eq.s32.totalorder %s14, 20
      %p53 = por %p51, %p52
      %p54 = scmp.ne.s32.totalorder %s43, %s44
      %p55 = scmp.eq.s32.totalorder %s14, 0
      %p56 = por %p54, %p55
      %p57 = scmp.ne.s32.totalorder %s43, %s44
      %p58 = scmp.eq.s32.totalorder %s15, 20
      %p59 = por %p57, %p58
      %p61 = scmp.ne.s32.totalorder %s44, %s60
      %p62 = scmp.eq.s32.totalorder %s15, 0
      %p63 = por %p61, %p62
      %s64 = ssub.s32 %s18, %s27
      %s65 = ssub.s32 %s17, %s31
      %s66 = sor.u32 %s64, %s65
      %p67 = scmp.eq.s32.totalorder %s66, 0
      %s69 = sadd.s32 %s68, 1
      %s70 = scalar_select %p67, %s68, %s69
      %p73 = pneg %p67
      %p74 = scmp.eq.s32.totalorder %s9, 20
      %p75 = por %p73, %p74
      %p76 = scmp.ne.s32.totalorder %s68, %s71
      %p77 = scmp.eq.s32.totalorder %s9, 0
      %p78 = por %p76, %p77
      %p79 = scmp.ne.s32.totalorder %s68, %s71
      %p80 = scmp.eq.s32.totalorder %s14, 20
      %p81 = por %p79, %p80
      %p82 = scmp.ne.s32.totalorder %s71, %s72
      %p83 = scmp.eq.s32.totalorder %s14, 0
      %p84 = por %p82, %p83
      %p85 = scmp.ne.s32.totalorder %s71, %s72
      %p86 = scmp.eq.s32.totalorder %s15, 20
      %p87 = por %p85, %p86
      %p89 = scmp.ne.s32.totalorder %s72, %s88
      %p90 = scmp.eq.s32.totalorder %s15, 0
      %p91 = por %p89, %p90
      %s92 = ssub.s32 %s17, %s31
      %p93 = scmp.eq.s32.totalorder %s92, 0
      %s95 = sadd.s32 %s94, 1
      %s96 = scalar_select %p93, %s94, %s95
      %p99 = pneg %p93
      %p100 = scmp.eq.s32.totalorder %s9, 20
      %p101 = por %p99, %p100
      %p102 = scmp.ne.s32.totalorder %s94, %s97
      %p103 = scmp.eq.s32.totalorder %s9, 0
      %p104 = por %p102, %p103
      %p105 = scmp.ne.s32.totalorder %s94, %s97
      %p106 = scmp.eq.s32.totalorder %s14, 20
      %p107 = por %p105, %p106
      %p108 = scmp.ne.s32.totalorder %s97, %s98
      %p109 = scmp.eq.s32.totalorder %s14, 0
      %p110 = por %p108, %p109
      %p111 = scmp.ne.s32.totalorder %s97, %s98
      %p112 = scmp.eq.s32.totalorder %s15, 20
      %p113 = por %p111, %p112
      %p115 = scmp.ne.s32.totalorder %s98, %s114
      %p116 = scmp.eq.s32.totalorder %s15, 0
      %p117 = por %p115, %p116
      %s118 = ssub.s32 %s16, %s35
      %s119 = ssub.s32 %s17, %s31
      %s120 = sor.u32 %s118, %s119
      %p121 = scmp.eq.s32.totalorder %s120, 0
      %s123 = sadd.s32 %s122, 1
      %s124 = scalar_select %p121, %s122, %s123
      %p127 = pneg %p121
      %p128 = scmp.eq.s32.totalorder %s9, 20
      %p129 = por %p127, %p128
      %p130 = scmp.ne.s32.totalorder %s122, %s125
      %p131 = scmp.eq.s32.totalorder %s9, 0
      %p132 = por %p130, %p131
      %p133 = scmp.ne.s32.totalorder %s122, %s125
      %p134 = scmp.eq.s32.totalorder %s14, 20
      %p135 = por %p133, %p134
      %p136 = scmp.ne.s32.totalorder %s125, %s126
      %p137 = scmp.eq.s32.totalorder %s14, 0
      %p138 = por %p136, %p137
      %p139 = scmp.ne.s32.totalorder %s125, %s126
      %p140 = scmp.eq.s32.totalorder %s15, 20
      %p141 = por %p139, %p140
      %p143 = scmp.ne.s32.totalorder %s126, %s142
      %p144 = scmp.eq.s32.totalorder %s15, 0
      %p145 = por %p143, %p144
      %p146 = scmp.le.s32.totalorder 1, %s9
      %p147 = scmp.lt.s32.totalorder %s9, 22
      %p148 = pnand %p146, %p147
      %p149 = pneg %p148
      // Predicated region
      $region9: #{malexnet_forward.8} parent=5 // pred_check
        _
      $region10: #{malexnet_forward.8} parent=5 // pred_check_branch
        %151 = sbr.rel (%p148) target = $region12
      $region11: #{malexnet_forward.8} parent=5 // pred_region
        %s152 = ssub.s32 %s9, 1
      $region12: #{malexnet_forward.8} parent=5 // pred_fallthru
        _
      %p153 = scmp.lt.s32.totalorder %s9, 21
      // Predicated region
      $region13: #{malexnet_forward.8} parent=5 // pred_check
        %p154 = pneg %p153
      $region14: #{malexnet_forward.8} parent=5 // pred_check_branch
        %156 = sbr.rel (%p154) target = $region16
      $region15: #{malexnet_forward.8} parent=5 // pred_region
        // Predicated region
        $region17: #{malexnet_forward.8} parent=15 // pred_check
          %p157 = pneg %p50
        $region18: #{malexnet_forward.8} parent=15 // pred_check_branch
          %159 = sbr.rel (%p157) target = $region20
        $region19: #{malexnet_forward.8} parent=15 // pred_region
          %s160 = smul.u32 2, %s18
          %p161 = scmp.lt.s32.totalorder %s16, 0
          %s162 = scalar_select %p161, %s16, 0
          %p163 = scmp.lt.s32.totalorder %s160, 13
          %s164 = scalar_select %p163, %s160, 13
          %s165 = smul.addr %s162, 14
          %s166 = sadd.s32 %s164, %s165
          %s167 = smul.addr %s166, 4
          %s168 = scalar_lea.vmem %s0, %s167
          %s169 = smul.u32 2, %s18
        $region20: #{malexnet_forward.8} parent=15 // pred_fallthru
          _
        // Predicated region
        $region21: #{malexnet_forward.8} parent=15 // pred_check
          %p170 = pneg %p78
        $region22: #{malexnet_forward.8} parent=15 // pred_check_branch
          %172 = sbr.rel (%p170) target = $region24
        $region23: #{malexnet_forward.8} parent=15 // pred_region
          %s173 = sand.u32 %s68, 1
          %s174 = sand.u32 %s68, 1
          %s175 = smul.addr %s174, 128
          %s176 = scalar_lea.vmem [#allocation3], %s175
          %s177 = smul.u32 32, %s18
          %s178 = smul.addr %s177, 3
          %s179 = sadd.s32 %s17, %s178
          %s180 = smul.addr %s179, 4
          %s181 = scalar_lea.vmem %s1, %s180
          // Predicated region
          $region25: #{malexnet_forward.8} parent=23 // pred_check
            _
          $region26: #{malexnet_forward.8} parent=23 // pred_check_branch
            %183 = sbr.rel (0) target = $region28
          $region27: #{malexnet_forward.8} parent=23 // pred_region
            // Predicated region
            $region29: #{malexnet_forward.8} parent=27 // pred_check
              _
            $region30: #{malexnet_forward.8} parent=27 // pred_check_branch
              %185 = sbr.rel target = $region32
            $region31: #{malexnet_forward.8} parent=27 // pred_region
              // Predicated region
              $region44: #{malexnet_forward.8} parent=31 // pred_check
                _
              $region45: #{malexnet_forward.8} parent=31 // pred_check_branch
                %262 = sbr.rel (0) target = $region47
              $region46: #{malexnet_forward.8} parent=31 // pred_region
                loop: start=0, step=1, limit=1
                $region48: #{malexnet_forward.8} parent=46 // loop_pre_header
                  _
                $region49: #{malexnet_forward.8} parent=46 // loop_header
                  %s264 = sphi 0, %s268
                  %p265 = scmp.ge.s32.totalorder %s264, 1
                  %s269 = sphi %s181, %s181
                  %s270 = sphi %s176, %s176
                $region50: #{malexnet_forward.8} parent=46 // loop_header_branch
                  %267 = sbr.rel (%p265) target = $region54
                $region51: #{malexnet_forward.8} parent=46 // loop_body
                  _
                $region52: #{malexnet_forward.8} parent=46 // loop_footer
                  %s268 = sadd.s32 1, %s264
                $region53: #{malexnet_forward.8} parent=46 // loop_footer_branch
                  %263 = sbr.rel target = $region49
                $region54: #{malexnet_forward.8} parent=46 // loop_exit
                  _
                loop: start=0, step=1, limit=1
                $region55: #{malexnet_forward.8} parent=46 // loop_pre_header
                  _
                $region56: #{malexnet_forward.8} parent=46 // loop_header
                  %s273 = sphi 0, %s277
                  %p274 = scmp.ge.s32.totalorder %s273, 1
                  %s278 = sphi %s181, %s181
                  %s279 = sphi %s176, %s176
                $region57: #{malexnet_forward.8} parent=46 // loop_header_branch
                  %276 = sbr.rel (%p274) target = $region61
                $region58: #{malexnet_forward.8} parent=46 // loop_body
                  %v280 = vld [vmem:[%s278] sm:$0xf]
                  %281 = vst [vmem:[%s279] sm:$0xf] %v280
                  %v282 = vld [vmem:[%s278 + $0xc] sm:$0xf]
                  %283 = vst [vmem:[%s279 + $0x4] sm:$0xf] %v282
                  %v284 = vld [vmem:[%s278 + $0x18] sm:$0xf]
                  %285 = vst [vmem:[%s279 + $0x8] sm:$0xf] %v284
                  %v286 = vld [vmem:[%s278 + $0x24] sm:$0xf]
                  %287 = vst [vmem:[%s279 + $0xc] sm:$0xf] %v286
                  %v288 = vld [vmem:[%s278 + $0x30] sm:$0xf]
                  %289 = vst [vmem:[%s279 + $0x10] sm:$0xf] %v288
                  %v290 = vld [vmem:[%s278 + $0x3c] sm:$0xf]
                  %291 = vst [vmem:[%s279 + $0x14] sm:$0xf] %v290
                  %v292 = vld [vmem:[%s278 + $0x48] sm:$0xf]
                  %293 = vst [vmem:[%s279 + $0x18] sm:$0xf] %v292
                  %v294 = vld [vmem:[%s278 + $0x54] sm:$0xf]
                  %295 = vst [vmem:[%s279 + $0x1c] sm:$0xf] %v294
                  %v296 = vld [vmem:[%s278 + $0x60] sm:$0xf]
                  %297 = vst [vmem:[%s279 + $0x20] sm:$0xf] %v296
                  %v298 = vld [vmem:[%s278 + $0x6c] sm:$0xf]
                  %299 = vst [vmem:[%s279 + $0x24] sm:$0xf] %v298
                  %v300 = vld [vmem:[%s278 + $0x78] sm:$0xf]
                  %301 = vst [vmem:[%s279 + $0x28] sm:$0xf] %v300
                  %v302 = vld [vmem:[%s278 + $0x84] sm:$0xf]
                  %303 = vst [vmem:[%s279 + $0x2c] sm:$0xf] %v302
                  %v304 = vld [vmem:[%s278 + $0x90] sm:$0xf]
                  %305 = vst [vmem:[%s279 + $0x30] sm:$0xf] %v304
                  %v306 = vld [vmem:[%s278 + $0x9c] sm:$0xf]
                  %307 = vst [vmem:[%s279 + $0x34] sm:$0xf] %v306
                  %v308 = vld [vmem:[%s278 + $0xa8] sm:$0xf]
                  %309 = vst [vmem:[%s279 + $0x38] sm:$0xf] %v308
                  %v310 = vld [vmem:[%s278 + $0xb4] sm:$0xf]
                  %311 = vst [vmem:[%s279 + $0x3c] sm:$0xf] %v310
                  %v312 = vld [vmem:[%s278 + $0xc0] sm:$0xf]
                  %313 = vst [vmem:[%s279 + $0x40] sm:$0xf] %v312
                  %v314 = vld [vmem:[%s278 + $0xcc] sm:$0xf]
                  %315 = vst [vmem:[%s279 + $0x44] sm:$0xf] %v314
                  %v316 = vld [vmem:[%s278 + $0xd8] sm:$0xf]
                  %317 = vst [vmem:[%s279 + $0x48] sm:$0xf] %v316
                  %v318 = vld [vmem:[%s278 + $0xe4] sm:$0xf]
                  %319 = vst [vmem:[%s279 + $0x4c] sm:$0xf] %v318
                  %v320 = vld [vmem:[%s278 + $0xf0] sm:$0xf]
                  %321 = vst [vmem:[%s279 + $0x50] sm:$0xf] %v320
                  %v322 = vld [vmem:[%s278 + $0xfc] sm:$0xf]
                  %323 = vst [vmem:[%s279 + $0x54] sm:$0xf] %v322
                  %v324 = vld [vmem:[%s278 + $0x108] sm:$0xf]
                  %325 = vst [vmem:[%s279 + $0x58] sm:$0xf] %v324
                  %v326 = vld [vmem:[%s278 + $0x114] sm:$0xf]
                  %327 = vst [vmem:[%s279 + $0x5c] sm:$0xf] %v326
                  %v328 = vld [vmem:[%s278 + $0x120] sm:$0xf]
                  %329 = vst [vmem:[%s279 + $0x60] sm:$0xf] %v328
                  %v330 = vld [vmem:[%s278 + $0x12c] sm:$0xf]
                  %331 = vst [vmem:[%s279 + $0x64] sm:$0xf] %v330
                  %v332 = vld [vmem:[%s278 + $0x138] sm:$0xf]
                  %333 = vst [vmem:[%s279 + $0x68] sm:$0xf] %v332
                  %v334 = vld [vmem:[%s278 + $0x144] sm:$0xf]
                  %335 = vst [vmem:[%s279 + $0x6c] sm:$0xf] %v334
                  %v336 = vld [vmem:[%s278 + $0x150] sm:$0xf]
                  %337 = vst [vmem:[%s279 + $0x70] sm:$0xf] %v336
                  %v338 = vld [vmem:[%s278 + $0x15c] sm:$0xf]
                  %339 = vst [vmem:[%s279 + $0x74] sm:$0xf] %v338
                  %v340 = vld [vmem:[%s278 + $0x168] sm:$0xf]
                  %341 = vst [vmem:[%s279 + $0x78] sm:$0xf] %v340
                  %v342 = vld [vmem:[%s278 + $0x174] sm:$0xf]
                  %343 = vst [vmem:[%s279 + $0x7c] sm:$0xf] %v342
                $region59: #{malexnet_forward.8} parent=46 // loop_footer
                  %s277 = sadd.s32 1, %s273
                $region60: #{malexnet_forward.8} parent=46 // loop_footer_branch
                  %272 = sbr.rel target = $region56
                $region61: #{malexnet_forward.8} parent=46 // loop_exit
                  _
              $region47: #{malexnet_forward.8} parent=31 // pred_fallthru
                _
            $region32: #{malexnet_forward.8} parent=27 // pred_fallthru
              _
            // Predicated region
            $region33: #{malexnet_forward.8} parent=27 // pred_check
              _
            $region34: #{malexnet_forward.8} parent=27 // pred_check_branch
              %187 = sbr.rel (0) target = $region36
            $region35: #{malexnet_forward.8} parent=27 // pred_region
              loop: start=0, step=1, limit=1
              $region37: #{malexnet_forward.8} parent=35 // loop_pre_header
                _
              $region38: #{malexnet_forward.8} parent=35 // loop_header
                %s190 = sphi 0, %s194
                %p191 = scmp.ge.s32.totalorder %s190, 1
                %s195 = sphi %s181, %s181
                %s196 = sphi %s176, %s176
              $region39: #{malexnet_forward.8} parent=35 // loop_header_branch
                %193 = sbr.rel (%p191) target = $region43
              $region40: #{malexnet_forward.8} parent=35 // loop_body
                %v197 = vld [vmem:[%s195] sm:$0xf]
                %198 = vst [vmem:[%s196] sm:$0xf] %v197
                %v199 = vld [vmem:[%s195 + $0xc] sm:$0xf]
                %200 = vst [vmem:[%s196 + $0x4] sm:$0xf] %v199
                %v201 = vld [vmem:[%s195 + $0x18] sm:$0xf]
                %202 = vst [vmem:[%s196 + $0x8] sm:$0xf] %v201
                %v203 = vld [vmem:[%s195 + $0x24] sm:$0xf]
                %204 = vst [vmem:[%s196 + $0xc] sm:$0xf] %v203
                %v205 = vld [vmem:[%s195 + $0x30] sm:$0xf]
                %206 = vst [vmem:[%s196 + $0x10] sm:$0xf] %v205
                %v207 = vld [vmem:[%s195 + $0x3c] sm:$0xf]
                %208 = vst [vmem:[%s196 + $0x14] sm:$0xf] %v207
                %v209 = vld [vmem:[%s195 + $0x48] sm:$0xf]
                %210 = vst [vmem:[%s196 + $0x18] sm:$0xf] %v209
                %v211 = vld [vmem:[%s195 + $0x54] sm:$0xf]
                %212 = vst [vmem:[%s196 + $0x1c] sm:$0xf] %v211
                %v213 = vld [vmem:[%s195 + $0x60] sm:$0xf]
                %214 = vst [vmem:[%s196 + $0x20] sm:$0xf] %v213
                %v215 = vld [vmem:[%s195 + $0x6c] sm:$0xf]
                %216 = vst [vmem:[%s196 + $0x24] sm:$0xf] %v215
                %v217 = vld [vmem:[%s195 + $0x78] sm:$0xf]
                %218 = vst [vmem:[%s196 + $0x28] sm:$0xf] %v217
                %v219 = vld [vmem:[%s195 + $0x84] sm:$0xf]
                %220 = vst [vmem:[%s196 + $0x2c] sm:$0xf] %v219
                %v221 = vld [vmem:[%s195 + $0x90] sm:$0xf]
                %222 = vst [vmem:[%s196 + $0x30] sm:$0xf] %v221
                %v223 = vld [vmem:[%s195 + $0x9c] sm:$0xf]
                %224 = vst [vmem:[%s196 + $0x34] sm:$0xf] %v223
                %v225 = vld [vmem:[%s195 + $0xa8] sm:$0xf]
                %226 = vst [vmem:[%s196 + $0x38] sm:$0xf] %v225
                %v227 = vld [vmem:[%s195 + $0xb4] sm:$0xf]
                %228 = vst [vmem:[%s196 + $0x3c] sm:$0xf] %v227
                %v229 = vld [vmem:[%s195 + $0xc0] sm:$0xf]
                %230 = vst [vmem:[%s196 + $0x40] sm:$0xf] %v229
                %v231 = vld [vmem:[%s195 + $0xcc] sm:$0xf]
                %232 = vst [vmem:[%s196 + $0x44] sm:$0xf] %v231
                %v233 = vld [vmem:[%s195 + $0xd8] sm:$0xf]
                %234 = vst [vmem:[%s196 + $0x48] sm:$0xf] %v233
                %v235 = vld [vmem:[%s195 + $0xe4] sm:$0xf]
                %236 = vst [vmem:[%s196 + $0x4c] sm:$0xf] %v235
                %v237 = vld [vmem:[%s195 + $0xf0] sm:$0xf]
                %238 = vst [vmem:[%s196 + $0x50] sm:$0xf] %v237
                %v239 = vld [vmem:[%s195 + $0xfc] sm:$0xf]
                %240 = vst [vmem:[%s196 + $0x54] sm:$0xf] %v239
                %v241 = vld [vmem:[%s195 + $0x108] sm:$0xf]
                %242 = vst [vmem:[%s196 + $0x58] sm:$0xf] %v241
                %v243 = vld [vmem:[%s195 + $0x114] sm:$0xf]
                %244 = vst [vmem:[%s196 + $0x5c] sm:$0xf] %v243
                %v245 = vld [vmem:[%s195 + $0x120] sm:$0xf]
                %246 = vst [vmem:[%s196 + $0x60] sm:$0xf] %v245
                %v247 = vld [vmem:[%s195 + $0x12c] sm:$0xf]
                %248 = vst [vmem:[%s196 + $0x64] sm:$0xf] %v247
                %v249 = vld [vmem:[%s195 + $0x138] sm:$0xf]
                %250 = vst [vmem:[%s196 + $0x68] sm:$0xf] %v249
                %v251 = vld [vmem:[%s195 + $0x144] sm:$0xf]
                %252 = vst [vmem:[%s196 + $0x6c] sm:$0xf] %v251
                %v253 = vld [vmem:[%s195 + $0x150] sm:$0xf]
                %254 = vst [vmem:[%s196 + $0x70] sm:$0xf] %v253
                %v255 = vld [vmem:[%s195 + $0x15c] sm:$0xf]
                %256 = vst [vmem:[%s196 + $0x74] sm:$0xf] %v255
                %v257 = vld [vmem:[%s195 + $0x168] sm:$0xf]
                %258 = vst [vmem:[%s196 + $0x78] sm:$0xf] %v257
                %v259 = vld [vmem:[%s195 + $0x174] sm:$0xf]
                %260 = vst [vmem:[%s196 + $0x7c] sm:$0xf] %v259
              $region41: #{malexnet_forward.8} parent=35 // loop_footer
                %s194 = sadd.s32 1, %s190
              $region42: #{malexnet_forward.8} parent=35 // loop_footer_branch
                %189 = sbr.rel target = $region38
              $region43: #{malexnet_forward.8} parent=35 // loop_exit
                _
            $region36: #{malexnet_forward.8} parent=27 // pred_fallthru
              _
          $region28: #{malexnet_forward.8} parent=23 // pred_fallthru
            _
          %344 = vnop
        $region24: #{malexnet_forward.8} parent=15 // pred_fallthru
          _
        // Predicated region
        $region62: #{malexnet_forward.8} parent=15 // pred_check
          %p345 = pneg %p104
        $region63: #{malexnet_forward.8} parent=15 // pred_check_branch
          %347 = sbr.rel (%p345) target = $region65
        $region64: #{malexnet_forward.8} parent=15 // pred_region
          %p348 = scmp.lt.s32.totalorder %s17, 2
          %s349 = scalar_select %p348, %s17, 2
          %s350 = scalar_lea.vmem %s2, %s349
        $region65: #{malexnet_forward.8} parent=15 // pred_fallthru
          _
      $region16: #{malexnet_forward.8} parent=5 // pred_fallthru
        _
      %p351 = scmp.le.s32.totalorder 1, %s9
      %p352 = scmp.lt.s32.totalorder %s9, 22
      %p353 = pnand %p351, %p352
      %p354 = pneg %p353
      // Predicated region
      $region66: #{malexnet_forward.8} parent=5 // pred_check
        _
      $region67: #{malexnet_forward.8} parent=5 // pred_check_branch
        %356 = sbr.rel (%p353) target = $region69
      $region68: #{malexnet_forward.8} parent=5 // pred_region
        %s357 = ssub.s32 %s9, 1
        %s358 = sand.u32 %s71, 1
        %s359 = sand.u32 %s71, 1
        %s360 = smul.addr %s359, 128
        %s361 = scalar_lea.vmem [#allocation3], %s360
        // Predicated region
        $region70: #{malexnet_forward.8} parent=68 // pred_check
          %p362 = pneg %p84
        $region71: #{malexnet_forward.8} parent=68 // pred_check_branch
          %364 = sbr.rel (%p362) target = $region73
        $region72: #{malexnet_forward.8} parent=68 // pred_region
          _
        $region73: #{malexnet_forward.8} parent=68 // pred_fallthru
          _
        %s365 = smul.u32 2, %s21
        %p366 = scmp.lt.s32.totalorder %s19, 0
        %s367 = scalar_select %p366, %s19, 0
        %p368 = scmp.lt.s32.totalorder %s365, 13
        %s369 = scalar_select %p368, %s365, 13
        %s370 = smul.addr %s367, 14
        %s371 = sadd.s32 %s369, %s370
        %s372 = smul.addr %s371, 4
        %s373 = scalar_lea.vmem %s0, %s372
        %p374 = pneg %p56
        %p375 = pneg %p53
        %s376 = sand.u32 %s71, 1
        %s377 = sand.u32 %s71, 1
        %s378 = smul.addr %s377, 128
        %s379 = scalar_lea.vmem [#allocation3], %s378
        %p380 = pneg %p84
        %p381 = pneg %p81
        %p382 = scmp.lt.s32.totalorder %s20, 2
        %s383 = scalar_select %p382, %s20, 2
        %s384 = scalar_lea.vmem %s2, %s383
        %p385 = pneg %p110
        %p386 = pneg %p107
        %p387 = pneg %p138
        %p388 = pneg %p135
        %p389 = scmp.lt.s32.totalorder %s19, 0
        %s390 = scalar_select %p389, %s19, 0
        %p391 = scmp.lt.s32.totalorder %s20, 2
        %s392 = scalar_select %p391, %s20, 2
        %s393 = smul.addr %s390, 3
        %s394 = sadd.s32 %s392, %s393
        %s395 = smul.addr %s394, 4
        %s396 = scalar_lea.vmem %s3, %s395
        %s397 = smul.u32 2, %s21
        %p398 = scmp.lt.s32.totalorder %s19, 0
        %s399 = scalar_select %p398, %s19, 0
        %p400 = scmp.lt.s32.totalorder %s397, 13
        %s401 = scalar_select %p400, %s397, 13
        %s402 = smul.addr %s399, 14
        %s403 = sadd.s32 %s401, %s402
        %s404 = smul.addr %s403, 4
        %s405 = scalar_lea.vmem %s0, %s404
        %s406 = smul.u32 2, %s21
        %s407 = smul.u32 32, %s21
        %p408 = scmp.lt.s32.totalorder %s20, 2
        %s409 = scalar_select %p408, %s20, 2
        %s410 = scalar_lea.vmem %s2, %s409
        %p411 = scmp.lt.s32.totalorder %s19, 0
        %s412 = scalar_select %p411, %s19, 0
        %p413 = scmp.lt.s32.totalorder %s20, 2
        %s414 = scalar_select %p413, %s20, 2
        %s415 = smul.addr %s412, 3
        %s416 = sadd.s32 %s414, %s415
        %s417 = smul.addr %s416, 4
        %s418 = scalar_lea.vmem %s3, %s417
        %p420 = scmp.eq.s32.totalorder %s21, 0
        // Predicated region
        $region74: #{malexnet_forward.8} parent=68 // pred_check
          %p421 = pneg %p420
        $region75: #{malexnet_forward.8} parent=68 // pred_check_branch
          %423 = sbr.rel (%p421) target = $region77
        $region76: #{malexnet_forward.8} parent=68 // pred_region
          %424 = vst [vmem:[#allocation2] sm:$0xff] 0.0
        $region77: #{malexnet_forward.8} parent=68 // pred_fallthru
          _
        %v425 = vld [vmem:[#allocation2] sm:$0xff]
        %v426 = vld [vmem:[%s405] sm:$0xff]
        %v427 = vld [vmem:[%s361] sm:$0xf]
        %v428 = vld [vmem:[%s361 + $0x4] sm:$0xf]
        %v429 = vld [vmem:[%s361 + $0x8] sm:$0xf]
        %v430 = vld [vmem:[%s361 + $0xc] sm:$0xf]
        %v431 = vld [vmem:[%s361 + $0x10] sm:$0xf]
        %v432 = vld [vmem:[%s361 + $0x14] sm:$0xf]
        %v433 = vld [vmem:[%s361 + $0x18] sm:$0xf]
        %v434 = vld [vmem:[%s361 + $0x1c] sm:$0xf]
        %v435 = vld [vmem:[%s361 + $0x20] sm:$0xf]
        %v436 = vld [vmem:[%s361 + $0x24] sm:$0xf]
        %v437 = vld [vmem:[%s361 + $0x28] sm:$0xf]
        %v438 = vld [vmem:[%s361 + $0x2c] sm:$0xf]
        %v439 = vld [vmem:[%s361 + $0x30] sm:$0xf]
        %v440 = vld [vmem:[%s361 + $0x34] sm:$0xf]
        %v441 = vld [vmem:[%s361 + $0x38] sm:$0xf]
        %v442 = vld [vmem:[%s361 + $0x3c] sm:$0xf]
        %v443 = vld [vmem:[%s361 + $0x40] sm:$0xf]
        %v444 = vld [vmem:[%s361 + $0x44] sm:$0xf]
        %v445 = vld [vmem:[%s361 + $0x48] sm:$0xf]
        %v446 = vld [vmem:[%s361 + $0x4c] sm:$0xf]
        %v447 = vld [vmem:[%s361 + $0x50] sm:$0xf]
        %v448 = vld [vmem:[%s361 + $0x54] sm:$0xf]
        %v449 = vld [vmem:[%s361 + $0x58] sm:$0xf]
        %v450 = vld [vmem:[%s361 + $0x5c] sm:$0xf]
        %v451 = vld [vmem:[%s361 + $0x60] sm:$0xf]
        %v452 = vld [vmem:[%s361 + $0x64] sm:$0xf]
        %v453 = vld [vmem:[%s361 + $0x68] sm:$0xf]
        %v454 = vld [vmem:[%s361 + $0x6c] sm:$0xf]
        %v455 = vld [vmem:[%s361 + $0x70] sm:$0xf]
        %v456 = vld [vmem:[%s361 + $0x74] sm:$0xf]
        %v457 = vld [vmem:[%s361 + $0x78] sm:$0xf]
        %v458 = vld [vmem:[%s361 + $0x7c] sm:$0xf]
        %v460 = vunpack.c.l.b16 %v426
        %v461 = vunpack.c.h.b16 %v426
        %v462 = vpack.c.b16 %v460, %v460
        %v463 = vpack.c.b16 %v461, %v461
        %v498 = vunpack.c.l.b16 %v427
        %v499 = vunpack.c.l.b16 %v428
        %v500 = vunpack.c.l.b16 %v429
        %v501 = vunpack.c.l.b16 %v430
        %v502 = vunpack.c.l.b16 %v431
        %v503 = vunpack.c.l.b16 %v432
        %v504 = vunpack.c.l.b16 %v433
        %v505 = vunpack.c.l.b16 %v434
        %v506 = vunpack.c.l.b16 %v435
        %v507 = vunpack.c.l.b16 %v436
        %v508 = vunpack.c.l.b16 %v437
        %v509 = vunpack.c.l.b16 %v438
        %v510 = vunpack.c.l.b16 %v439
        %v511 = vunpack.c.l.b16 %v440
        %v512 = vunpack.c.l.b16 %v441
        %v513 = vunpack.c.l.b16 %v442
        %v514 = vunpack.c.l.b16 %v443
        %v515 = vunpack.c.l.b16 %v444
        %v516 = vunpack.c.l.b16 %v445
        %v517 = vunpack.c.l.b16 %v446
        %v518 = vunpack.c.l.b16 %v447
        %v519 = vunpack.c.l.b16 %v448
        %v520 = vunpack.c.l.b16 %v449
        %v521 = vunpack.c.l.b16 %v450
        %v522 = vunpack.c.l.b16 %v451
        %v523 = vunpack.c.l.b16 %v452
        %v524 = vunpack.c.l.b16 %v453
        %v525 = vunpack.c.l.b16 %v454
        %v526 = vunpack.c.l.b16 %v455
        %v527 = vunpack.c.l.b16 %v456
        %v528 = vunpack.c.l.b16 %v457
        %v529 = vunpack.c.l.b16 %v458
        %v530 = vpack.c.b16 %v499, %v498
        %v531 = vpack.c.b16 %v501, %v500
        %v532 = vpack.c.b16 %v503, %v502
        %v533 = vpack.c.b16 %v505, %v504
        %v534 = vpack.c.b16 %v507, %v506
        %v535 = vpack.c.b16 %v509, %v508
        %v536 = vpack.c.b16 %v511, %v510
        %v537 = vpack.c.b16 %v513, %v512
        %v538 = vpack.c.b16 %v515, %v514
        %v539 = vpack.c.b16 %v517, %v516
        %v540 = vpack.c.b16 %v519, %v518
        %v541 = vpack.c.b16 %v521, %v520
        %v542 = vpack.c.b16 %v523, %v522
        %v543 = vpack.c.b16 %v525, %v524
        %v544 = vpack.c.b16 %v527, %v526
        %v545 = vpack.c.b16 %v529, %v528
        %562 = vmatprep.subr.bf16.mxu0 0
        %563 = vmatpush1.bf16.msra.mxu0 %v530
        %564 = vmatprep.subr.bf16.mxu0 0
        %565 = vmatpush1.bf16.msra.mxu0 %v531
        %566 = vmatprep.subr.bf16.mxu0 0
        %567 = vmatpush1.bf16.msra.mxu0 %v532
        %568 = vmatprep.subr.bf16.mxu0 0
        %569 = vmatpush1.bf16.msra.mxu0 %v533
        %570 = vmatprep.subr.bf16.mxu0 0
        %571 = vmatpush1.bf16.msra.mxu0 %v534
        %572 = vmatprep.subr.bf16.mxu0 0
        %573 = vmatpush1.bf16.msra.mxu0 %v535
        %574 = vmatprep.subr.bf16.mxu0 0
        %575 = vmatpush1.bf16.msra.mxu0 %v536
        %576 = vmatprep.subr.bf16.mxu0 0
        %577 = vmatpush1.bf16.msra.mxu0 %v537
        %578 = vmatprep.subr.bf16.mxu0 0
        %579 = vmatpush1.bf16.msra.mxu0 %v538
        %580 = vmatprep.subr.bf16.mxu0 0
        %581 = vmatpush1.bf16.msra.mxu0 %v539
        %582 = vmatprep.subr.bf16.mxu0 0
        %583 = vmatpush1.bf16.msra.mxu0 %v540
        %584 = vmatprep.subr.bf16.mxu0 0
        %585 = vmatpush1.bf16.msra.mxu0 %v541
        %586 = vmatprep.subr.bf16.mxu0 0
        %587 = vmatpush1.bf16.msra.mxu0 %v542
        %588 = vmatprep.subr.bf16.mxu0 0
        %589 = vmatpush1.bf16.msra.mxu0 %v543
        %590 = vmatprep.subr.bf16.mxu0 0
        %591 = vmatpush1.bf16.msra.mxu0 %v544
        %592 = vmatprep.subr.bf16.mxu0 0
        %593 = vmatpush1.bf16.msra.mxu0 %v545
        %594 = vmatprep.mubr.bf16.mxu0 %v463
        %595 = vmatmul.mubr.bf16.gmra.mrb[0].mxu0 %v462
        %v596 = vpop.f32.mrb[0].mxu0
        %v597 = vadd.f32 0.0, %v596
        %v598 = vpop.f32.mrb[0].mxu0
        %v599 = vpop.f32.mrb[0].mxu0
        %v600 = vpop.f32.mrb[0].mxu0
        %601 = vdwg.mxu0
        %v602 = vadd.f32 %v425, %v597
        %603 = vst [vmem:[#allocation2] sm:$0xff] %v602
        %p604 = scmp.eq.s32.totalorder %s21, 6
        // Predicated region
        $region78: #{malexnet_forward.8} parent=68 // pred_check
          %p605 = pneg %p604
        $region79: #{malexnet_forward.8} parent=68 // pred_check_branch
          %607 = sbr.rel (%p605) target = $region81
        $region80: #{malexnet_forward.8} parent=68 // pred_region
          %v608 = vld [vmem:[#allocation2] sm:$0xff]
          %v609 = vld [vmem:[%s410] sm:$0x1]
          %v611 = vlaneseq
          %v612 = vshrl.u32 %v611, 7
          %v613 = vsub.s32 0, %v612
          %v614 = vrot.slane %v609, %v613
          %v616 = vadd.f32 %v608, %v614
          %v617 = vmax.f32 %v616, 0.0
          %v618 = vpack.c.bf16 %v617, %v617
          %619 = vst [vmem:[%s418] sm:$0xf] %v618
        $region81: #{malexnet_forward.8} parent=68 // pred_fallthru
          _
        %p620 = scmp.lt.s32.totalorder %s19, 0
        %s621 = scalar_select %p620, %s19, 0
        %p622 = scmp.lt.s32.totalorder %s20, 2
        %s623 = scalar_select %p622, %s20, 2
        %s624 = smul.addr %s621, 3
        %s625 = sadd.s32 %s623, %s624
        %s626 = smul.addr %s625, 4
        %s627 = scalar_lea.vmem %s3, %s626
        // Predicated region
        $region82: #{malexnet_forward.8} parent=68 // pred_check
          %p628 = pneg %p135
        $region83: #{malexnet_forward.8} parent=68 // pred_check_branch
          %630 = sbr.rel (%p628) target = $region85
        $region84: #{malexnet_forward.8} parent=68 // pred_region
          _
        $region85: #{malexnet_forward.8} parent=68 // pred_fallthru
          _
      $region69: #{malexnet_forward.8} parent=5 // pred_fallthru
        _
      %p631 = scmp.le.s32.totalorder 2, %s9
      // Predicated region
      $region86: #{malexnet_forward.8} parent=5 // pred_check
        %p632 = pneg %p631
      $region87: #{malexnet_forward.8} parent=5 // pred_check_branch
        %634 = sbr.rel (%p632) target = $region89
      $region88: #{malexnet_forward.8} parent=5 // pred_region
        %s635 = ssub.s32 %s9, 2
        // Predicated region
        $region90: #{malexnet_forward.8} parent=88 // pred_check
          %p636 = pneg %p141
        $region91: #{malexnet_forward.8} parent=88 // pred_check_branch
          %638 = sbr.rel (%p636) target = $region93
        $region92: #{malexnet_forward.8} parent=88 // pred_region
          %p639 = scmp.lt.s32.totalorder %s22, 0
          %s640 = scalar_select %p639, %s22, 0
          %p641 = scmp.lt.s32.totalorder %s23, 2
          %s642 = scalar_select %p641, %s23, 2
          %s643 = smul.addr %s640, 3
          %s644 = sadd.s32 %s642, %s643
          %s645 = smul.addr %s644, 4
          %s646 = scalar_lea.vmem %s3, %s645
        $region93: #{malexnet_forward.8} parent=88 // pred_fallthru
          _
      $region89: #{malexnet_forward.8} parent=5 // pred_fallthru
        _
    $region6: #{malexnet_forward.8} parent=1 // loop_footer
      %s13 = sadd.s32 1, %s9
    $region7: #{malexnet_forward.8} parent=1 // loop_footer_branch
      %8 = sbr.rel target = $region3
    $region8: #{malexnet_forward.8} parent=1 // loop_exit
      _

// kernel: malexnet_forward.9
$region0: #{malexnet_forward.9}
  #allocation0 [shape = 'u32[]', space=smem, size = 0x4, offset = 0x4, fixed_abs, tag = 'smem constant byte address 0x4 - core index']
  #allocation1 [shape = 'u32[144,128]{1,0:T(1,128)}', space=vmem, size = 0x12000, scoped, tag = 'internal scratch']
  #allocation2 [shape = 'f32[8,256]{1,0:T(8,128)}', space=vmem, size = 0x2000, scoped, tag = 'scratch operand']
  %s0 = inlined_call_operand.vmem [shape: bf16[8,3584], index: 0, kind: input, shape index: {}]
  %s1 = inlined_call_operand.vmem [shape: bf16[3584,256], index: 1, kind: input, shape index: {}]
  %s2 = inlined_call_operand.vmem [shape: f32[1,256], index: 2, kind: input, shape index: {}]
  %s3 = inlined_call_operand.vmem [shape: bf16[8,256], index: 3, kind: output, shape index: {}]
  %s4 = sld [smem:[#allocation0]]
  $region53: #{malexnet_forward.9} parent=0
    _
  %s6 = ssub.s32 1, %s4
  %s7 = scalar_select 0, %s6, %s4
  loop: start=0, step=1, limit=9
  $region2: #{malexnet_forward.9} parent=0 // loop_pre_header
    _
  $region3: #{malexnet_forward.9} parent=0 // loop_header
    %s9 = sphi 0, %s13
    %p10 = scmp.ge.s32.totalorder %s9, 9
    %s16 = sphi 0, %s35
    %s17 = sphi 0, %s31
    %s18 = sphi 0, %s27
    %s19 = sphi 0, %s16
    %s20 = sphi 0, %s17
    %s21 = sphi 0, %s18
    %s22 = sphi 0, %s19
    %s23 = sphi 0, %s20
    %s24 = sphi 0, %s21
    %s40 = sphi 0, %s42
    %s43 = sphi 0, %s40
    %s44 = sphi 0, %s43
    %s60 = sphi 0, %s44
    %s68 = sphi 0, %s70
    %s71 = sphi 0, %s68
    %s72 = sphi 0, %s71
    %s88 = sphi 0, %s72
    %s94 = sphi 0, %s96
    %s97 = sphi 0, %s94
    %s98 = sphi 0, %s97
    %s114 = sphi 0, %s98
    %s122 = sphi 0, %s124
    %s125 = sphi 0, %s122
    %s126 = sphi 0, %s125
    %s142 = sphi 0, %s126
  $region4: #{malexnet_forward.9} parent=0 // loop_header_branch
    %12 = sbr.rel (%p10) target = $region8
  $region5: #{malexnet_forward.9} parent=0 // loop_body
    %s14 = ssub.s32 %s9, 1
    %s15 = ssub.s32 %s9, 2
    %s25 = sadd.s32 1, %s18
    %p26 = scmp.ge.s32.totalorder %s25, 7
    %s27 = scalar_select %p26, 0, %s25
    %s28 = sadd.s32 1, %s17
    %s29 = scalar_select %p26, %s28, %s17
    %p30 = scmp.ge.s32.totalorder %s29, 1
    %s31 = scalar_select %p30, 0, %s29
    %s32 = sadd.s32 1, %s16
    %s33 = scalar_select %p30, %s32, %s16
    %p34 = scmp.ge.s32.totalorder %s33, 1
    %s35 = scalar_select %p34, 0, %s33
    %s36 = ssub.s32 %s16, %s35
    %s37 = ssub.s32 %s18, %s27
    %s38 = sor.u32 %s36, %s37
    %p39 = scmp.eq.s32.totalorder %s38, 0
    %s41 = sadd.s32 %s40, 1
    %s42 = scalar_select %p39, %s40, %s41
    %p45 = pneg %p39
    %p46 = scmp.eq.s32.totalorder %s9, 6
    %p47 = por %p45, %p46
    %p48 = scmp.ne.s32.totalorder %s40, %s43
    %p49 = scmp.eq.s32.totalorder %s9, 0
    %p50 = por %p48, %p49
    %p51 = scmp.ne.s32.totalorder %s40, %s43
    %p52 = scmp.eq.s32.totalorder %s14, 6
    %p53 = por %p51, %p52
    %p54 = scmp.ne.s32.totalorder %s43, %s44
    %p55 = scmp.eq.s32.totalorder %s14, 0
    %p56 = por %p54, %p55
    %p57 = scmp.ne.s32.totalorder %s43, %s44
    %p58 = scmp.eq.s32.totalorder %s15, 6
    %p59 = por %p57, %p58
    %p61 = scmp.ne.s32.totalorder %s44, %s60
    %p62 = scmp.eq.s32.totalorder %s15, 0
    %p63 = por %p61, %p62
    %s64 = ssub.s32 %s18, %s27
    %s65 = ssub.s32 %s17, %s31
    %s66 = sor.u32 %s64, %s65
    %p67 = scmp.eq.s32.totalorder %s66, 0
    %s69 = sadd.s32 %s68, 1
    %s70 = scalar_select %p67, %s68, %s69
    %p73 = pneg %p67
    %p74 = scmp.eq.s32.totalorder %s9, 6
    %p75 = por %p73, %p74
    %p76 = scmp.ne.s32.totalorder %s68, %s71
    %p77 = scmp.eq.s32.totalorder %s9, 0
    %p78 = por %p76, %p77
    %p79 = scmp.ne.s32.totalorder %s68, %s71
    %p80 = scmp.eq.s32.totalorder %s14, 6
    %p81 = por %p79, %p80
    %p82 = scmp.ne.s32.totalorder %s71, %s72
    %p83 = scmp.eq.s32.totalorder %s14, 0
    %p84 = por %p82, %p83
    %p85 = scmp.ne.s32.totalorder %s71, %s72
    %p86 = scmp.eq.s32.totalorder %s15, 6
    %p87 = por %p85, %p86
    %p89 = scmp.ne.s32.totalorder %s72, %s88
    %p90 = scmp.eq.s32.totalorder %s15, 0
    %p91 = por %p89, %p90
    %s92 = ssub.s32 %s17, %s31
    %p93 = scmp.eq.s32.totalorder %s92, 0
    %s95 = sadd.s32 %s94, 1
    %s96 = scalar_select %p93, %s94, %s95
    %p99 = pneg %p93
    %p100 = scmp.eq.s32.totalorder %s9, 6
    %p101 = por %p99, %p100
    %p102 = scmp.ne.s32.totalorder %s94, %s97
    %p103 = scmp.eq.s32.totalorder %s9, 0
    %p104 = por %p102, %p103
    %p105 = scmp.ne.s32.totalorder %s94, %s97
    %p106 = scmp.eq.s32.totalorder %s14, 6
    %p107 = por %p105, %p106
    %p108 = scmp.ne.s32.totalorder %s97, %s98
    %p109 = scmp.eq.s32.totalorder %s14, 0
    %p110 = por %p108, %p109
    %p111 = scmp.ne.s32.totalorder %s97, %s98
    %p112 = scmp.eq.s32.totalorder %s15, 6
    %p113 = por %p111, %p112
    %p115 = scmp.ne.s32.totalorder %s98, %s114
    %p116 = scmp.eq.s32.totalorder %s15, 0
    %p117 = por %p115, %p116
    %s118 = ssub.s32 %s16, %s35
    %s119 = ssub.s32 %s17, %s31
    %s120 = sor.u32 %s118, %s119
    %p121 = scmp.eq.s32.totalorder %s120, 0
    %s123 = sadd.s32 %s122, 1
    %s124 = scalar_select %p121, %s122, %s123
    %p127 = pneg %p121
    %p128 = scmp.eq.s32.totalorder %s9, 6
    %p129 = por %p127, %p128
    %p130 = scmp.ne.s32.totalorder %s122, %s125
    %p131 = scmp.eq.s32.totalorder %s9, 0
    %p132 = por %p130, %p131
    %p133 = scmp.ne.s32.totalorder %s122, %s125
    %p134 = scmp.eq.s32.totalorder %s14, 6
    %p135 = por %p133, %p134
    %p136 = scmp.ne.s32.totalorder %s125, %s126
    %p137 = scmp.eq.s32.totalorder %s14, 0
    %p138 = por %p136, %p137
    %p139 = scmp.ne.s32.totalorder %s125, %s126
    %p140 = scmp.eq.s32.totalorder %s15, 6
    %p141 = por %p139, %p140
    %p143 = scmp.ne.s32.totalorder %s126, %s142
    %p144 = scmp.eq.s32.totalorder %s15, 0
    %p145 = por %p143, %p144
    %p146 = scmp.le.s32.totalorder 1, %s9
    %p147 = scmp.lt.s32.totalorder %s9, 8
    %p148 = pnand %p146, %p147
    %p149 = pneg %p148
    // Predicated region
    $region9: #{malexnet_forward.9} parent=5 // pred_check
      _
    $region10: #{malexnet_forward.9} parent=5 // pred_check_branch
      %151 = sbr.rel (%p148) target = $region12
    $region11: #{malexnet_forward.9} parent=5 // pred_region
      %s152 = ssub.s32 %s9, 1
      // Predicated region
      $region13: #{malexnet_forward.9} parent=11 // pred_check
        %p153 = pneg %p110
      $region14: #{malexnet_forward.9} parent=11 // pred_check_branch
        %155 = sbr.rel (%p153) target = $region16
      $region15: #{malexnet_forward.9} parent=11 // pred_region
        %s156 = smul.u32 2, %s20
        %p157 = scmp.lt.s32.totalorder %s156, 1
        %s158 = scalar_select %p157, %s156, 1
        %s159 = scalar_lea.vmem %s2, %s158
        %s160 = smul.u32 2, %s20
      $region16: #{malexnet_forward.9} parent=11 // pred_fallthru
        _
    $region12: #{malexnet_forward.9} parent=5 // pred_fallthru
      _
    %p161 = scmp.lt.s32.totalorder %s9, 7
    // Predicated region
    $region17: #{malexnet_forward.9} parent=5 // pred_check
      %p162 = pneg %p161
    $region18: #{malexnet_forward.9} parent=5 // pred_check_branch
      %164 = sbr.rel (%p162) target = $region20
    $region19: #{malexnet_forward.9} parent=5 // pred_region
      // Predicated region
      $region21: #{malexnet_forward.9} parent=19 // pred_check
        %p165 = pneg %p50
      $region22: #{malexnet_forward.9} parent=19 // pred_check_branch
        %167 = sbr.rel (%p165) target = $region24
      $region23: #{malexnet_forward.9} parent=19 // pred_region
        %s168 = smul.u32 4, %s18
        %p169 = scmp.lt.s32.totalorder %s16, 0
        %s170 = scalar_select %p169, %s16, 0
        %p171 = scmp.lt.s32.totalorder %s168, 27
        %s172 = scalar_select %p171, %s168, 27
        %s173 = smul.addr %s170, 28
        %s174 = sadd.s32 %s172, %s173
        %s175 = smul.addr %s174, 4
        %s176 = scalar_lea.vmem %s0, %s175
        %s177 = smul.u32 4, %s18
      $region24: #{malexnet_forward.9} parent=19 // pred_fallthru
        _
      // Predicated region
      $region25: #{malexnet_forward.9} parent=19 // pred_check
        %p178 = pneg %p78
      $region26: #{malexnet_forward.9} parent=19 // pred_check_branch
        %180 = sbr.rel (%p178) target = $region28
      $region27: #{malexnet_forward.9} parent=19 // pred_region
        %s181 = smul.u32 64, %s18
        %s182 = smul.u32 2, %s17
        %p183 = scmp.lt.s32.totalorder %s181, 447
        %s184 = scalar_select %p183, %s181, 447
        %p185 = scmp.lt.s32.totalorder %s182, 1
        %s186 = scalar_select %p185, %s182, 1
        %s187 = smul.addr %s184, 2
        %s188 = sadd.s32 %s186, %s187
        %s189 = smul.addr %s188, 4
        %s190 = scalar_lea.vmem %s1, %s189
        %s191 = smul.u32 64, %s18
        %s192 = smul.u32 2, %s17
      $region28: #{malexnet_forward.9} parent=19 // pred_fallthru
        _
    $region20: #{malexnet_forward.9} parent=5 // pred_fallthru
      _
    %p193 = scmp.le.s32.totalorder 1, %s9
    %p194 = scmp.lt.s32.totalorder %s9, 8
    %p195 = pnand %p193, %p194
    %p196 = pneg %p195
    // Predicated region
    $region29: #{malexnet_forward.9} parent=5 // pred_check
      _
    $region30: #{malexnet_forward.9} parent=5 // pred_check_branch
      %198 = sbr.rel (%p195) target = $region32
    $region31: #{malexnet_forward.9} parent=5 // pred_region
      %s199 = ssub.s32 %s9, 1
      %s200 = smul.u32 4, %s21
      %p201 = scmp.lt.s32.totalorder %s19, 0
      %s202 = scalar_select %p201, %s19, 0
      %p203 = scmp.lt.s32.totalorder %s200, 27
      %s204 = scalar_select %p203, %s200, 27
      %s205 = smul.addr %s202, 28
      %s206 = sadd.s32 %s204, %s205
      %s207 = smul.addr %s206, 4
      %s208 = scalar_lea.vmem %s0, %s207
      %p209 = pneg %p56
      %p210 = pneg %p53
      %s211 = smul.u32 64, %s21
      %s212 = smul.u32 2, %s20
      %p213 = scmp.lt.s32.totalorder %s211, 447
      %s214 = scalar_select %p213, %s211, 447
      %p215 = scmp.lt.s32.totalorder %s212, 1
      %s216 = scalar_select %p215, %s212, 1
      %s217 = smul.addr %s214, 2
      %s218 = sadd.s32 %s216, %s217
      %s219 = smul.addr %s218, 4
      %s220 = scalar_lea.vmem %s1, %s219
      %p221 = pneg %p84
      %p222 = pneg %p81
      %s223 = smul.u32 2, %s20
      %p224 = scmp.lt.s32.totalorder %s223, 1
      %s225 = scalar_select %p224, %s223, 1
      %s226 = scalar_lea.vmem %s2, %s225
      %p227 = pneg %p110
      %p228 = pneg %p107
      %p229 = pneg %p138
      %p230 = pneg %p135
      %s231 = smul.u32 2, %s20
      %p232 = scmp.lt.s32.totalorder %s19, 0
      %s233 = scalar_select %p232, %s19, 0
      %p234 = scmp.lt.s32.totalorder %s231, 1
      %s235 = scalar_select %p234, %s231, 1
      %s236 = smul.addr %s233, 2
      %s237 = sadd.s32 %s235, %s236
      %s238 = smul.addr %s237, 4
      %s239 = scalar_lea.vmem %s3, %s238
      %s240 = smul.u32 4, %s21
      %p241 = scmp.lt.s32.totalorder %s19, 0
      %s242 = scalar_select %p241, %s19, 0
      %p243 = scmp.lt.s32.totalorder %s240, 27
      %s244 = scalar_select %p243, %s240, 27
      %s245 = smul.addr %s242, 28
      %s246 = sadd.s32 %s244, %s245
      %s247 = smul.addr %s246, 4
      %s248 = scalar_lea.vmem %s0, %s247
      %s249 = smul.u32 4, %s21
      %s250 = smul.u32 64, %s21
      %s251 = smul.u32 2, %s20
      %p252 = scmp.lt.s32.totalorder %s250, 447
      %s253 = scalar_select %p252, %s250, 447
      %p254 = scmp.lt.s32.totalorder %s251, 1
      %s255 = scalar_select %p254, %s251, 1
      %s256 = smul.addr %s253, 2
      %s257 = sadd.s32 %s255, %s256
      %s258 = smul.addr %s257, 4
      %s259 = scalar_lea.vmem %s1, %s258
      %s260 = smul.u32 64, %s21
      %s261 = smul.u32 2, %s20
      %s262 = smul.u32 2, %s20
      %p263 = scmp.lt.s32.totalorder %s262, 1
      %s264 = scalar_select %p263, %s262, 1
      %s265 = scalar_lea.vmem %s2, %s264
      %s266 = smul.u32 2, %s20
      %s267 = smul.u32 2, %s20
      %p268 = scmp.lt.s32.totalorder %s19, 0
      %s269 = scalar_select %p268, %s19, 0
      %p270 = scmp.lt.s32.totalorder %s267, 1
      %s271 = scalar_select %p270, %s267, 1
      %s272 = smul.addr %s269, 2
      %s273 = sadd.s32 %s271, %s272
      %s274 = smul.addr %s273, 4
      %s275 = scalar_lea.vmem %s3, %s274
      %s276 = smul.u32 2, %s20
      %p277 = scmp.eq.s32.totalorder %s21, 0
      // Predicated region
      $region33: #{malexnet_forward.9} parent=31 // pred_check
        %p278 = pneg %p277
      $region34: #{malexnet_forward.9} parent=31 // pred_check_branch
        %280 = sbr.rel (%p278) target = $region36
      $region35: #{malexnet_forward.9} parent=31 // pred_region
        %281 = vst [vmem:[#allocation2] sm:$0xff] 0.0
        %282 = vst [vmem:[#allocation2 + $0x8] sm:$0xff] 0.0
      $region36: #{malexnet_forward.9} parent=31 // pred_fallthru
        _
      %v283 = vld [vmem:[#allocation2] sm:$0xff]
      %v284 = vld [vmem:[#allocation2 + $0x8] sm:$0xff]
      %v285 = vld [vmem:[%s248] sm:$0xff]
      %v286 = vld [vmem:[%s248 + $0x8] sm:$0xff]
      %v287 = vld [vmem:[%s259] sm:$0xff]
      %v288 = vld [vmem:[%s259 + $0x8] sm:$0xff]
      %v289 = vld [vmem:[%s259 + $0x10] sm:$0xff]
      %v290 = vld [vmem:[%s259 + $0x18] sm:$0xff]
      %v291 = vld [vmem:[%s259 + $0x20] sm:$0xff]
      %v292 = vld [vmem:[%s259 + $0x28] sm:$0xff]
      %v293 = vld [vmem:[%s259 + $0x30] sm:$0xff]
      %v294 = vld [vmem:[%s259 + $0x38] sm:$0xff]
      %v295 = vld [vmem:[%s259 + $0x40] sm:$0xff]
      %v296 = vld [vmem:[%s259 + $0x48] sm:$0xff]
      %v297 = vld [vmem:[%s259 + $0x50] sm:$0xff]
      %v298 = vld [vmem:[%s259 + $0x58] sm:$0xff]
      %v299 = vld [vmem:[%s259 + $0x60] sm:$0xff]
      %v300 = vld [vmem:[%s259 + $0x68] sm:$0xff]
      %v301 = vld [vmem:[%s259 + $0x70] sm:$0xff]
      %v302 = vld [vmem:[%s259 + $0x78] sm:$0xff]
      %v303 = vld [vmem:[%s259 + $0x80] sm:$0xff]
      %v304 = vld [vmem:[%s259 + $0x88] sm:$0xff]
      %v305 = vld [vmem:[%s259 + $0x90] sm:$0xff]
      %v306 = vld [vmem:[%s259 + $0x98] sm:$0xff]
      %v307 = vld [vmem:[%s259 + $0xa0] sm:$0xff]
      %v308 = vld [vmem:[%s259 + $0xa8] sm:$0xff]
      %v309 = vld [vmem:[%s259 + $0xb0] sm:$0xff]
      %v310 = vld [vmem:[%s259 + $0xb8] sm:$0xff]
      %v311 = vld [vmem:[%s259 + $0xc0] sm:$0xff]
      %v312 = vld [vmem:[%s259 + $0xc8] sm:$0xff]
      %v313 = vld [vmem:[%s259 + $0xd0] sm:$0xff]
      %v314 = vld [vmem:[%s259 + $0xd8] sm:$0xff]
      %v315 = vld [vmem:[%s259 + $0xe0] sm:$0xff]
      %v316 = vld [vmem:[%s259 + $0xe8] sm:$0xff]
      %v317 = vld [vmem:[%s259 + $0xf0] sm:$0xff]
      %v318 = vld [vmem:[%s259 + $0xf8] sm:$0xff]
      %v319 = vld [vmem:[%s259 + $0x100] sm:$0xff]
      %v320 = vld [vmem:[%s259 + $0x108] sm:$0xff]
      %v321 = vld [vmem:[%s259 + $0x110] sm:$0xff]
      %v322 = vld [vmem:[%s259 + $0x118] sm:$0xff]
      %v323 = vld [vmem:[%s259 + $0x120] sm:$0xff]
      %v324 = vld [vmem:[%s259 + $0x128] sm:$0xff]
      %v325 = vld [vmem:[%s259 + $0x130] sm:$0xff]
      %v326 = vld [vmem:[%s259 + $0x138] sm:$0xff]
      %v327 = vld [vmem:[%s259 + $0x140] sm:$0xff]
      %v328 = vld [vmem:[%s259 + $0x148] sm:$0xff]
      %v329 = vld [vmem:[%s259 + $0x150] sm:$0xff]
      %v330 = vld [vmem:[%s259 + $0x158] sm:$0xff]
      %v331 = vld [vmem:[%s259 + $0x160] sm:$0xff]
      %v332 = vld [vmem:[%s259 + $0x168] sm:$0xff]
      %v333 = vld [vmem:[%s259 + $0x170] sm:$0xff]
      %v334 = vld [vmem:[%s259 + $0x178] sm:$0xff]
      %v335 = vld [vmem:[%s259 + $0x180] sm:$0xff]
      %v336 = vld [vmem:[%s259 + $0x188] sm:$0xff]
      %v337 = vld [vmem:[%s259 + $0x190] sm:$0xff]
      %v338 = vld [vmem:[%s259 + $0x198] sm:$0xff]
      %v339 = vld [vmem:[%s259 + $0x1a0] sm:$0xff]
      %v340 = vld [vmem:[%s259 + $0x1a8] sm:$0xff]
      %v341 = vld [vmem:[%s259 + $0x1b0] sm:$0xff]
      %v342 = vld [vmem:[%s259 + $0x1b8] sm:$0xff]
      %v343 = vld [vmem:[%s259 + $0x1c0] sm:$0xff]
      %v344 = vld [vmem:[%s259 + $0x1c8] sm:$0xff]
      %v345 = vld [vmem:[%s259 + $0x1d0] sm:$0xff]
      %v346 = vld [vmem:[%s259 + $0x1d8] sm:$0xff]
      %v347 = vld [vmem:[%s259 + $0x1e0] sm:$0xff]
      %v348 = vld [vmem:[%s259 + $0x1e8] sm:$0xff]
      %v349 = vld [vmem:[%s259 + $0x1f0] sm:$0xff]
      %v350 = vld [vmem:[%s259 + $0x1f8] sm:$0xff]
      %v353 = vunpack.c.l.b16 %v285
      %v354 = vunpack.c.h.b16 %v285
      %v355 = vunpack.c.l.b16 %v286
      %v356 = vunpack.c.h.b16 %v286
      %v357 = vpack.c.b16 %v353, %v353
      %v358 = vpack.c.b16 %v354, %v354
      %v359 = vpack.c.b16 %v355, %v355
      %v360 = vpack.c.b16 %v356, %v356
      %v429 = vunpack.c.l.b16 %v287
      %v430 = vunpack.c.h.b16 %v287
      %v431 = vunpack.c.l.b16 %v288
      %v432 = vunpack.c.h.b16 %v288
      %v433 = vunpack.c.l.b16 %v289
      %v434 = vunpack.c.h.b16 %v289
      %v435 = vunpack.c.l.b16 %v290
      %v436 = vunpack.c.h.b16 %v290
      %v437 = vunpack.c.l.b16 %v291
      %v438 = vunpack.c.h.b16 %v291
      %v439 = vunpack.c.l.b16 %v292
      %v440 = vunpack.c.h.b16 %v292
      %v441 = vunpack.c.l.b16 %v293
      %v442 = vunpack.c.h.b16 %v293
      %v443 = vunpack.c.l.b16 %v294
      %v444 = vunpack.c.h.b16 %v294
      %v445 = vunpack.c.l.b16 %v295
      %v446 = vunpack.c.h.b16 %v295
      %v447 = vunpack.c.l.b16 %v296
      %v448 = vunpack.c.h.b16 %v296
      %v449 = vunpack.c.l.b16 %v297
      %v450 = vunpack.c.h.b16 %v297
      %v451 = vunpack.c.l.b16 %v298
      %v452 = vunpack.c.h.b16 %v298
      %v453 = vunpack.c.l.b16 %v299
      %v454 = vunpack.c.h.b16 %v299
      %v455 = vunpack.c.l.b16 %v300
      %v456 = vunpack.c.h.b16 %v300
      %v457 = vunpack.c.l.b16 %v301
      %v458 = vunpack.c.h.b16 %v301
      %v459 = vunpack.c.l.b16 %v302
      %v460 = vunpack.c.h.b16 %v302
      %v461 = vunpack.c.l.b16 %v303
      %v462 = vunpack.c.h.b16 %v303
      %v463 = vunpack.c.l.b16 %v304
      %v464 = vunpack.c.h.b16 %v304
      %v465 = vunpack.c.l.b16 %v305
      %v466 = vunpack.c.h.b16 %v305
      %v467 = vunpack.c.l.b16 %v306
      %v468 = vunpack.c.h.b16 %v306
      %v469 = vunpack.c.l.b16 %v307
      %v470 = vunpack.c.h.b16 %v307
      %v471 = vunpack.c.l.b16 %v308
      %v472 = vunpack.c.h.b16 %v308
      %v473 = vunpack.c.l.b16 %v309
      %v474 = vunpack.c.h.b16 %v309
      %v475 = vunpack.c.l.b16 %v310
      %v476 = vunpack.c.h.b16 %v310
      %v477 = vunpack.c.l.b16 %v311
      %v478 = vunpack.c.h.b16 %v311
      %v479 = vunpack.c.l.b16 %v312
      %v480 = vunpack.c.h.b16 %v312
      %v481 = vunpack.c.l.b16 %v313
      %v482 = vunpack.c.h.b16 %v313
      %v483 = vunpack.c.l.b16 %v314
      %v484 = vunpack.c.h.b16 %v314
      %v485 = vunpack.c.l.b16 %v315
      %v486 = vunpack.c.h.b16 %v315
      %v487 = vunpack.c.l.b16 %v316
      %v488 = vunpack.c.h.b16 %v316
      %v489 = vunpack.c.l.b16 %v317
      %v490 = vunpack.c.h.b16 %v317
      %v491 = vunpack.c.l.b16 %v318
      %v492 = vunpack.c.h.b16 %v318
      %v493 = vunpack.c.l.b16 %v319
      %v494 = vunpack.c.h.b16 %v319
      %v495 = vunpack.c.l.b16 %v320
      %v496 = vunpack.c.h.b16 %v320
      %v497 = vunpack.c.l.b16 %v321
      %v498 = vunpack.c.h.b16 %v321
      %v499 = vunpack.c.l.b16 %v322
      %v500 = vunpack.c.h.b16 %v322
      %v501 = vunpack.c.l.b16 %v323
      %v502 = vunpack.c.h.b16 %v323
      %v503 = vunpack.c.l.b16 %v324
      %v504 = vunpack.c.h.b16 %v324
      %v505 = vunpack.c.l.b16 %v325
      %v506 = vunpack.c.h.b16 %v325
      %v507 = vunpack.c.l.b16 %v326
      %v508 = vunpack.c.h.b16 %v326
      %v509 = vunpack.c.l.b16 %v327
      %v510 = vunpack.c.h.b16 %v327
      %v511 = vunpack.c.l.b16 %v328
      %v512 = vunpack.c.h.b16 %v328
      %v513 = vunpack.c.l.b16 %v329
      %v514 = vunpack.c.h.b16 %v329
      %v515 = vunpack.c.l.b16 %v330
      %v516 = vunpack.c.h.b16 %v330
      %v517 = vunpack.c.l.b16 %v331
      %v518 = vunpack.c.h.b16 %v331
      %v519 = vunpack.c.l.b16 %v332
      %v520 = vunpack.c.h.b16 %v332
      %v521 = vunpack.c.l.b16 %v333
      %v522 = vunpack.c.h.b16 %v333
      %v523 = vunpack.c.l.b16 %v334
      %v524 = vunpack.c.h.b16 %v334
      %v525 = vunpack.c.l.b16 %v335
      %v526 = vunpack.c.h.b16 %v335
      %v527 = vunpack.c.l.b16 %v336
      %v528 = vunpack.c.h.b16 %v336
      %v529 = vunpack.c.l.b16 %v337
      %v530 = vunpack.c.h.b16 %v337
      %v531 = vunpack.c.l.b16 %v338
      %v532 = vunpack.c.h.b16 %v338
      %v533 = vunpack.c.l.b16 %v339
      %v534 = vunpack.c.h.b16 %v339
      %v535 = vunpack.c.l.b16 %v340
      %v536 = vunpack.c.h.b16 %v340
      %v537 = vunpack.c.l.b16 %v341
      %v538 = vunpack.c.h.b16 %v341
      %v539 = vunpack.c.l.b16 %v342
      %v540 = vunpack.c.h.b16 %v342
      %v541 = vunpack.c.l.b16 %v343
      %v542 = vunpack.c.h.b16 %v343
      %v543 = vunpack.c.l.b16 %v344
      %v544 = vunpack.c.h.b16 %v344
      %v545 = vunpack.c.l.b16 %v345
      %v546 = vunpack.c.h.b16 %v345
      %v547 = vunpack.c.l.b16 %v346
      %v548 = vunpack.c.h.b16 %v346
      %v549 = vunpack.c.l.b16 %v347
      %v550 = vunpack.c.h.b16 %v347
      %v551 = vunpack.c.l.b16 %v348
      %v552 = vunpack.c.h.b16 %v348
      %v553 = vunpack.c.l.b16 %v349
      %v554 = vunpack.c.h.b16 %v349
      %v555 = vunpack.c.l.b16 %v350
      %v556 = vunpack.c.h.b16 %v350
      %v557 = vpack.c.b16 %v431, %v429
      %v558 = vpack.c.b16 %v432, %v430
      %v559 = vpack.c.b16 %v435, %v433
      %v560 = vpack.c.b16 %v436, %v434
      %v561 = vpack.c.b16 %v439, %v437
      %v562 = vpack.c.b16 %v440, %v438
      %v563 = vpack.c.b16 %v443, %v441
      %v564 = vpack.c.b16 %v444, %v442
      %v565 = vpack.c.b16 %v447, %v445
      %v566 = vpack.c.b16 %v448, %v446
      %v567 = vpack.c.b16 %v451, %v449
      %v568 = vpack.c.b16 %v452, %v450
      %v569 = vpack.c.b16 %v455, %v453
      %v570 = vpack.c.b16 %v456, %v454
      %v571 = vpack.c.b16 %v459, %v457
      %v572 = vpack.c.b16 %v460, %v458
      %v573 = vpack.c.b16 %v463, %v461
      %v574 = vpack.c.b16 %v464, %v462
      %v575 = vpack.c.b16 %v467, %v465
      %v576 = vpack.c.b16 %v468, %v466
      %v577 = vpack.c.b16 %v471, %v469
      %v578 = vpack.c.b16 %v472, %v470
      %v579 = vpack.c.b16 %v475, %v473
      %v580 = vpack.c.b16 %v476, %v474
      %v581 = vpack.c.b16 %v479, %v477
      %v582 = vpack.c.b16 %v480, %v478
      %v583 = vpack.c.b16 %v483, %v481
      %v584 = vpack.c.b16 %v484, %v482
      %v585 = vpack.c.b16 %v487, %v485
      %v586 = vpack.c.b16 %v488, %v486
      %v587 = vpack.c.b16 %v491, %v489
      %v588 = vpack.c.b16 %v492, %v490
      %v589 = vpack.c.b16 %v495, %v493
      %v590 = vpack.c.b16 %v496, %v494
      %v591 = vpack.c.b16 %v499, %v497
      %v592 = vpack.c.b16 %v500, %v498
      %v593 = vpack.c.b16 %v503, %v501
      %v594 = vpack.c.b16 %v504, %v502
      %v595 = vpack.c.b16 %v507, %v505
      %v596 = vpack.c.b16 %v508, %v506
      %v597 = vpack.c.b16 %v511, %v509
      %v598 = vpack.c.b16 %v512, %v510
      %v599 = vpack.c.b16 %v515, %v513
      %v600 = vpack.c.b16 %v516, %v514
      %v601 = vpack.c.b16 %v519, %v517
      %v602 = vpack.c.b16 %v520, %v518
      %v603 = vpack.c.b16 %v523, %v521
      %v604 = vpack.c.b16 %v524, %v522
      %v605 = vpack.c.b16 %v527, %v525
      %v606 = vpack.c.b16 %v528, %v526
      %v607 = vpack.c.b16 %v531, %v529
      %v608 = vpack.c.b16 %v532, %v530
      %v609 = vpack.c.b16 %v535, %v533
      %v610 = vpack.c.b16 %v536, %v534
      %v611 = vpack.c.b16 %v539, %v537
      %v612 = vpack.c.b16 %v540, %v538
      %v613 = vpack.c.b16 %v543, %v541
      %v614 = vpack.c.b16 %v544, %v542
      %v615 = vpack.c.b16 %v547, %v545
      %v616 = vpack.c.b16 %v548, %v546
      %v617 = vpack.c.b16 %v551, %v549
      %v618 = vpack.c.b16 %v552, %v550
      %v619 = vpack.c.b16 %v555, %v553
      %v620 = vpack.c.b16 %v556, %v554
      %685 = vmatprep.subr.bf16.mxu0 %v558
      %686 = vmatpush1.bf16.msra.mxu0 %v557
      %687 = vmatprep.subr.bf16.mxu0 %v560
      %688 = vmatpush1.bf16.msra.mxu0 %v559
      %689 = vmatprep.subr.bf16.mxu0 %v562
      %690 = vmatpush1.bf16.msra.mxu0 %v561
      %691 = vmatprep.subr.bf16.mxu0 %v564
      %692 = vmatpush1.bf16.msra.mxu0 %v563
      %693 = vmatprep.subr.bf16.mxu0 %v566
      %694 = vmatpush1.bf16.msra.mxu0 %v565
      %695 = vmatprep.subr.bf16.mxu0 %v568
      %696 = vmatpush1.bf16.msra.mxu0 %v567
      %697 = vmatprep.subr.bf16.mxu0 %v570
      %698 = vmatpush1.bf16.msra.mxu0 %v569
      %699 = vmatprep.subr.bf16.mxu0 %v572
      %700 = vmatpush1.bf16.msra.mxu0 %v571
      %701 = vmatprep.subr.bf16.mxu0 %v574
      %702 = vmatpush1.bf16.msra.mxu0 %v573
      %703 = vmatprep.subr.bf16.mxu0 %v576
      %704 = vmatpush1.bf16.msra.mxu0 %v575
      %705 = vmatprep.subr.bf16.mxu0 %v578
      %706 = vmatpush1.bf16.msra.mxu0 %v577
      %707 = vmatprep.subr.bf16.mxu0 %v580
      %708 = vmatpush1.bf16.msra.mxu0 %v579
      %709 = vmatprep.subr.bf16.mxu0 %v582
      %710 = vmatpush1.bf16.msra.mxu0 %v581
      %711 = vmatprep.subr.bf16.mxu0 %v584
      %712 = vmatpush1.bf16.msra.mxu0 %v583
      %713 = vmatprep.subr.bf16.mxu0 %v586
      %714 = vmatpush1.bf16.msra.mxu0 %v585
      %715 = vmatprep.subr.bf16.mxu0 %v588
      %716 = vmatpush1.bf16.msra.mxu0 %v587
      %717 = vmatprep.mubr.bf16.mxu0 %v358
      %718 = vmatmul.mubr.bf16.gmra.mrb[0].mxu0 %v357
      %v719 = vpop.f32.mrb[0].mxu0
      %v720 = vadd.f32 0.0, %v719
      %v721 = vpop.f32.mrb[0].mxu0
      %v722 = vadd.f32 0.0, %v721
      %v723 = vpop.f32.mrb[0].mxu0
      %v724 = vpop.f32.mrb[0].mxu0
      %725 = vdwg.mxu0
      %726 = vmatprep.subr.bf16.mxu0 %v590
      %727 = vmatpush1.bf16.msra.mxu0 %v589
      %728 = vmatprep.subr.bf16.mxu0 %v592
      %729 = vmatpush1.bf16.msra.mxu0 %v591
      %730 = vmatprep.subr.bf16.mxu0 %v594
      %731 = vmatpush1.bf16.msra.mxu0 %v593
      %732 = vmatprep.subr.bf16.mxu0 %v596
      %733 = vmatpush1.bf16.msra.mxu0 %v595
      %734 = vmatprep.subr.bf16.mxu0 %v598
      %735 = vmatpush1.bf16.msra.mxu0 %v597
      %736 = vmatprep.subr.bf16.mxu0 %v600
      %737 = vmatpush1.bf16.msra.mxu0 %v599
      %738 = vmatprep.subr.bf16.mxu0 %v602
      %739 = vmatpush1.bf16.msra.mxu0 %v601
      %740 = vmatprep.subr.bf16.mxu0 %v604
      %741 = vmatpush1.bf16.msra.mxu0 %v603
      %742 = vmatprep.subr.bf16.mxu0 %v606
      %743 = vmatpush1.bf16.msra.mxu0 %v605
      %744 = vmatprep.subr.bf16.mxu0 %v608
      %745 = vmatpush1.bf16.msra.mxu0 %v607
      %746 = vmatprep.subr.bf16.mxu0 %v610
      %747 = vmatpush1.bf16.msra.mxu0 %v609
      %748 = vmatprep.subr.bf16.mxu0 %v612
      %749 = vmatpush1.bf16.msra.mxu0 %v611
      %750 = vmatprep.subr.bf16.mxu0 %v614
      %751 = vmatpush1.bf16.msra.mxu0 %v613
      %752 = vmatprep.subr.bf16.mxu0 %v616
      %753 = vmatpush1.bf16.msra.mxu0 %v615
      %754 = vmatprep.subr.bf16.mxu0 %v618
      %755 = vmatpush1.bf16.msra.mxu0 %v617
      %756 = vmatprep.subr.bf16.mxu0 %v620
      %757 = vmatpush1.bf16.msra.mxu0 %v619
      %758 = vmatprep.mubr.bf16.mxu0 %v360
      %759 = vmatmul.mubr.bf16.gmra.mrb[0].mxu0 %v359
      %v760 = vpop.f32.mrb[0].mxu0
      %v761 = vadd.f32 %v720, %v760
      %v762 = vpop.f32.mrb[0].mxu0
      %v763 = vadd.f32 %v722, %v762
      %v764 = vpop.f32.mrb[0].mxu0
      %v765 = vpop.f32.mrb[0].mxu0
      %766 = vdwg.mxu0
      %v767 = vadd.f32 %v283, %v761
      %v768 = vadd.f32 %v284, %v763
      %769 = vst [vmem:[#allocation2] sm:$0xff] %v767
      %770 = vst [vmem:[#allocation2 + $0x8] sm:$0xff] %v768
      %p771 = scmp.eq.s32.totalorder %s21, 6
      // Predicated region
      $region37: #{malexnet_forward.9} parent=31 // pred_check
        %p772 = pneg %p771
      $region38: #{malexnet_forward.9} parent=31 // pred_check_branch
        %774 = sbr.rel (%p772) target = $region40
      $region39: #{malexnet_forward.9} parent=31 // pred_region
        %v775 = vld [vmem:[#allocation2] sm:$0xff]
        %v776 = vld [vmem:[#allocation2 + $0x8] sm:$0xff]
        %v777 = vld [vmem:[%s265] sm:$0x3]
        %v779 = vlaneseq
        %v780 = vshrl.u32 %v779, 7
        %v781 = vsub.s32 0, %v780
        %v782 = vrot.slane %v777, %v781
        %v783 = vlaneseq
        %v784 = vshrl.u32 %v783, 7
        %v785 = vsub.s32 1, %v784
        %v786 = vrot.slane %v777, %v785
        %v789 = vadd.f32 %v775, %v782
        %v790 = vadd.f32 %v776, %v786
        %v791 = vmax.f32 %v789, 0.0
        %v792 = vmax.f32 %v790, 0.0
        %v793 = vpack.c.bf16 %v791, %v791
        %v794 = vpack.c.bf16 %v792, %v792
        %v797 = vunpack.c.l.b16 %v793
        %v798 = vunpack.c.l.b16 %v794
        %v799 = vpack.c.b16 %v798, %v797
        %801 = vst [vmem:[%s275] sm:$0xff] %v799
      $region40: #{malexnet_forward.9} parent=31 // pred_fallthru
        _
      %s802 = smul.u32 2, %s20
      %p803 = scmp.lt.s32.totalorder %s19, 0
      %s804 = scalar_select %p803, %s19, 0
      %p805 = scmp.lt.s32.totalorder %s802, 1
      %s806 = scalar_select %p805, %s802, 1
      %s807 = smul.addr %s804, 2
      %s808 = sadd.s32 %s806, %s807
      %s809 = smul.addr %s808, 4
      %s810 = scalar_lea.vmem %s3, %s809
      // Predicated region
      $region41: #{malexnet_forward.9} parent=31 // pred_check
        %p811 = pneg %p135
      $region42: #{malexnet_forward.9} parent=31 // pred_check_branch
        %813 = sbr.rel (%p811) target = $region44
      $region43: #{malexnet_forward.9} parent=31 // pred_region
        %s814 = smul.u32 2, %s20
      $region44: #{malexnet_forward.9} parent=31 // pred_fallthru
        _
      // Predicated region
      $region45: #{malexnet_forward.9} parent=31 // pred_check
        %p815 = pneg %p135
      $region46: #{malexnet_forward.9} parent=31 // pred_check_branch
        %817 = sbr.rel (%p815) target = $region48
      $region47: #{malexnet_forward.9} parent=31 // pred_region
        %s818 = smul.u32 2, %s20
        %p819 = scmp.lt.s32.totalorder %s19, 0
        %s820 = scalar_select %p819, %s19, 0
        %p821 = scmp.lt.s32.totalorder %s818, 1
        %s822 = scalar_select %p821, %s818, 1
        %s823 = smul.addr %s820, 2
        %s824 = sadd.s32 %s822, %s823
        %s825 = smul.addr %s824, 4
        %s826 = scalar_lea.vmem %s3, %s825
      $region48: #{malexnet_forward.9} parent=31 // pred_fallthru
        _
    $region32: #{malexnet_forward.9} parent=5 // pred_fallthru
      _
    %p827 = scmp.le.s32.totalorder 2, %s9
    // Predicated region
    $region49: #{malexnet_forward.9} parent=5 // pred_check
      %p828 = pneg %p827
    $region50: #{malexnet_forward.9} parent=5 // pred_check_branch
      %830 = sbr.rel (%p828) target = $region52
    $region51: #{malexnet_forward.9} parent=5 // pred_region
      %s831 = ssub.s32 %s9, 2
    $region52: #{malexnet_forward.9} parent=5 // pred_fallthru
      _
  $region6: #{malexnet_forward.9} parent=0 // loop_footer
    %s13 = sadd.s32 1, %s9
  $region7: #{malexnet_forward.9} parent=0 // loop_footer_branch
    %8 = sbr.rel target = $region3
  $region8: #{malexnet_forward.9} parent=0 // loop_exit
    _

// kernel: malexnet_forward.10
$region0: #{malexnet_forward.10}
  #allocation0 [shape = 'u32[]', space=smem, size = 0x4, offset = 0x4, fixed_abs, tag = 'smem constant byte address 0x4 - core index']
  #allocation1 [shape = 'u32[144,128]{1,0:T(1,128)}', space=vmem, size = 0x12000, scoped, tag = 'internal scratch']
  #allocation2 [shape = 'f32[8,128]{1,0:T(8,128)}', space=vmem, size = 0x1000, scoped, tag = 'scratch operand']
  %s0 = inlined_call_operand.vmem [shape: bf16[8,2304], index: 0, kind: input, shape index: {}]
  %s1 = inlined_call_operand.vmem [shape: bf16[2304,128], index: 1, kind: input, shape index: {}]
  %s2 = inlined_call_operand.vmem [shape: f32[1,128], index: 2, kind: input, shape index: {}]
  %s3 = inlined_call_operand.vmem [shape: bf16[8,128], index: 3, kind: output, shape index: {}]
  %s4 = sld [smem:[#allocation0]]
  $region53: #{malexnet_forward.10} parent=0
    _
  %s6 = ssub.s32 1, %s4
  %s7 = scalar_select 0, %s6, %s4
  loop: start=0, step=1, limit=11
  $region2: #{malexnet_forward.10} parent=0 // loop_pre_header
    _
  $region3: #{malexnet_forward.10} parent=0 // loop_header
    %s9 = sphi 0, %s13
    %p10 = scmp.ge.s32.totalorder %s9, 11
    %s16 = sphi 0, %s35
    %s17 = sphi 0, %s31
    %s18 = sphi 0, %s27
    %s19 = sphi 0, %s16
    %s20 = sphi 0, %s17
    %s21 = sphi 0, %s18
    %s22 = sphi 0, %s19
    %s23 = sphi 0, %s20
    %s24 = sphi 0, %s21
    %s40 = sphi 0, %s42
    %s43 = sphi 0, %s40
    %s44 = sphi 0, %s43
    %s60 = sphi 0, %s44
    %s68 = sphi 0, %s70
    %s71 = sphi 0, %s68
    %s72 = sphi 0, %s71
    %s88 = sphi 0, %s72
    %s94 = sphi 0, %s96
    %s97 = sphi 0, %s94
    %s98 = sphi 0, %s97
    %s114 = sphi 0, %s98
    %s122 = sphi 0, %s124
    %s125 = sphi 0, %s122
    %s126 = sphi 0, %s125
    %s142 = sphi 0, %s126
  $region4: #{malexnet_forward.10} parent=0 // loop_header_branch
    %12 = sbr.rel (%p10) target = $region8
  $region5: #{malexnet_forward.10} parent=0 // loop_body
    %s14 = ssub.s32 %s9, 1
    %s15 = ssub.s32 %s9, 2
    %s25 = sadd.s32 1, %s18
    %p26 = scmp.ge.s32.totalorder %s25, 9
    %s27 = scalar_select %p26, 0, %s25
    %s28 = sadd.s32 1, %s17
    %s29 = scalar_select %p26, %s28, %s17
    %p30 = scmp.ge.s32.totalorder %s29, 1
    %s31 = scalar_select %p30, 0, %s29
    %s32 = sadd.s32 1, %s16
    %s33 = scalar_select %p30, %s32, %s16
    %p34 = scmp.ge.s32.totalorder %s33, 1
    %s35 = scalar_select %p34, 0, %s33
    %s36 = ssub.s32 %s16, %s35
    %s37 = ssub.s32 %s18, %s27
    %s38 = sor.u32 %s36, %s37
    %p39 = scmp.eq.s32.totalorder %s38, 0
    %s41 = sadd.s32 %s40, 1
    %s42 = scalar_select %p39, %s40, %s41
    %p45 = pneg %p39
    %p46 = scmp.eq.s32.totalorder %s9, 8
    %p47 = por %p45, %p46
    %p48 = scmp.ne.s32.totalorder %s40, %s43
    %p49 = scmp.eq.s32.totalorder %s9, 0
    %p50 = por %p48, %p49
    %p51 = scmp.ne.s32.totalorder %s40, %s43
    %p52 = scmp.eq.s32.totalorder %s14, 8
    %p53 = por %p51, %p52
    %p54 = scmp.ne.s32.totalorder %s43, %s44
    %p55 = scmp.eq.s32.totalorder %s14, 0
    %p56 = por %p54, %p55
    %p57 = scmp.ne.s32.totalorder %s43, %s44
    %p58 = scmp.eq.s32.totalorder %s15, 8
    %p59 = por %p57, %p58
    %p61 = scmp.ne.s32.totalorder %s44, %s60
    %p62 = scmp.eq.s32.totalorder %s15, 0
    %p63 = por %p61, %p62
    %s64 = ssub.s32 %s18, %s27
    %s65 = ssub.s32 %s17, %s31
    %s66 = sor.u32 %s64, %s65
    %p67 = scmp.eq.s32.totalorder %s66, 0
    %s69 = sadd.s32 %s68, 1
    %s70 = scalar_select %p67, %s68, %s69
    %p73 = pneg %p67
    %p74 = scmp.eq.s32.totalorder %s9, 8
    %p75 = por %p73, %p74
    %p76 = scmp.ne.s32.totalorder %s68, %s71
    %p77 = scmp.eq.s32.totalorder %s9, 0
    %p78 = por %p76, %p77
    %p79 = scmp.ne.s32.totalorder %s68, %s71
    %p80 = scmp.eq.s32.totalorder %s14, 8
    %p81 = por %p79, %p80
    %p82 = scmp.ne.s32.totalorder %s71, %s72
    %p83 = scmp.eq.s32.totalorder %s14, 0
    %p84 = por %p82, %p83
    %p85 = scmp.ne.s32.totalorder %s71, %s72
    %p86 = scmp.eq.s32.totalorder %s15, 8
    %p87 = por %p85, %p86
    %p89 = scmp.ne.s32.totalorder %s72, %s88
    %p90 = scmp.eq.s32.totalorder %s15, 0
    %p91 = por %p89, %p90
    %s92 = ssub.s32 %s17, %s31
    %p93 = scmp.eq.s32.totalorder %s92, 0
    %s95 = sadd.s32 %s94, 1
    %s96 = scalar_select %p93, %s94, %s95
    %p99 = pneg %p93
    %p100 = scmp.eq.s32.totalorder %s9, 8
    %p101 = por %p99, %p100
    %p102 = scmp.ne.s32.totalorder %s94, %s97
    %p103 = scmp.eq.s32.totalorder %s9, 0
    %p104 = por %p102, %p103
    %p105 = scmp.ne.s32.totalorder %s94, %s97
    %p106 = scmp.eq.s32.totalorder %s14, 8
    %p107 = por %p105, %p106
    %p108 = scmp.ne.s32.totalorder %s97, %s98
    %p109 = scmp.eq.s32.totalorder %s14, 0
    %p110 = por %p108, %p109
    %p111 = scmp.ne.s32.totalorder %s97, %s98
    %p112 = scmp.eq.s32.totalorder %s15, 8
    %p113 = por %p111, %p112
    %p115 = scmp.ne.s32.totalorder %s98, %s114
    %p116 = scmp.eq.s32.totalorder %s15, 0
    %p117 = por %p115, %p116
    %s118 = ssub.s32 %s16, %s35
    %s119 = ssub.s32 %s17, %s31
    %s120 = sor.u32 %s118, %s119
    %p121 = scmp.eq.s32.totalorder %s120, 0
    %s123 = sadd.s32 %s122, 1
    %s124 = scalar_select %p121, %s122, %s123
    %p127 = pneg %p121
    %p128 = scmp.eq.s32.totalorder %s9, 8
    %p129 = por %p127, %p128
    %p130 = scmp.ne.s32.totalorder %s122, %s125
    %p131 = scmp.eq.s32.totalorder %s9, 0
    %p132 = por %p130, %p131
    %p133 = scmp.ne.s32.totalorder %s122, %s125
    %p134 = scmp.eq.s32.totalorder %s14, 8
    %p135 = por %p133, %p134
    %p136 = scmp.ne.s32.totalorder %s125, %s126
    %p137 = scmp.eq.s32.totalorder %s14, 0
    %p138 = por %p136, %p137
    %p139 = scmp.ne.s32.totalorder %s125, %s126
    %p140 = scmp.eq.s32.totalorder %s15, 8
    %p141 = por %p139, %p140
    %p143 = scmp.ne.s32.totalorder %s126, %s142
    %p144 = scmp.eq.s32.totalorder %s15, 0
    %p145 = por %p143, %p144
    %p146 = scmp.le.s32.totalorder 1, %s9
    %p147 = scmp.lt.s32.totalorder %s9, 10
    %p148 = pnand %p146, %p147
    %p149 = pneg %p148
    // Predicated region
    $region9: #{malexnet_forward.10} parent=5 // pred_check
      _
    $region10: #{malexnet_forward.10} parent=5 // pred_check_branch
      %151 = sbr.rel (%p148) target = $region12
    $region11: #{malexnet_forward.10} parent=5 // pred_region
      %s152 = ssub.s32 %s9, 1
      // Predicated region
      $region13: #{malexnet_forward.10} parent=11 // pred_check
        %p153 = pneg %p110
      $region14: #{malexnet_forward.10} parent=11 // pred_check_branch
        %155 = sbr.rel (%p153) target = $region16
      $region15: #{malexnet_forward.10} parent=11 // pred_region
        %p156 = scmp.lt.s32.totalorder %s20, 0
        %s157 = scalar_select %p156, %s20, 0
        %s158 = scalar_lea.vmem %s2, %s157
      $region16: #{malexnet_forward.10} parent=11 // pred_fallthru
        _
    $region12: #{malexnet_forward.10} parent=5 // pred_fallthru
      _
    %p159 = scmp.lt.s32.totalorder %s9, 9
    // Predicated region
    $region17: #{malexnet_forward.10} parent=5 // pred_check
      %p160 = pneg %p159
    $region18: #{malexnet_forward.10} parent=5 // pred_check_branch
      %162 = sbr.rel (%p160) target = $region20
    $region19: #{malexnet_forward.10} parent=5 // pred_region
      // Predicated region
      $region21: #{malexnet_forward.10} parent=19 // pred_check
        %p163 = pneg %p50
      $region22: #{malexnet_forward.10} parent=19 // pred_check_branch
        %165 = sbr.rel (%p163) target = $region24
      $region23: #{malexnet_forward.10} parent=19 // pred_region
        %s166 = smul.u32 2, %s18
        %p167 = scmp.lt.s32.totalorder %s16, 0
        %s168 = scalar_select %p167, %s16, 0
        %p169 = scmp.lt.s32.totalorder %s166, 17
        %s170 = scalar_select %p169, %s166, 17
        %s171 = smul.addr %s168, 18
        %s172 = sadd.s32 %s170, %s171
        %s173 = smul.addr %s172, 4
        %s174 = scalar_lea.vmem %s0, %s173
        %s175 = smul.u32 2, %s18
      $region24: #{malexnet_forward.10} parent=19 // pred_fallthru
        _
      // Predicated region
      $region25: #{malexnet_forward.10} parent=19 // pred_check
        %p176 = pneg %p78
      $region26: #{malexnet_forward.10} parent=19 // pred_check_branch
        %178 = sbr.rel (%p176) target = $region28
      $region27: #{malexnet_forward.10} parent=19 // pred_region
        %s179 = smul.u32 32, %s18
        %p180 = scmp.lt.s32.totalorder %s179, 287
        %s181 = scalar_select %p180, %s179, 287
        %p182 = scmp.lt.s32.totalorder %s17, 0
        %s183 = scalar_select %p182, %s17, 0
        %s184 = sadd.s32 %s183, %s181
        %s185 = smul.addr %s184, 4
        %s186 = scalar_lea.vmem %s1, %s185
        %s187 = smul.u32 32, %s18
      $region28: #{malexnet_forward.10} parent=19 // pred_fallthru
        _
    $region20: #{malexnet_forward.10} parent=5 // pred_fallthru
      _
    %p188 = scmp.le.s32.totalorder 1, %s9
    %p189 = scmp.lt.s32.totalorder %s9, 10
    %p190 = pnand %p188, %p189
    %p191 = pneg %p190
    // Predicated region
    $region29: #{malexnet_forward.10} parent=5 // pred_check
      _
    $region30: #{malexnet_forward.10} parent=5 // pred_check_branch
      %193 = sbr.rel (%p190) target = $region32
    $region31: #{malexnet_forward.10} parent=5 // pred_region
      %s194 = ssub.s32 %s9, 1
      %s195 = smul.u32 2, %s21
      %p196 = scmp.lt.s32.totalorder %s19, 0
      %s197 = scalar_select %p196, %s19, 0
      %p198 = scmp.lt.s32.totalorder %s195, 17
      %s199 = scalar_select %p198, %s195, 17
      %s200 = smul.addr %s197, 18
      %s201 = sadd.s32 %s199, %s200
      %s202 = smul.addr %s201, 4
      %s203 = scalar_lea.vmem %s0, %s202
      %p204 = pneg %p56
      %p205 = pneg %p53
      %s206 = smul.u32 32, %s21
      %p207 = scmp.lt.s32.totalorder %s206, 287
      %s208 = scalar_select %p207, %s206, 287
      %p209 = scmp.lt.s32.totalorder %s20, 0
      %s210 = scalar_select %p209, %s20, 0
      %s211 = sadd.s32 %s210, %s208
      %s212 = smul.addr %s211, 4
      %s213 = scalar_lea.vmem %s1, %s212
      %p214 = pneg %p84
      %p215 = pneg %p81
      %p216 = scmp.lt.s32.totalorder %s20, 0
      %s217 = scalar_select %p216, %s20, 0
      %s218 = scalar_lea.vmem %s2, %s217
      %p219 = pneg %p110
      %p220 = pneg %p107
      %p221 = pneg %p138
      %p222 = pneg %p135
      %p223 = scmp.lt.s32.totalorder %s19, 0
      %s224 = scalar_select %p223, %s19, 0
      %p225 = scmp.lt.s32.totalorder %s20, 0
      %s226 = scalar_select %p225, %s20, 0
      %s227 = sadd.s32 %s226, %s224
      %s228 = smul.addr %s227, 4
      %s229 = scalar_lea.vmem %s3, %s228
      %s230 = smul.u32 2, %s21
      %p231 = scmp.lt.s32.totalorder %s19, 0
      %s232 = scalar_select %p231, %s19, 0
      %p233 = scmp.lt.s32.totalorder %s230, 17
      %s234 = scalar_select %p233, %s230, 17
      %s235 = smul.addr %s232, 18
      %s236 = sadd.s32 %s234, %s235
      %s237 = smul.addr %s236, 4
      %s238 = scalar_lea.vmem %s0, %s237
      %s239 = smul.u32 2, %s21
      %s240 = smul.u32 32, %s21
      %p241 = scmp.lt.s32.totalorder %s240, 287
      %s242 = scalar_select %p241, %s240, 287
      %p243 = scmp.lt.s32.totalorder %s20, 0
      %s244 = scalar_select %p243, %s20, 0
      %s245 = sadd.s32 %s244, %s242
      %s246 = smul.addr %s245, 4
      %s247 = scalar_lea.vmem %s1, %s246
      %s248 = smul.u32 32, %s21
      %p249 = scmp.lt.s32.totalorder %s20, 0
      %s250 = scalar_select %p249, %s20, 0
      %s251 = scalar_lea.vmem %s2, %s250
      %p252 = scmp.lt.s32.totalorder %s19, 0
      %s253 = scalar_select %p252, %s19, 0
      %p254 = scmp.lt.s32.totalorder %s20, 0
      %s255 = scalar_select %p254, %s20, 0
      %s256 = sadd.s32 %s255, %s253
      %s257 = smul.addr %s256, 4
      %s258 = scalar_lea.vmem %s3, %s257
      %p260 = scmp.eq.s32.totalorder %s21, 0
      // Predicated region
      $region33: #{malexnet_forward.10} parent=31 // pred_check
        %p261 = pneg %p260
      $region34: #{malexnet_forward.10} parent=31 // pred_check_branch
        %263 = sbr.rel (%p261) target = $region36
      $region35: #{malexnet_forward.10} parent=31 // pred_region
        %264 = vst [vmem:[#allocation2] sm:$0xff] 0.0
      $region36: #{malexnet_forward.10} parent=31 // pred_fallthru
        _
      %v265 = vld [vmem:[#allocation2] sm:$0xff]
      %v266 = vld [vmem:[%s238] sm:$0xff]
      %v267 = vld [vmem:[%s247] sm:$0xf]
      %v268 = vld [vmem:[%s247 + $0x4] sm:$0xf]
      %v269 = vld [vmem:[%s247 + $0x8] sm:$0xf]
      %v270 = vld [vmem:[%s247 + $0xc] sm:$0xf]
      %v271 = vld [vmem:[%s247 + $0x10] sm:$0xf]
      %v272 = vld [vmem:[%s247 + $0x14] sm:$0xf]
      %v273 = vld [vmem:[%s247 + $0x18] sm:$0xf]
      %v274 = vld [vmem:[%s247 + $0x1c] sm:$0xf]
      %v275 = vld [vmem:[%s247 + $0x20] sm:$0xf]
      %v276 = vld [vmem:[%s247 + $0x24] sm:$0xf]
      %v277 = vld [vmem:[%s247 + $0x28] sm:$0xf]
      %v278 = vld [vmem:[%s247 + $0x2c] sm:$0xf]
      %v279 = vld [vmem:[%s247 + $0x30] sm:$0xf]
      %v280 = vld [vmem:[%s247 + $0x34] sm:$0xf]
      %v281 = vld [vmem:[%s247 + $0x38] sm:$0xf]
      %v282 = vld [vmem:[%s247 + $0x3c] sm:$0xf]
      %v283 = vld [vmem:[%s247 + $0x40] sm:$0xf]
      %v284 = vld [vmem:[%s247 + $0x44] sm:$0xf]
      %v285 = vld [vmem:[%s247 + $0x48] sm:$0xf]
      %v286 = vld [vmem:[%s247 + $0x4c] sm:$0xf]
      %v287 = vld [vmem:[%s247 + $0x50] sm:$0xf]
      %v288 = vld [vmem:[%s247 + $0x54] sm:$0xf]
      %v289 = vld [vmem:[%s247 + $0x58] sm:$0xf]
      %v290 = vld [vmem:[%s247 + $0x5c] sm:$0xf]
      %v291 = vld [vmem:[%s247 + $0x60] sm:$0xf]
      %v292 = vld [vmem:[%s247 + $0x64] sm:$0xf]
      %v293 = vld [vmem:[%s247 + $0x68] sm:$0xf]
      %v294 = vld [vmem:[%s247 + $0x6c] sm:$0xf]
      %v295 = vld [vmem:[%s247 + $0x70] sm:$0xf]
      %v296 = vld [vmem:[%s247 + $0x74] sm:$0xf]
      %v297 = vld [vmem:[%s247 + $0x78] sm:$0xf]
      %v298 = vld [vmem:[%s247 + $0x7c] sm:$0xf]
      %v300 = vunpack.c.l.b16 %v266
      %v301 = vunpack.c.h.b16 %v266
      %v302 = vpack.c.b16 %v300, %v300
      %v303 = vpack.c.b16 %v301, %v301
      %v338 = vunpack.c.l.b16 %v267
      %v339 = vunpack.c.l.b16 %v268
      %v340 = vunpack.c.l.b16 %v269
      %v341 = vunpack.c.l.b16 %v270
      %v342 = vunpack.c.l.b16 %v271
      %v343 = vunpack.c.l.b16 %v272
      %v344 = vunpack.c.l.b16 %v273
      %v345 = vunpack.c.l.b16 %v274
      %v346 = vunpack.c.l.b16 %v275
      %v347 = vunpack.c.l.b16 %v276
      %v348 = vunpack.c.l.b16 %v277
      %v349 = vunpack.c.l.b16 %v278
      %v350 = vunpack.c.l.b16 %v279
      %v351 = vunpack.c.l.b16 %v280
      %v352 = vunpack.c.l.b16 %v281
      %v353 = vunpack.c.l.b16 %v282
      %v354 = vunpack.c.l.b16 %v283
      %v355 = vunpack.c.l.b16 %v284
      %v356 = vunpack.c.l.b16 %v285
      %v357 = vunpack.c.l.b16 %v286
      %v358 = vunpack.c.l.b16 %v287
      %v359 = vunpack.c.l.b16 %v288
      %v360 = vunpack.c.l.b16 %v289
      %v361 = vunpack.c.l.b16 %v290
      %v362 = vunpack.c.l.b16 %v291
      %v363 = vunpack.c.l.b16 %v292
      %v364 = vunpack.c.l.b16 %v293
      %v365 = vunpack.c.l.b16 %v294
      %v366 = vunpack.c.l.b16 %v295
      %v367 = vunpack.c.l.b16 %v296
      %v368 = vunpack.c.l.b16 %v297
      %v369 = vunpack.c.l.b16 %v298
      %v370 = vpack.c.b16 %v339, %v338
      %v371 = vpack.c.b16 %v341, %v340
      %v372 = vpack.c.b16 %v343, %v342
      %v373 = vpack.c.b16 %v345, %v344
      %v374 = vpack.c.b16 %v347, %v346
      %v375 = vpack.c.b16 %v349, %v348
      %v376 = vpack.c.b16 %v351, %v350
      %v377 = vpack.c.b16 %v353, %v352
      %v378 = vpack.c.b16 %v355, %v354
      %v379 = vpack.c.b16 %v357, %v356
      %v380 = vpack.c.b16 %v359, %v358
      %v381 = vpack.c.b16 %v361, %v360
      %v382 = vpack.c.b16 %v363, %v362
      %v383 = vpack.c.b16 %v365, %v364
      %v384 = vpack.c.b16 %v367, %v366
      %v385 = vpack.c.b16 %v369, %v368
      %402 = vmatprep.subr.bf16.mxu0 0
      %403 = vmatpush1.bf16.msra.mxu0 %v370
      %404 = vmatprep.subr.bf16.mxu0 0
      %405 = vmatpush1.bf16.msra.mxu0 %v371
      %406 = vmatprep.subr.bf16.mxu0 0
      %407 = vmatpush1.bf16.msra.mxu0 %v372
      %408 = vmatprep.subr.bf16.mxu0 0
      %409 = vmatpush1.bf16.msra.mxu0 %v373
      %410 = vmatprep.subr.bf16.mxu0 0
      %411 = vmatpush1.bf16.msra.mxu0 %v374
      %412 = vmatprep.subr.bf16.mxu0 0
      %413 = vmatpush1.bf16.msra.mxu0 %v375
      %414 = vmatprep.subr.bf16.mxu0 0
      %415 = vmatpush1.bf16.msra.mxu0 %v376
      %416 = vmatprep.subr.bf16.mxu0 0
      %417 = vmatpush1.bf16.msra.mxu0 %v377
      %418 = vmatprep.subr.bf16.mxu0 0
      %419 = vmatpush1.bf16.msra.mxu0 %v378
      %420 = vmatprep.subr.bf16.mxu0 0
      %421 = vmatpush1.bf16.msra.mxu0 %v379
      %422 = vmatprep.subr.bf16.mxu0 0
      %423 = vmatpush1.bf16.msra.mxu0 %v380
      %424 = vmatprep.subr.bf16.mxu0 0
      %425 = vmatpush1.bf16.msra.mxu0 %v381
      %426 = vmatprep.subr.bf16.mxu0 0
      %427 = vmatpush1.bf16.msra.mxu0 %v382
      %428 = vmatprep.subr.bf16.mxu0 0
      %429 = vmatpush1.bf16.msra.mxu0 %v383
      %430 = vmatprep.subr.bf16.mxu0 0
      %431 = vmatpush1.bf16.msra.mxu0 %v384
      %432 = vmatprep.subr.bf16.mxu0 0
      %433 = vmatpush1.bf16.msra.mxu0 %v385
      %434 = vmatprep.mubr.bf16.mxu0 %v303
      %435 = vmatmul.mubr.bf16.gmra.mrb[0].mxu0 %v302
      %v436 = vpop.f32.mrb[0].mxu0
      %v437 = vadd.f32 0.0, %v436
      %v438 = vpop.f32.mrb[0].mxu0
      %v439 = vpop.f32.mrb[0].mxu0
      %v440 = vpop.f32.mrb[0].mxu0
      %441 = vdwg.mxu0
      %v442 = vadd.f32 %v265, %v437
      %443 = vst [vmem:[#allocation2] sm:$0xff] %v442
      %p444 = scmp.eq.s32.totalorder %s21, 8
      // Predicated region
      $region37: #{malexnet_forward.10} parent=31 // pred_check
        %p445 = pneg %p444
      $region38: #{malexnet_forward.10} parent=31 // pred_check_branch
        %447 = sbr.rel (%p445) target = $region40
      $region39: #{malexnet_forward.10} parent=31 // pred_region
        %v448 = vld [vmem:[#allocation2] sm:$0xff]
        %v449 = vld [vmem:[%s251] sm:$0x1]
        %v451 = vlaneseq
        %v452 = vshrl.u32 %v451, 7
        %v453 = vsub.s32 0, %v452
        %v454 = vrot.slane %v449, %v453
        %v456 = vadd.f32 %v448, %v454
        %v457 = vmax.f32 %v456, 0.0
        %v458 = vpack.c.bf16 %v457, %v457
        %459 = vst [vmem:[%s258] sm:$0xf] %v458
      $region40: #{malexnet_forward.10} parent=31 // pred_fallthru
        _
      %p460 = scmp.lt.s32.totalorder %s19, 0
      %s461 = scalar_select %p460, %s19, 0
      %p462 = scmp.lt.s32.totalorder %s20, 0
      %s463 = scalar_select %p462, %s20, 0
      %s464 = sadd.s32 %s463, %s461
      %s465 = smul.addr %s464, 4
      %s466 = scalar_lea.vmem %s3, %s465
      // Predicated region
      $region41: #{malexnet_forward.10} parent=31 // pred_check
        %p467 = pneg %p135
      $region42: #{malexnet_forward.10} parent=31 // pred_check_branch
        %469 = sbr.rel (%p467) target = $region44
      $region43: #{malexnet_forward.10} parent=31 // pred_region
        _
      $region44: #{malexnet_forward.10} parent=31 // pred_fallthru
        _
      // Predicated region
      $region45: #{malexnet_forward.10} parent=31 // pred_check
        %p470 = pneg %p135
      $region46: #{malexnet_forward.10} parent=31 // pred_check_branch
        %472 = sbr.rel (%p470) target = $region48
      $region47: #{malexnet_forward.10} parent=31 // pred_region
        %p473 = scmp.lt.s32.totalorder %s19, 0
        %s474 = scalar_select %p473, %s19, 0
        %p475 = scmp.lt.s32.totalorder %s20, 0
        %s476 = scalar_select %p475, %s20, 0
        %s477 = sadd.s32 %s476, %s474
        %s478 = smul.addr %s477, 4
        %s479 = scalar_lea.vmem %s3, %s478
      $region48: #{malexnet_forward.10} parent=31 // pred_fallthru
        _
    $region32: #{malexnet_forward.10} parent=5 // pred_fallthru
      _
    %p480 = scmp.le.s32.totalorder 2, %s9
    // Predicated region
    $region49: #{malexnet_forward.10} parent=5 // pred_check
      %p481 = pneg %p480
    $region50: #{malexnet_forward.10} parent=5 // pred_check_branch
      %483 = sbr.rel (%p481) target = $region52
    $region51: #{malexnet_forward.10} parent=5 // pred_region
      %s484 = ssub.s32 %s9, 2
    $region52: #{malexnet_forward.10} parent=5 // pred_fallthru
      _
  $region6: #{malexnet_forward.10} parent=0 // loop_footer
    %s13 = sadd.s32 1, %s9
  $region7: #{malexnet_forward.10} parent=0 // loop_footer_branch
    %8 = sbr.rel target = $region3
  $region8: #{malexnet_forward.10} parent=0 // loop_exit
    _

// kernel: malexnet_forward.11
$region0: #{malexnet_forward.11}
  #allocation0 [shape = 'u32[]', space=smem, size = 0x4, offset = 0x4, fixed_abs, tag = 'smem constant byte address 0x4 - core index']
  #allocation1 [shape = 'u32[144,128]{1,0:T(1,128)}', space=vmem, size = 0x12000, scoped, tag = 'internal scratch']
  %s0 = inlined_call_operand.vmem [shape: bf16[2,4,128], index: 0, kind: input, shape index: {}]
  %s1 = inlined_call_operand.vmem [shape: bf16[128,128], index: 1, kind: input, shape index: {}]
  %s2 = inlined_call_operand.vmem [shape: f32[1,128], index: 2, kind: input, shape index: {}]
  %s3 = inlined_call_operand.hbm [shape: f32[2,128], index: 3, kind: output, shape index: {}]
  %s4 = sld [smem:[#allocation0]]
  $region22: #{malexnet_forward.11} parent=0
    _
  %s6 = ssub.s32 1, %s4
  %s7 = scalar_select 0, %s6, %s4
  $region1: #{malexnet_forward.11} parent=0
    #allocation2 [shape = 'u8[1024]{0}', space=vmem, size = 0x400, scoped, tag = 'output window, operand 0, single buffered']
    #allocation3 [shape = 's32[1]{0}', space=sflag, size = 0x4, scoped, tag = 'scoped memory for malexnet_forward.11']
    %8 = vsyncpa [#allocation3], 0
    // Predicated region
    $region2: #{malexnet_forward.11} parent=1 // pred_check
      _
    $region3: #{malexnet_forward.11} parent=1 // pred_check_branch
      %10 = sbr.rel (0) target = $region5
    $region4: #{malexnet_forward.11} parent=1 // pred_region
      _
    $region5: #{malexnet_forward.11} parent=1 // pred_fallthru
      _
    // Predicated region
    $region6: #{malexnet_forward.11} parent=1 // pred_check
      _
    $region7: #{malexnet_forward.11} parent=1 // pred_check_branch
      %12 = sbr.rel (0) target = $region9
    $region8: #{malexnet_forward.11} parent=1 // pred_region
      _
    $region9: #{malexnet_forward.11} parent=1 // pred_fallthru
      _
    // Predicated region
    $region10: #{malexnet_forward.11} parent=1 // pred_check
      _
    $region11: #{malexnet_forward.11} parent=1 // pred_check_branch
      %14 = sbr.rel (0) target = $region13
    $region12: #{malexnet_forward.11} parent=1 // pred_region
      _
    $region13: #{malexnet_forward.11} parent=1 // pred_fallthru
      _
    %v16 = vld [vmem:[%s0] sm:$0x3]
    %v17 = vld [vmem:[%s0 + $0x2] sm:$0x3]
    %v18 = vunpack.c.l.bf16 %v16
    %v19 = vunpack.c.l.bf16 %v17
    %vm20 = vcmask 1043456
    %v21 = vsel %vm20, %v18, 0.0
    %v22 = vrot.slane %v21, 4
    %v23 = vadd.f32 %v21, %v22
    %v24 = vrot.slane %v23, 2
    %v25 = vadd.f32 %v23, %v24
    %v26 = vrot.slane %v25, 1
    %v27 = vadd.f32 %v25, %v26
    %v28 = vsel %vm20, %v19, 0.0
    %v29 = vrot.slane %v28, 4
    %v30 = vadd.f32 %v28, %v29
    %v31 = vrot.slane %v30, 2
    %v32 = vadd.f32 %v30, %v31
    %v33 = vrot.slane %v32, 1
    %v34 = vadd.f32 %v32, %v33
    %v35 = vmul.f32 %v27, 0.25
    %v36 = vmul.f32 %v34, 0.25
    %v37 = vpack.c.bf16 %v35, %v35
    %v38 = vpack.c.bf16 %v36, %v36
    %v39 = vld [vmem:[%s1] sm:$0xf]
    %v40 = vld [vmem:[%s1 + $0x4] sm:$0xf]
    %v41 = vld [vmem:[%s1 + $0x8] sm:$0xf]
    %v42 = vld [vmem:[%s1 + $0xc] sm:$0xf]
    %v43 = vld [vmem:[%s1 + $0x10] sm:$0xf]
    %v44 = vld [vmem:[%s1 + $0x14] sm:$0xf]
    %v45 = vld [vmem:[%s1 + $0x18] sm:$0xf]
    %v46 = vld [vmem:[%s1 + $0x1c] sm:$0xf]
    %v47 = vld [vmem:[%s1 + $0x20] sm:$0xf]
    %v48 = vld [vmem:[%s1 + $0x24] sm:$0xf]
    %v49 = vld [vmem:[%s1 + $0x28] sm:$0xf]
    %v50 = vld [vmem:[%s1 + $0x2c] sm:$0xf]
    %v51 = vld [vmem:[%s1 + $0x30] sm:$0xf]
    %v52 = vld [vmem:[%s1 + $0x34] sm:$0xf]
    %v53 = vld [vmem:[%s1 + $0x38] sm:$0xf]
    %v54 = vld [vmem:[%s1 + $0x3c] sm:$0xf]
    %v55 = vld [vmem:[%s2] sm:$0x1]
    %v57 = vlaneseq
    %v58 = vshrl.u32 %v57, 7
    %v59 = vsub.s32 0, %v58
    %v60 = vrot.slane %v55, %v59
    %v64 = vunpack.c.l.b16 %v37
    %v65 = vunpack.c.l.b16 %v38
    %vm66 = vcmask 1041409
    %v67 = vsel %vm66, %v65, %v64
    %v68 = vpack.c.b16 %v67, %v67
    %v86 = vunpack.c.l.b16 %v39
    %v87 = vunpack.c.l.b16 %v40
    %v88 = vunpack.c.l.b16 %v41
    %v89 = vunpack.c.l.b16 %v42
    %v90 = vunpack.c.l.b16 %v43
    %v91 = vunpack.c.l.b16 %v44
    %v92 = vunpack.c.l.b16 %v45
    %v93 = vunpack.c.l.b16 %v46
    %v94 = vunpack.c.l.b16 %v47
    %v95 = vunpack.c.l.b16 %v48
    %v96 = vunpack.c.l.b16 %v49
    %v97 = vunpack.c.l.b16 %v50
    %v98 = vunpack.c.l.b16 %v51
    %v99 = vunpack.c.l.b16 %v52
    %v100 = vunpack.c.l.b16 %v53
    %v101 = vunpack.c.l.b16 %v54
    %v102 = vpack.c.b16 %v87, %v86
    %v103 = vpack.c.b16 %v89, %v88
    %v104 = vpack.c.b16 %v91, %v90
    %v105 = vpack.c.b16 %v93, %v92
    %v106 = vpack.c.b16 %v95, %v94
    %v107 = vpack.c.b16 %v97, %v96
    %v108 = vpack.c.b16 %v99, %v98
    %v109 = vpack.c.b16 %v101, %v100
    %118 = vmatprep.subr.bf16.mxu0 0
    %119 = vmatpush1.bf16.msra.mxu0 %v102
    %120 = vmatprep.subr.bf16.mxu0 0
    %121 = vmatpush1.bf16.msra.mxu0 %v103
    %122 = vmatprep.subr.bf16.mxu0 0
    %123 = vmatpush1.bf16.msra.mxu0 %v104
    %124 = vmatprep.subr.bf16.mxu0 0
    %125 = vmatpush1.bf16.msra.mxu0 %v105
    %126 = vmatprep.subr.bf16.mxu0 0
    %127 = vmatpush1.bf16.msra.mxu0 %v106
    %128 = vmatprep.subr.bf16.mxu0 0
    %129 = vmatpush1.bf16.msra.mxu0 %v107
    %130 = vmatprep.subr.bf16.mxu0 0
    %131 = vmatpush1.bf16.msra.mxu0 %v108
    %132 = vmatprep.subr.bf16.mxu0 0
    %133 = vmatpush1.bf16.msra.mxu0 %v109
    %134 = vmatprep.subr.bf16.mxu0 0
    %135 = vmatpush1.bf16.msra.mxu0 0
    %136 = vmatprep.subr.bf16.mxu0 0
    %137 = vmatpush1.bf16.msra.mxu0 0
    %138 = vmatprep.subr.bf16.mxu0 0
    %139 = vmatpush1.bf16.msra.mxu0 0
    %140 = vmatprep.subr.bf16.mxu0 0
    %141 = vmatpush1.bf16.msra.mxu0 0
    %142 = vmatprep.subr.bf16.mxu0 0
    %143 = vmatpush1.bf16.msra.mxu0 0
    %144 = vmatprep.subr.bf16.mxu0 0
    %145 = vmatpush1.bf16.msra.mxu0 0
    %146 = vmatprep.subr.bf16.mxu0 0
    %147 = vmatpush1.bf16.msra.mxu0 0
    %148 = vmatprep.subr.bf16.mxu0 0
    %149 = vmatpush1.bf16.msra.mxu0 0
    %150 = vmatprep.mubr.bf16.mxu0 0
    %151 = vmatmul.mubr.bf16.gmra.mrb[0].mxu0 %v68
    %v152 = vpop.f32.mrb[0].mxu0
    %v153 = vadd.f32 %v60, %v152
    %v154 = vpop.f32.mrb[0].mxu0
    %v155 = vpop.f32.mrb[0].mxu0
    %v156 = vpop.f32.mrb[0].mxu0
    %157 = vdwg.mxu0
    %158 = vst [vmem:[#allocation2] sm:$0x3] %v153
    // Predicated region
    $region14: #{malexnet_forward.11} parent=1 // pred_check
      _
    $region15: #{malexnet_forward.11} parent=1 // pred_check_branch
      %160 = sbr.rel (0) target = $region17
    $region16: #{malexnet_forward.11} parent=1 // pred_region
      %s162 = ssub.s32 32, 32
      %163 = vsyncadd [#allocation3], %s162
      %s165 = sshll.u32 [#allocation2], 4
      %s166 = int_to_ptr.vmem [resolvable:$true] %s165
      %168 = dma.vmem_to_hbm [thread:$0]  %s166, 32, %s3, [#allocation3]
    $region17: #{malexnet_forward.11} parent=1 // pred_fallthru
      _
    // Predicated region
    $region18: #{malexnet_forward.11} parent=1 // pred_check
      _
    $region19: #{malexnet_forward.11} parent=1 // pred_check_branch
      %170 = sbr.rel (0) target = $region21
    $region20: #{malexnet_forward.11} parent=1 // pred_region
      %171 = dma.done [#allocation3], 32
    $region21: #{malexnet_forward.11} parent=1 // pred_fallthru
      _
    %172 = vsyncpa [#allocation3], 1

</llo_original>
